<compile_context>
chip_gen: v6e
topology: v6e:2x2x1
jax: 0.10.0
libtpu: 0.0.40
codegen_flags: <defaults>
</compile_context>

<pallas_src>
import functools

import jax
import jax.numpy as jnp
from jax import lax
from jax.experimental import pallas as pl
from jax.experimental.pallas import tpu as pltpu

_LANES = 128                 # boxes along the lane axis
_SUBLANES = 8                # boxes along the sublane axis -> 1024 boxes / slab
_MAX_SLABS_PER_BLOCK = 32    # 32 x (8,128) = 32768 boxes per grid step (~640 KiB/input)
_TINY = 1e-8                 # union guard (degenerate / padded boxes)
_DILATE = 3e-4               # relative dilation of the target box, used only in the
                             # intersection computation (robustness; IoU error O(3e-4))


def _box_corners(cx, cy, w, h, ang):
    """Corners of rotated boxes (mmcv box2corners convention), CCW order.

    Inputs are (8, 128) slabs; returns two 4-tuples of (8, 128) arrays.
    """
    c = jnp.cos(ang)
    s = jnp.sin(ang)
    wc = 0.5 * w * c
    ws = 0.5 * w * s
    hc = 0.5 * h * c
    hs = 0.5 * h * s
    xs = (cx + wc - hs, cx - wc - hs, cx - wc + hs, cx + wc + hs)
    ys = (cy + ws + hc, cy - ws + hc, cy - ws - hc, cy + ws - hc)
    return xs, ys


def _half_planes(xs, ys):
    """Per CCW edge k: (ex, ey, off) with inside(X) <=> ex*Xy - ey*Xx - off >= 0."""
    ex, ey, off = [], [], []
    for k in range(4):
        dx = xs[(k + 1) % 4] - xs[k]
        dy = ys[(k + 1) % 4] - ys[k]
        ex.append(dx)
        ey.append(dy)
        off.append(dx * ys[k] - dy * xs[k])
    return ex, ey, off


def _edge_clip_area2(sub_xs, sub_ys, planes):
    """Sum over the 4 CCW subject edges of 2x the Green's-theorem area
    contribution of the sub-segment lying inside the convex CCW clipper quad.

    Liang-Barsky parametric clipping against the clipper's 4 half-planes;
    fully fixed-size, no polygon materialization.  The clip parameter uses an
    EUP approximate reciprocal (the kernel is VALU-bound, the EUP is idle).
    """
    ex, ey, off = planes

    def dists(x, y):
        return [ex[k] * y - ey[k] * x - off[k] for k in range(4)]

    d_first = dists(sub_xs[0], sub_ys[0])
    d_prev = d_first
    total = None
    for j in range(4):                       # unrolled: 4 subject edges
        ax, ay = sub_xs[j], sub_ys[j]
        bx, by = sub_xs[(j + 1) % 4], sub_ys[(j + 1) % 4]
        d_next = dists(bx, by) if j < 3 else d_first
        lo = hi = rej = None
        for k in range(4):                   # 4 clip half-planes
            d_a = d_prev[k]
            delta = d_next[k] - d_a
            par = delta == 0.0
            safe = jnp.where(par, 1.0, delta)
            t = (-d_a) * pl.reciprocal(safe, approx=True)   # EUP, not VALU divide
            lo_k = jnp.where(delta > 0.0, t, 0.0)           # entering -> lower bound
            hi_k = jnp.where(delta < 0.0, t, 1.0)           # leaving  -> upper bound
            bad = par & (d_a < 0.0)                         # parallel & outside
            lo = lo_k if lo is None else jnp.maximum(lo, lo_k)
            hi = hi_k if hi is None else jnp.minimum(hi, hi_k)
            rej = bad if rej is None else rej | bad
        t_lo = jnp.maximum(lo, 0.0)
        t_hi = jnp.minimum(hi, 1.0)
        valid = jnp.logical_not(rej) & (t_lo <= t_hi)
        dx = bx - ax
        dy = by - ay
        sx = ax + t_lo * dx
        sy = ay + t_lo * dy
        qx = ax + t_hi * dx
        qy = ay + t_hi * dy
        contrib = jnp.where(valid, sx * qy - qx * sy, 0.0)
        total = contrib if total is None else total + contrib
        d_prev = d_next
    return total


def _sort4_by_x(xs, ys):
    """4-element sorting network keyed on x (strict compares -> never swaps
    equal keys; reproduces the reference's stable order for the tie patterns
    that occur for non-degenerate boxes, e.g. axis-aligned ones)."""
    xs = list(xs)
    ys = list(ys)

    def cswap(i, j):
        swap = xs[j] < xs[i]
        for arr in (xs, ys):
            lo = jnp.where(swap, arr[j], arr[i])
            hi = jnp.where(swap, arr[i], arr[j])
            arr[i], arr[j] = lo, hi

    for i, j in ((0, 1), (2, 3), (0, 2), (1, 3), (1, 2)):
        cswap(i, j)
    return xs, ys


def _compute_slab(pcx, pcy, pw, ph, pa, tcx, tcy, tw, th, ta, *, mode, eps):
    """FPDIoU loss for one (8, 128) slab of boxes; all inputs are (8,128) f32."""
    area_p = pw * ph
    area_t = tw * th

    p_xs, p_ys = _box_corners(pcx, pcy, pw, ph, pa)
    t_xs, t_ys = _box_corners(tcx, tcy, tw, th, ta)

    # ---- FPD corner-distance term (linear mode only, per the reference) ----
    if mode == 'linear':
        sp_x, sp_y = _sort4_by_x(p_xs, p_ys)
        st_x, st_y = _sort4_by_x(t_xs, t_ys)
        d0 = st_x[0] - sp_x[0]
        dis = (2.0 * d0 * d0                              # reference doubles the x term
               + (sp_x[1] - st_x[1]) ** 2 + (sp_y[1] - st_y[1]) ** 2
               + (sp_x[2] - st_x[2]) ** 2 + (sp_y[2] - st_y[2]) ** 2
               + (sp_x[3] - st_x[3]) ** 2 + (sp_y[3] - st_y[3]) ** 2)
        res = dis * (1.0 / (4.0 * 1024.0 ** 2))
    else:
        res = None

    # ---- rotated IoU: exact convex quad/quad intersection area -------------
    # Dilate the target quad about its center by a tiny relative epsilon so no
    # pred edge line can coincide with a target edge line; then
    #   boundary(P ∩ Q_eps) = (P edges clipped to Q_eps) ∪ (Q_eps edges clipped to P)
    # and the Green's-theorem contributions of the two fixed-size passes are
    # order-independent and numerically robust.
    td_xs = tuple(x + _DILATE * (x - tcx) for x in t_xs)
    td_ys = tuple(y + _DILATE * (y - tcy) for y in t_ys)

    planes_t = _half_planes(td_xs, td_ys)
    area2 = _edge_clip_area2(p_xs, p_ys, planes_t)
    planes_p = _half_planes(p_xs, p_ys)
    area2 = area2 + _edge_clip_area2(td_xs, td_ys, planes_p)

    inter = jnp.clip(0.5 * area2, 0.0, jnp.minimum(area_p, area_t))
    union = jnp.maximum(area_p + area_t - inter, _TINY)
    ious = jnp.maximum(inter * pl.reciprocal(union, approx=True), eps)

    if mode == 'linear':
        loss = 1.0 - ious + res
    elif mode == 'square':
        loss = 1.0 - ious * ious
    else:  # 'log'
        loss = -jnp.log(ious)
    return loss


def _fpdiou_kernel(pred_ref, tgt_ref, loss_ref, *, mode, eps):
    # pred_ref / tgt_ref blocks: (5, rb, 128); loss_ref block: (rb, 128).
    # Walk the block one (8, 128) sub-slab at a time so every per-box quantity
    # stays a single vreg (large blocks only amortize grid/DMA overhead).
    num_slabs = pred_ref.shape[1] // _SUBLANES

    def body(s, carry):
        r0 = pl.multiple_of(s * _SUBLANES, _SUBLANES)
        rs = pl.ds(r0, _SUBLANES)
        pcx = pred_ref[0, rs, :]
        pcy = pred_ref[1, rs, :]
        pw = pred_ref[2, rs, :]
        ph = pred_ref[3, rs, :]
        pa = pred_ref[4, rs, :]
        tcx = tgt_ref[0, rs, :]
        tcy = tgt_ref[1, rs, :]
        tw = tgt_ref[2, rs, :]
        th = tgt_ref[3, rs, :]
        ta = tgt_ref[4, rs, :]
        loss = _compute_slab(pcx, pcy, pw, ph, pa, tcx, tcy, tw, th, ta,
                             mode=mode, eps=eps)
        loss_ref[rs, :] = loss.astype(loss_ref.dtype)
        return carry

    lax.fori_loop(0, num_slabs, body, 0)


def fpdiou_loss_pallas(pred, target, *, mode='linear', eps=1e-6,
                       reduction='mean', loss_weight=1.0):
    """FPDIoULoss().forward(pred, target)  (weight=None, avg_factor=None path).

    pred, target: (n, 5) float32 boxes [cx, cy, w, h, angle].
    """
    # TODO(synk): weight / avg_factor / reduction_override branches of forward()
    # are not implemented (weight=None, avg_factor=None path only).
    assert mode in ('linear', 'square', 'log')
    assert reduction in ('none', 'mean', 'sum')
    n = pred.shape[0]

    rows = max(-(-n // _LANES), 1)                 # 128 boxes per sublane row
    n_slabs = -(-rows // _SUBLANES)                # number of (8,128) sub-slabs
    if n_slabs <= 1:
        spb = 1                                    # slabs per grid step
    else:
        # keep >= 2 grid steps when possible so v7x can use both TensorCores
        spb = min(_MAX_SLABS_PER_BLOCK, -(-n_slabs // 2))
    n_blocks = -(-n_slabs // spb)
    rows_pad = n_blocks * spb * _SUBLANES
    n_pad = rows_pad * _LANES
    rb = spb * _SUBLANES                           # sublane rows per grid step

    # Single pad + relayout copy (zero pad boxes are handled safely in-kernel).
    pred_p = jnp.pad(pred.astype(jnp.float32), ((0, n_pad - n), (0, 0)))
    tgt_p = jnp.pad(target.astype(jnp.float32), ((0, n_pad - n), (0, 0)))
    # (n_pad, 5) -> (5, rows_pad, 128): box j -> (:, j // 128, j % 128)
    pred_p = pred_p.T.reshape(5, rows_pad, _LANES)
    tgt_p = tgt_p.T.reshape(5, rows_pad, _LANES)

    kernel = functools.partial(_fpdiou_kernel, mode=mode, eps=float(eps))
    cost = pl.CostEstimate(flops=650 * n_pad,
                           transcendentals=40 * n_pad,
                           bytes_accessed=44 * n_pad)
    per_box = pl.pallas_call(
        kernel,
        out_shape=jax.ShapeDtypeStruct((rows_pad, _LANES), jnp.float32),
        grid=(n_blocks,),
        in_specs=[pl.BlockSpec((5, rb, _LANES), lambda i: (0, i, 0)),
                  pl.BlockSpec((5, rb, _LANES), lambda i: (0, i, 0))],
        out_specs=pl.BlockSpec((rb, _LANES), lambda i: (i, 0)),
        compiler_params=pltpu.CompilerParams(
            dimension_semantics=("parallel",)),
        cost_estimate=cost,
    )(pred_p, tgt_p)
    per_box = per_box.reshape(n_pad)[:n]

    # weighted_loss glue (weight=None, avg_factor=None)
    if reduction == 'mean':
        out = per_box.mean()
    elif reduction == 'sum':
        out = per_box.sum()
    else:
        out = per_box
    return loss_weight * out


if __name__ == "__main__":
    # FPDIoULoss has no learnable parameters; only the loss hyper-params
    # (mode='linear', eps=1e-6, reduction='mean', loss_weight=1.0) are used.
    key = jax.random.PRNGKey(0)
    n = 8
    kc1, ks1, ka1, kc2, ks2, ka2 = jax.random.split(key, 6)

    def make_boxes(kc, ks, ka, m):
        centers = jax.random.uniform(kc, (m, 2), minval=0.0, maxval=100.0)
        sizes = jax.random.uniform(ks, (m, 2), minval=5.0, maxval=20.0)
        angles = jax.random.uniform(ka, (m, 1), minval=-1.5, maxval=1.5)
        return jnp.concatenate([centers, sizes, angles], axis=-1).astype(jnp.float32)

    pred = make_boxes(kc1, ks1, ka1, n)
    target = make_boxes(kc2, ks2, ka2, n)

    loss = fpdiou_loss_pallas(pred, target, mode='linear', eps=1e-6,
                              reduction='mean', loss_weight=1.0)
    jax.block_until_ready(loss)
    assert bool(jnp.isfinite(loss))

    # sanity 1: identical boxes -> IoU == 1, corner distance == 0 -> loss ~ 0
    loss_same = fpdiou_loss_pallas(pred, pred)
    jax.block_until_ready(loss_same)
    assert abs(float(loss_same)) < 3e-3, float(loss_same)

    # sanity 2: axis-aligned overlap with closed-form answer
    #   pred: center (0,0) 4x4; target: center (2,0) 4x4
    #   inter = 8, union = 24, IoU = 1/3; FPD dis = 20 -> res = 20 / (4*1024^2)
    p2 = jnp.array([[0., 0., 4., 4., 0.]], jnp.float32)
    t2 = jnp.array([[2., 0., 4., 4., 0.]], jnp.float32)
    per = fpdiou_loss_pallas(p2, t2, mode='linear', reduction='none')
    jax.block_until_ready(per)
    expected = 1.0 - (8.0 / 24.0) + 20.0 / (4.0 * 1024.0 ** 2)
    assert abs(float(per[0]) - expected) < 3e-3, float(per[0])

    # sanity 3: multi-block grid + in-kernel slab loop + tail padding path
    kb1, kb2, kb3 = jax.random.split(jax.random.PRNGKey(1), 3)
    big = make_boxes(kb1, kb2, kb3, 2500)
    loss_big = fpdiou_loss_pallas(big, big)
    jax.block_until_ready(loss_big)
    assert abs(float(loss_big)) < 3e-3, float(loss_big)

    print("KERNEL_OK")
</pallas_src>

<mosaic_0001>
module attributes {stable_mosaic.version = 11 : i64} {
  func.func @_fpdiou_kernel(%arg0: i32, %arg1: memref<5x8x128xf32, #tpu.memory_space<vmem>>, %arg2: memref<5x8x128xf32, #tpu.memory_space<vmem>>, %arg3: memref<8x128xf32, #tpu.memory_space<vmem>>) attributes {dimension_semantics = [#tpu.dimension_semantics<parallel>], iteration_bounds = array<i64: 1>, scalar_prefetch = 0 : i64, scratch_operands = 0 : i64, tpu.core_type = #tpu.core_type<tc>, window_params = [{transform_indices = @transform_0, window_bounds = array<i64: 5, 8, 128>}, {transform_indices = @transform_1, window_bounds = array<i64: 5, 8, 128>}, {transform_indices = @transform_2, window_bounds = array<i64: 8, 128>}]} {
    %c0_i32 = arith.constant 0 : i32
    %c8_i32 = arith.constant 8 : i32
    %0 = arith.muli %c0_i32, %c8_i32 : i32
    %1 = tpu.assume_multiple %0, 8 : i32
    %c0 = arith.constant 0 : index
    %2 = arith.index_cast %1 : i32 to index
    %c0_0 = arith.constant 0 : index
    %3 = vector.load %arg1[%c0, %2, %c0_0] : memref<5x8x128xf32, #tpu.memory_space<vmem>>, vector<1x8x128xf32>
    %4 = vector.shape_cast %3 : vector<1x8x128xf32> to vector<8x128xf32>
    %c1 = arith.constant 1 : index
    %5 = arith.index_cast %1 : i32 to index
    %c0_1 = arith.constant 0 : index
    %6 = vector.load %arg1[%c1, %5, %c0_1] : memref<5x8x128xf32, #tpu.memory_space<vmem>>, vector<1x8x128xf32>
    %7 = vector.shape_cast %6 : vector<1x8x128xf32> to vector<8x128xf32>
    %c2 = arith.constant 2 : index
    %8 = arith.index_cast %1 : i32 to index
    %c0_2 = arith.constant 0 : index
    %9 = vector.load %arg1[%c2, %8, %c0_2] : memref<5x8x128xf32, #tpu.memory_space<vmem>>, vector<1x8x128xf32>
    %10 = vector.shape_cast %9 : vector<1x8x128xf32> to vector<8x128xf32>
    %c3 = arith.constant 3 : index
    %11 = arith.index_cast %1 : i32 to index
    %c0_3 = arith.constant 0 : index
    %12 = vector.load %arg1[%c3, %11, %c0_3] : memref<5x8x128xf32, #tpu.memory_space<vmem>>, vector<1x8x128xf32>
    %13 = vector.shape_cast %12 : vector<1x8x128xf32> to vector<8x128xf32>
    %c4 = arith.constant 4 : index
    %14 = arith.index_cast %1 : i32 to index
    %c0_4 = arith.constant 0 : index
    %15 = vector.load %arg1[%c4, %14, %c0_4] : memref<5x8x128xf32, #tpu.memory_space<vmem>>, vector<1x8x128xf32>
    %16 = vector.shape_cast %15 : vector<1x8x128xf32> to vector<8x128xf32>
    %c0_5 = arith.constant 0 : index
    %17 = arith.index_cast %1 : i32 to index
    %c0_6 = arith.constant 0 : index
    %18 = vector.load %arg2[%c0_5, %17, %c0_6] : memref<5x8x128xf32, #tpu.memory_space<vmem>>, vector<1x8x128xf32>
    %19 = vector.shape_cast %18 : vector<1x8x128xf32> to vector<8x128xf32>
    %c1_7 = arith.constant 1 : index
    %20 = arith.index_cast %1 : i32 to index
    %c0_8 = arith.constant 0 : index
    %21 = vector.load %arg2[%c1_7, %20, %c0_8] : memref<5x8x128xf32, #tpu.memory_space<vmem>>, vector<1x8x128xf32>
    %22 = vector.shape_cast %21 : vector<1x8x128xf32> to vector<8x128xf32>
    %c2_9 = arith.constant 2 : index
    %23 = arith.index_cast %1 : i32 to index
    %c0_10 = arith.constant 0 : index
    %24 = vector.load %arg2[%c2_9, %23, %c0_10] : memref<5x8x128xf32, #tpu.memory_space<vmem>>, vector<1x8x128xf32>
    %25 = vector.shape_cast %24 : vector<1x8x128xf32> to vector<8x128xf32>
    %c3_11 = arith.constant 3 : index
    %26 = arith.index_cast %1 : i32 to index
    %c0_12 = arith.constant 0 : index
    %27 = vector.load %arg2[%c3_11, %26, %c0_12] : memref<5x8x128xf32, #tpu.memory_space<vmem>>, vector<1x8x128xf32>
    %28 = vector.shape_cast %27 : vector<1x8x128xf32> to vector<8x128xf32>
    %c4_13 = arith.constant 4 : index
    %29 = arith.index_cast %1 : i32 to index
    %c0_14 = arith.constant 0 : index
    %30 = vector.load %arg2[%c4_13, %29, %c0_14] : memref<5x8x128xf32, #tpu.memory_space<vmem>>, vector<1x8x128xf32>
    %31 = vector.shape_cast %30 : vector<1x8x128xf32> to vector<8x128xf32>
    %32 = arith.mulf %10, %13 : vector<8x128xf32>
    %33 = arith.mulf %25, %28 : vector<8x128xf32>
    %34 = math.cos %16 : vector<8x128xf32>
    %35 = math.sin %16 : vector<8x128xf32>
    %cst = arith.constant 5.000000e-01 : f32
    %36 = vector.broadcast %cst : f32 to vector<8x128xf32>
    %37 = arith.mulf %36, %10 : vector<8x128xf32>
    %38 = arith.mulf %37, %34 : vector<8x128xf32>
    %cst_15 = arith.constant 5.000000e-01 : f32
    %39 = vector.broadcast %cst_15 : f32 to vector<8x128xf32>
    %40 = arith.mulf %39, %10 : vector<8x128xf32>
    %41 = arith.mulf %40, %35 : vector<8x128xf32>
    %cst_16 = arith.constant 5.000000e-01 : f32
    %42 = vector.broadcast %cst_16 : f32 to vector<8x128xf32>
    %43 = arith.mulf %42, %13 : vector<8x128xf32>
    %44 = arith.mulf %43, %34 : vector<8x128xf32>
    %cst_17 = arith.constant 5.000000e-01 : f32
    %45 = vector.broadcast %cst_17 : f32 to vector<8x128xf32>
    %46 = arith.mulf %45, %13 : vector<8x128xf32>
    %47 = arith.mulf %46, %35 : vector<8x128xf32>
    %48 = arith.addf %4, %38 : vector<8x128xf32>
    %49 = arith.subf %48, %47 : vector<8x128xf32>
    %50 = arith.subf %4, %38 : vector<8x128xf32>
    %51 = arith.subf %50, %47 : vector<8x128xf32>
    %52 = arith.subf %4, %38 : vector<8x128xf32>
    %53 = arith.addf %52, %47 : vector<8x128xf32>
    %54 = arith.addf %4, %38 : vector<8x128xf32>
    %55 = arith.addf %54, %47 : vector<8x128xf32>
    %56 = arith.addf %7, %41 : vector<8x128xf32>
    %57 = arith.addf %56, %44 : vector<8x128xf32>
    %58 = arith.subf %7, %41 : vector<8x128xf32>
    %59 = arith.addf %58, %44 : vector<8x128xf32>
    %60 = arith.subf %7, %41 : vector<8x128xf32>
    %61 = arith.subf %60, %44 : vector<8x128xf32>
    %62 = arith.addf %7, %41 : vector<8x128xf32>
    %63 = arith.subf %62, %44 : vector<8x128xf32>
    %64 = math.cos %31 : vector<8x128xf32>
    %65 = math.sin %31 : vector<8x128xf32>
    %cst_18 = arith.constant 5.000000e-01 : f32
    %66 = vector.broadcast %cst_18 : f32 to vector<8x128xf32>
    %67 = arith.mulf %66, %25 : vector<8x128xf32>
    %68 = arith.mulf %67, %64 : vector<8x128xf32>
    %cst_19 = arith.constant 5.000000e-01 : f32
    %69 = vector.broadcast %cst_19 : f32 to vector<8x128xf32>
    %70 = arith.mulf %69, %25 : vector<8x128xf32>
    %71 = arith.mulf %70, %65 : vector<8x128xf32>
    %cst_20 = arith.constant 5.000000e-01 : f32
    %72 = vector.broadcast %cst_20 : f32 to vector<8x128xf32>
    %73 = arith.mulf %72, %28 : vector<8x128xf32>
    %74 = arith.mulf %73, %64 : vector<8x128xf32>
    %cst_21 = arith.constant 5.000000e-01 : f32
    %75 = vector.broadcast %cst_21 : f32 to vector<8x128xf32>
    %76 = arith.mulf %75, %28 : vector<8x128xf32>
    %77 = arith.mulf %76, %65 : vector<8x128xf32>
    %78 = arith.addf %19, %68 : vector<8x128xf32>
    %79 = arith.subf %78, %77 : vector<8x128xf32>
    %80 = arith.subf %19, %68 : vector<8x128xf32>
    %81 = arith.subf %80, %77 : vector<8x128xf32>
    %82 = arith.subf %19, %68 : vector<8x128xf32>
    %83 = arith.addf %82, %77 : vector<8x128xf32>
    %84 = arith.addf %19, %68 : vector<8x128xf32>
    %85 = arith.addf %84, %77 : vector<8x128xf32>
    %86 = arith.addf %22, %71 : vector<8x128xf32>
    %87 = arith.addf %86, %74 : vector<8x128xf32>
    %88 = arith.subf %22, %71 : vector<8x128xf32>
    %89 = arith.addf %88, %74 : vector<8x128xf32>
    %90 = arith.subf %22, %71 : vector<8x128xf32>
    %91 = arith.subf %90, %74 : vector<8x128xf32>
    %92 = arith.addf %22, %71 : vector<8x128xf32>
    %93 = arith.subf %92, %74 : vector<8x128xf32>
    %94 = arith.cmpf olt, %51, %49 : vector<8x128xf32>
    %95 = arith.select %94, %51, %49 : vector<8x128xi1>, vector<8x128xf32>
    %96 = arith.select %94, %49, %51 : vector<8x128xi1>, vector<8x128xf32>
    %97 = arith.select %94, %59, %57 : vector<8x128xi1>, vector<8x128xf32>
    %98 = arith.select %94, %57, %59 : vector<8x128xi1>, vector<8x128xf32>
    %99 = arith.cmpf olt, %55, %53 : vector<8x128xf32>
    %100 = arith.select %99, %55, %53 : vector<8x128xi1>, vector<8x128xf32>
    %101 = arith.select %99, %53, %55 : vector<8x128xi1>, vector<8x128xf32>
    %102 = arith.select %99, %63, %61 : vector<8x128xi1>, vector<8x128xf32>
    %103 = arith.select %99, %61, %63 : vector<8x128xi1>, vector<8x128xf32>
    %104 = arith.cmpf olt, %100, %95 : vector<8x128xf32>
    %105 = arith.select %104, %100, %95 : vector<8x128xi1>, vector<8x128xf32>
    %106 = arith.select %104, %95, %100 : vector<8x128xi1>, vector<8x128xf32>
    %107 = arith.select %104, %97, %102 : vector<8x128xi1>, vector<8x128xf32>
    %108 = arith.cmpf olt, %101, %96 : vector<8x128xf32>
    %109 = arith.select %108, %101, %96 : vector<8x128xi1>, vector<8x128xf32>
    %110 = arith.select %108, %96, %101 : vector<8x128xi1>, vector<8x128xf32>
    %111 = arith.select %108, %103, %98 : vector<8x128xi1>, vector<8x128xf32>
    %112 = arith.select %108, %98, %103 : vector<8x128xi1>, vector<8x128xf32>
    %113 = arith.cmpf olt, %106, %109 : vector<8x128xf32>
    %114 = arith.select %113, %106, %109 : vector<8x128xi1>, vector<8x128xf32>
    %115 = arith.select %113, %109, %106 : vector<8x128xi1>, vector<8x128xf32>
    %116 = arith.select %113, %107, %111 : vector<8x128xi1>, vector<8x128xf32>
    %117 = arith.select %113, %111, %107 : vector<8x128xi1>, vector<8x128xf32>
    %118 = arith.cmpf olt, %81, %79 : vector<8x128xf32>
    %119 = arith.select %118, %81, %79 : vector<8x128xi1>, vector<8x128xf32>
    %120 = arith.select %118, %79, %81 : vector<8x128xi1>, vector<8x128xf32>
    %121 = arith.select %118, %89, %87 : vector<8x128xi1>, vector<8x128xf32>
    %122 = arith.select %118, %87, %89 : vector<8x128xi1>, vector<8x128xf32>
    %123 = arith.cmpf olt, %85, %83 : vector<8x128xf32>
    %124 = arith.select %123, %85, %83 : vector<8x128xi1>, vector<8x128xf32>
    %125 = arith.select %123, %83, %85 : vector<8x128xi1>, vector<8x128xf32>
    %126 = arith.select %123, %93, %91 : vector<8x128xi1>, vector<8x128xf32>
    %127 = arith.select %123, %91, %93 : vector<8x128xi1>, vector<8x128xf32>
    %128 = arith.cmpf olt, %124, %119 : vector<8x128xf32>
    %129 = arith.select %128, %124, %119 : vector<8x128xi1>, vector<8x128xf32>
    %130 = arith.select %128, %119, %124 : vector<8x128xi1>, vector<8x128xf32>
    %131 = arith.select %128, %121, %126 : vector<8x128xi1>, vector<8x128xf32>
    %132 = arith.cmpf olt, %125, %120 : vector<8x128xf32>
    %133 = arith.select %132, %125, %120 : vector<8x128xi1>, vector<8x128xf32>
    %134 = arith.select %132, %120, %125 : vector<8x128xi1>, vector<8x128xf32>
    %135 = arith.select %132, %127, %122 : vector<8x128xi1>, vector<8x128xf32>
    %136 = arith.select %132, %122, %127 : vector<8x128xi1>, vector<8x128xf32>
    %137 = arith.cmpf olt, %130, %133 : vector<8x128xf32>
    %138 = arith.select %137, %130, %133 : vector<8x128xi1>, vector<8x128xf32>
    %139 = arith.select %137, %133, %130 : vector<8x128xi1>, vector<8x128xf32>
    %140 = arith.select %137, %131, %135 : vector<8x128xi1>, vector<8x128xf32>
    %141 = arith.select %137, %135, %131 : vector<8x128xi1>, vector<8x128xf32>
    %142 = arith.subf %129, %105 : vector<8x128xf32>
    %cst_22 = arith.constant 2.000000e+00 : f32
    %143 = vector.broadcast %cst_22 : f32 to vector<8x128xf32>
    %144 = arith.mulf %143, %142 : vector<8x128xf32>
    %145 = arith.mulf %144, %142 : vector<8x128xf32>
    %146 = arith.subf %114, %138 : vector<8x128xf32>
    %147 = arith.mulf %146, %146 : vector<8x128xf32>
    %148 = arith.addf %145, %147 : vector<8x128xf32>
    %149 = arith.subf %116, %140 : vector<8x128xf32>
    %150 = arith.mulf %149, %149 : vector<8x128xf32>
    %151 = arith.addf %148, %150 : vector<8x128xf32>
    %152 = arith.subf %115, %139 : vector<8x128xf32>
    %153 = arith.mulf %152, %152 : vector<8x128xf32>
    %154 = arith.addf %151, %153 : vector<8x128xf32>
    %155 = arith.subf %117, %141 : vector<8x128xf32>
    %156 = arith.mulf %155, %155 : vector<8x128xf32>
    %157 = arith.addf %154, %156 : vector<8x128xf32>
    %158 = arith.subf %110, %134 : vector<8x128xf32>
    %159 = arith.mulf %158, %158 : vector<8x128xf32>
    %160 = arith.addf %157, %159 : vector<8x128xf32>
    %161 = arith.subf %112, %136 : vector<8x128xf32>
    %162 = arith.mulf %161, %161 : vector<8x128xf32>
    %163 = arith.addf %160, %162 : vector<8x128xf32>
    %cst_23 = arith.constant 2.38418579E-7 : f32
    %164 = vector.broadcast %cst_23 : f32 to vector<8x128xf32>
    %165 = arith.mulf %163, %164 : vector<8x128xf32>
    %166 = arith.subf %79, %19 : vector<8x128xf32>
    %cst_24 = arith.constant 3.000000e-04 : f32
    %167 = vector.broadcast %cst_24 : f32 to vector<8x128xf32>
    %168 = arith.mulf %167, %166 : vector<8x128xf32>
    %169 = arith.addf %79, %168 : vector<8x128xf32>
    %170 = arith.subf %81, %19 : vector<8x128xf32>
    %cst_25 = arith.constant 3.000000e-04 : f32
    %171 = vector.broadcast %cst_25 : f32 to vector<8x128xf32>
    %172 = arith.mulf %171, %170 : vector<8x128xf32>
    %173 = arith.addf %81, %172 : vector<8x128xf32>
    %174 = arith.subf %83, %19 : vector<8x128xf32>
    %cst_26 = arith.constant 3.000000e-04 : f32
    %175 = vector.broadcast %cst_26 : f32 to vector<8x128xf32>
    %176 = arith.mulf %175, %174 : vector<8x128xf32>
    %177 = arith.addf %83, %176 : vector<8x128xf32>
    %178 = arith.subf %85, %19 : vector<8x128xf32>
    %cst_27 = arith.constant 3.000000e-04 : f32
    %179 = vector.broadcast %cst_27 : f32 to vector<8x128xf32>
    %180 = arith.mulf %179, %178 : vector<8x128xf32>
    %181 = arith.addf %85, %180 : vector<8x128xf32>
    %182 = arith.subf %87, %22 : vector<8x128xf32>
    %cst_28 = arith.constant 3.000000e-04 : f32
    %183 = vector.broadcast %cst_28 : f32 to vector<8x128xf32>
    %184 = arith.mulf %183, %182 : vector<8x128xf32>
    %185 = arith.addf %87, %184 : vector<8x128xf32>
    %186 = arith.subf %89, %22 : vector<8x128xf32>
    %cst_29 = arith.constant 3.000000e-04 : f32
    %187 = vector.broadcast %cst_29 : f32 to vector<8x128xf32>
    %188 = arith.mulf %187, %186 : vector<8x128xf32>
    %189 = arith.addf %89, %188 : vector<8x128xf32>
    %190 = arith.subf %91, %22 : vector<8x128xf32>
    %cst_30 = arith.constant 3.000000e-04 : f32
    %191 = vector.broadcast %cst_30 : f32 to vector<8x128xf32>
    %192 = arith.mulf %191, %190 : vector<8x128xf32>
    %193 = arith.addf %91, %192 : vector<8x128xf32>
    %194 = arith.subf %93, %22 : vector<8x128xf32>
    %cst_31 = arith.constant 3.000000e-04 : f32
    %195 = vector.broadcast %cst_31 : f32 to vector<8x128xf32>
    %196 = arith.mulf %195, %194 : vector<8x128xf32>
    %197 = arith.addf %93, %196 : vector<8x128xf32>
    %198 = arith.subf %173, %169 : vector<8x128xf32>
    %199 = arith.subf %189, %185 : vector<8x128xf32>
    %200 = arith.mulf %198, %185 : vector<8x128xf32>
    %201 = arith.mulf %199, %169 : vector<8x128xf32>
    %202 = arith.subf %200, %201 : vector<8x128xf32>
    %203 = arith.subf %177, %173 : vector<8x128xf32>
    %204 = arith.subf %193, %189 : vector<8x128xf32>
    %205 = arith.mulf %203, %189 : vector<8x128xf32>
    %206 = arith.mulf %204, %173 : vector<8x128xf32>
    %207 = arith.subf %205, %206 : vector<8x128xf32>
    %208 = arith.subf %181, %177 : vector<8x128xf32>
    %209 = arith.subf %197, %193 : vector<8x128xf32>
    %210 = arith.mulf %208, %193 : vector<8x128xf32>
    %211 = arith.mulf %209, %177 : vector<8x128xf32>
    %212 = arith.subf %210, %211 : vector<8x128xf32>
    %213 = arith.subf %169, %181 : vector<8x128xf32>
    %214 = arith.subf %185, %197 : vector<8x128xf32>
    %215 = arith.mulf %213, %197 : vector<8x128xf32>
    %216 = arith.mulf %214, %181 : vector<8x128xf32>
    %217 = arith.subf %215, %216 : vector<8x128xf32>
    %218 = arith.mulf %198, %57 : vector<8x128xf32>
    %219 = arith.mulf %199, %49 : vector<8x128xf32>
    %220 = arith.subf %218, %219 : vector<8x128xf32>
    %221 = arith.subf %220, %202 : vector<8x128xf32>
    %222 = arith.mulf %203, %57 : vector<8x128xf32>
    %223 = arith.mulf %204, %49 : vector<8x128xf32>
    %224 = arith.subf %222, %223 : vector<8x128xf32>
    %225 = arith.subf %224, %207 : vector<8x128xf32>
    %226 = arith.mulf %208, %57 : vector<8x128xf32>
    %227 = arith.mulf %209, %49 : vector<8x128xf32>
    %228 = arith.subf %226, %227 : vector<8x128xf32>
    %229 = arith.subf %228, %212 : vector<8x128xf32>
    %230 = arith.mulf %213, %57 : vector<8x128xf32>
    %231 = arith.mulf %214, %49 : vector<8x128xf32>
    %232 = arith.subf %230, %231 : vector<8x128xf32>
    %233 = arith.subf %232, %217 : vector<8x128xf32>
    %234 = arith.mulf %198, %59 : vector<8x128xf32>
    %235 = arith.mulf %199, %51 : vector<8x128xf32>
    %236 = arith.subf %234, %235 : vector<8x128xf32>
    %237 = arith.subf %236, %202 : vector<8x128xf32>
    %238 = arith.mulf %203, %59 : vector<8x128xf32>
    %239 = arith.mulf %204, %51 : vector<8x128xf32>
    %240 = arith.subf %238, %239 : vector<8x128xf32>
    %241 = arith.subf %240, %207 : vector<8x128xf32>
    %242 = arith.mulf %208, %59 : vector<8x128xf32>
    %243 = arith.mulf %209, %51 : vector<8x128xf32>
    %244 = arith.subf %242, %243 : vector<8x128xf32>
    %245 = arith.subf %244, %212 : vector<8x128xf32>
    %246 = arith.mulf %213, %59 : vector<8x128xf32>
    %247 = arith.mulf %214, %51 : vector<8x128xf32>
    %248 = arith.subf %246, %247 : vector<8x128xf32>
    %249 = arith.subf %248, %217 : vector<8x128xf32>
    %250 = arith.subf %237, %221 : vector<8x128xf32>
    %cst_32 = arith.constant 0.000000e+00 : f32
    %251 = vector.broadcast %cst_32 : f32 to vector<8x128xf32>
    %252 = arith.cmpf oeq, %250, %251 : vector<8x128xf32>
    %cst_33 = arith.constant 1.000000e+00 : f32
    %253 = vector.broadcast %cst_33 : f32 to vector<8x128xf32>
    %254 = arith.select %252, %253, %250 : vector<8x128xi1>, vector<8x128xf32>
    %cst_34 = arith.constant 0.000000e+00 : f32
    %255 = vector.broadcast %cst_34 : f32 to vector<8x128xf32>
    %256 = arith.subf %255, %221 : vector<8x128xf32>
    %257 = tpu.reciprocal %254 {approx = true} : vector<8x128xf32> -> vector<8x128xf32>
    %258 = arith.mulf %256, %257 : vector<8x128xf32>
    %cst_35 = arith.constant 0.000000e+00 : f32
    %259 = vector.broadcast %cst_35 : f32 to vector<8x128xf32>
    %260 = arith.cmpf ogt, %250, %259 : vector<8x128xf32>
    %cst_36 = arith.constant 0.000000e+00 : f32
    %261 = vector.broadcast %cst_36 : f32 to vector<8x128xf32>
    %262 = arith.select %260, %258, %261 : vector<8x128xi1>, vector<8x128xf32>
    %cst_37 = arith.constant 0.000000e+00 : f32
    %263 = vector.broadcast %cst_37 : f32 to vector<8x128xf32>
    %264 = arith.cmpf olt, %250, %263 : vector<8x128xf32>
    %cst_38 = arith.constant 1.000000e+00 : f32
    %265 = vector.broadcast %cst_38 : f32 to vector<8x128xf32>
    %266 = arith.select %264, %258, %265 : vector<8x128xi1>, vector<8x128xf32>
    %cst_39 = arith.constant 0.000000e+00 : f32
    %267 = vector.broadcast %cst_39 : f32 to vector<8x128xf32>
    %268 = arith.cmpf olt, %221, %267 : vector<8x128xf32>
    %269 = arith.andi %252, %268 : vector<8x128xi1>
    %270 = arith.subf %241, %225 : vector<8x128xf32>
    %cst_40 = arith.constant 0.000000e+00 : f32
    %271 = vector.broadcast %cst_40 : f32 to vector<8x128xf32>
    %272 = arith.cmpf oeq, %270, %271 : vector<8x128xf32>
    %cst_41 = arith.constant 1.000000e+00 : f32
    %273 = vector.broadcast %cst_41 : f32 to vector<8x128xf32>
    %274 = arith.select %272, %273, %270 : vector<8x128xi1>, vector<8x128xf32>
    %cst_42 = arith.constant 0.000000e+00 : f32
    %275 = vector.broadcast %cst_42 : f32 to vector<8x128xf32>
    %276 = arith.subf %275, %225 : vector<8x128xf32>
    %277 = tpu.reciprocal %274 {approx = true} : vector<8x128xf32> -> vector<8x128xf32>
    %278 = arith.mulf %276, %277 : vector<8x128xf32>
    %cst_43 = arith.constant 0.000000e+00 : f32
    %279 = vector.broadcast %cst_43 : f32 to vector<8x128xf32>
    %280 = arith.cmpf ogt, %270, %279 : vector<8x128xf32>
    %cst_44 = arith.constant 0.000000e+00 : f32
    %281 = vector.broadcast %cst_44 : f32 to vector<8x128xf32>
    %282 = arith.select %280, %278, %281 : vector<8x128xi1>, vector<8x128xf32>
    %cst_45 = arith.constant 0.000000e+00 : f32
    %283 = vector.broadcast %cst_45 : f32 to vector<8x128xf32>
    %284 = arith.cmpf olt, %270, %283 : vector<8x128xf32>
    %cst_46 = arith.constant 1.000000e+00 : f32
    %285 = vector.broadcast %cst_46 : f32 to vector<8x128xf32>
    %286 = arith.select %284, %278, %285 : vector<8x128xi1>, vector<8x128xf32>
    %cst_47 = arith.constant 0.000000e+00 : f32
    %287 = vector.broadcast %cst_47 : f32 to vector<8x128xf32>
    %288 = arith.cmpf olt, %225, %287 : vector<8x128xf32>
    %289 = arith.andi %272, %288 : vector<8x128xi1>
    %290 = arith.maximumf %262, %282 : vector<8x128xf32>
    %291 = arith.minimumf %266, %286 : vector<8x128xf32>
    %292 = arith.ori %269, %289 : vector<8x128xi1>
    %293 = arith.subf %245, %229 : vector<8x128xf32>
    %cst_48 = arith.constant 0.000000e+00 : f32
    %294 = vector.broadcast %cst_48 : f32 to vector<8x128xf32>
    %295 = arith.cmpf oeq, %293, %294 : vector<8x128xf32>
    %cst_49 = arith.constant 1.000000e+00 : f32
    %296 = vector.broadcast %cst_49 : f32 to vector<8x128xf32>
    %297 = arith.select %295, %296, %293 : vector<8x128xi1>, vector<8x128xf32>
    %cst_50 = arith.constant 0.000000e+00 : f32
    %298 = vector.broadcast %cst_50 : f32 to vector<8x128xf32>
    %299 = arith.subf %298, %229 : vector<8x128xf32>
    %300 = tpu.reciprocal %297 {approx = true} : vector<8x128xf32> -> vector<8x128xf32>
    %301 = arith.mulf %299, %300 : vector<8x128xf32>
    %cst_51 = arith.constant 0.000000e+00 : f32
    %302 = vector.broadcast %cst_51 : f32 to vector<8x128xf32>
    %303 = arith.cmpf ogt, %293, %302 : vector<8x128xf32>
    %cst_52 = arith.constant 0.000000e+00 : f32
    %304 = vector.broadcast %cst_52 : f32 to vector<8x128xf32>
    %305 = arith.select %303, %301, %304 : vector<8x128xi1>, vector<8x128xf32>
    %cst_53 = arith.constant 0.000000e+00 : f32
    %306 = vector.broadcast %cst_53 : f32 to vector<8x128xf32>
    %307 = arith.cmpf olt, %293, %306 : vector<8x128xf32>
    %cst_54 = arith.constant 1.000000e+00 : f32
    %308 = vector.broadcast %cst_54 : f32 to vector<8x128xf32>
    %309 = arith.select %307, %301, %308 : vector<8x128xi1>, vector<8x128xf32>
    %cst_55 = arith.constant 0.000000e+00 : f32
    %310 = vector.broadcast %cst_55 : f32 to vector<8x128xf32>
    %311 = arith.cmpf olt, %229, %310 : vector<8x128xf32>
    %312 = arith.andi %295, %311 : vector<8x128xi1>
    %313 = arith.maximumf %290, %305 : vector<8x128xf32>
    %314 = arith.minimumf %291, %309 : vector<8x128xf32>
    %315 = arith.ori %292, %312 : vector<8x128xi1>
    %316 = arith.subf %249, %233 : vector<8x128xf32>
    %cst_56 = arith.constant 0.000000e+00 : f32
    %317 = vector.broadcast %cst_56 : f32 to vector<8x128xf32>
    %318 = arith.cmpf oeq, %316, %317 : vector<8x128xf32>
    %cst_57 = arith.constant 1.000000e+00 : f32
    %319 = vector.broadcast %cst_57 : f32 to vector<8x128xf32>
    %320 = arith.select %318, %319, %316 : vector<8x128xi1>, vector<8x128xf32>
    %cst_58 = arith.constant 0.000000e+00 : f32
    %321 = vector.broadcast %cst_58 : f32 to vector<8x128xf32>
    %322 = arith.subf %321, %233 : vector<8x128xf32>
    %323 = tpu.reciprocal %320 {approx = true} : vector<8x128xf32> -> vector<8x128xf32>
    %324 = arith.mulf %322, %323 : vector<8x128xf32>
    %cst_59 = arith.constant 0.000000e+00 : f32
    %325 = vector.broadcast %cst_59 : f32 to vector<8x128xf32>
    %326 = arith.cmpf ogt, %316, %325 : vector<8x128xf32>
    %cst_60 = arith.constant 0.000000e+00 : f32
    %327 = vector.broadcast %cst_60 : f32 to vector<8x128xf32>
    %328 = arith.select %326, %324, %327 : vector<8x128xi1>, vector<8x128xf32>
    %cst_61 = arith.constant 0.000000e+00 : f32
    %329 = vector.broadcast %cst_61 : f32 to vector<8x128xf32>
    %330 = arith.cmpf olt, %316, %329 : vector<8x128xf32>
    %cst_62 = arith.constant 1.000000e+00 : f32
    %331 = vector.broadcast %cst_62 : f32 to vector<8x128xf32>
    %332 = arith.select %330, %324, %331 : vector<8x128xi1>, vector<8x128xf32>
    %cst_63 = arith.constant 0.000000e+00 : f32
    %333 = vector.broadcast %cst_63 : f32 to vector<8x128xf32>
    %334 = arith.cmpf olt, %233, %333 : vector<8x128xf32>
    %335 = arith.andi %318, %334 : vector<8x128xi1>
    %336 = arith.maximumf %313, %328 : vector<8x128xf32>
    %337 = arith.minimumf %314, %332 : vector<8x128xf32>
    %338 = arith.ori %315, %335 : vector<8x128xi1>
    %cst_64 = arith.constant 0.000000e+00 : f32
    %339 = vector.broadcast %cst_64 : f32 to vector<8x128xf32>
    %340 = arith.maximumf %336, %339 : vector<8x128xf32>
    %cst_65 = arith.constant 1.000000e+00 : f32
    %341 = vector.broadcast %cst_65 : f32 to vector<8x128xf32>
    %342 = arith.minimumf %337, %341 : vector<8x128xf32>
    %cst_66 = arith.constant dense<true> : vector<8x128xi1>
    %343 = arith.xori %338, %cst_66 : vector<8x128xi1>
    %344 = arith.cmpf ole, %340, %342 : vector<8x128xf32>
    %345 = arith.andi %343, %344 : vector<8x128xi1>
    %346 = arith.subf %51, %49 : vector<8x128xf32>
    %347 = arith.subf %59, %57 : vector<8x128xf32>
    %348 = arith.mulf %340, %346 : vector<8x128xf32>
    %349 = arith.addf %49, %348 : vector<8x128xf32>
    %350 = arith.mulf %340, %347 : vector<8x128xf32>
    %351 = arith.addf %57, %350 : vector<8x128xf32>
    %352 = arith.mulf %342, %346 : vector<8x128xf32>
    %353 = arith.addf %49, %352 : vector<8x128xf32>
    %354 = arith.mulf %342, %347 : vector<8x128xf32>
    %355 = arith.addf %57, %354 : vector<8x128xf32>
    %356 = arith.mulf %349, %355 : vector<8x128xf32>
    %357 = arith.mulf %353, %351 : vector<8x128xf32>
    %358 = arith.subf %356, %357 : vector<8x128xf32>
    %cst_67 = arith.constant 0.000000e+00 : f32
    %359 = vector.broadcast %cst_67 : f32 to vector<8x128xf32>
    %360 = arith.select %345, %358, %359 : vector<8x128xi1>, vector<8x128xf32>
    %361 = arith.mulf %198, %61 : vector<8x128xf32>
    %362 = arith.mulf %199, %53 : vector<8x128xf32>
    %363 = arith.subf %361, %362 : vector<8x128xf32>
    %364 = arith.subf %363, %202 : vector<8x128xf32>
    %365 = arith.mulf %203, %61 : vector<8x128xf32>
    %366 = arith.mulf %204, %53 : vector<8x128xf32>
    %367 = arith.subf %365, %366 : vector<8x128xf32>
    %368 = arith.subf %367, %207 : vector<8x128xf32>
    %369 = arith.mulf %208, %61 : vector<8x128xf32>
    %370 = arith.mulf %209, %53 : vector<8x128xf32>
    %371 = arith.subf %369, %370 : vector<8x128xf32>
    %372 = arith.subf %371, %212 : vector<8x128xf32>
    %373 = arith.mulf %213, %61 : vector<8x128xf32>
    %374 = arith.mulf %214, %53 : vector<8x128xf32>
    %375 = arith.subf %373, %374 : vector<8x128xf32>
    %376 = arith.subf %375, %217 : vector<8x128xf32>
    %377 = arith.subf %364, %237 : vector<8x128xf32>
    %cst_68 = arith.constant 0.000000e+00 : f32
    %378 = vector.broadcast %cst_68 : f32 to vector<8x128xf32>
    %379 = arith.cmpf oeq, %377, %378 : vector<8x128xf32>
    %cst_69 = arith.constant 1.000000e+00 : f32
    %380 = vector.broadcast %cst_69 : f32 to vector<8x128xf32>
    %381 = arith.select %379, %380, %377 : vector<8x128xi1>, vector<8x128xf32>
    %cst_70 = arith.constant 0.000000e+00 : f32
    %382 = vector.broadcast %cst_70 : f32 to vector<8x128xf32>
    %383 = arith.subf %382, %237 : vector<8x128xf32>
    %384 = tpu.reciprocal %381 {approx = true} : vector<8x128xf32> -> vector<8x128xf32>
    %385 = arith.mulf %383, %384 : vector<8x128xf32>
    %cst_71 = arith.constant 0.000000e+00 : f32
    %386 = vector.broadcast %cst_71 : f32 to vector<8x128xf32>
    %387 = arith.cmpf ogt, %377, %386 : vector<8x128xf32>
    %cst_72 = arith.constant 0.000000e+00 : f32
    %388 = vector.broadcast %cst_72 : f32 to vector<8x128xf32>
    %389 = arith.select %387, %385, %388 : vector<8x128xi1>, vector<8x128xf32>
    %cst_73 = arith.constant 0.000000e+00 : f32
    %390 = vector.broadcast %cst_73 : f32 to vector<8x128xf32>
    %391 = arith.cmpf olt, %377, %390 : vector<8x128xf32>
    %cst_74 = arith.constant 1.000000e+00 : f32
    %392 = vector.broadcast %cst_74 : f32 to vector<8x128xf32>
    %393 = arith.select %391, %385, %392 : vector<8x128xi1>, vector<8x128xf32>
    %cst_75 = arith.constant 0.000000e+00 : f32
    %394 = vector.broadcast %cst_75 : f32 to vector<8x128xf32>
    %395 = arith.cmpf olt, %237, %394 : vector<8x128xf32>
    %396 = arith.andi %379, %395 : vector<8x128xi1>
    %397 = arith.subf %368, %241 : vector<8x128xf32>
    %cst_76 = arith.constant 0.000000e+00 : f32
    %398 = vector.broadcast %cst_76 : f32 to vector<8x128xf32>
    %399 = arith.cmpf oeq, %397, %398 : vector<8x128xf32>
    %cst_77 = arith.constant 1.000000e+00 : f32
    %400 = vector.broadcast %cst_77 : f32 to vector<8x128xf32>
    %401 = arith.select %399, %400, %397 : vector<8x128xi1>, vector<8x128xf32>
    %cst_78 = arith.constant 0.000000e+00 : f32
    %402 = vector.broadcast %cst_78 : f32 to vector<8x128xf32>
    %403 = arith.subf %402, %241 : vector<8x128xf32>
    %404 = tpu.reciprocal %401 {approx = true} : vector<8x128xf32> -> vector<8x128xf32>
    %405 = arith.mulf %403, %404 : vector<8x128xf32>
    %cst_79 = arith.constant 0.000000e+00 : f32
    %406 = vector.broadcast %cst_79 : f32 to vector<8x128xf32>
    %407 = arith.cmpf ogt, %397, %406 : vector<8x128xf32>
    %cst_80 = arith.constant 0.000000e+00 : f32
    %408 = vector.broadcast %cst_80 : f32 to vector<8x128xf32>
    %409 = arith.select %407, %405, %408 : vector<8x128xi1>, vector<8x128xf32>
    %cst_81 = arith.constant 0.000000e+00 : f32
    %410 = vector.broadcast %cst_81 : f32 to vector<8x128xf32>
    %411 = arith.cmpf olt, %397, %410 : vector<8x128xf32>
    %cst_82 = arith.constant 1.000000e+00 : f32
    %412 = vector.broadcast %cst_82 : f32 to vector<8x128xf32>
    %413 = arith.select %411, %405, %412 : vector<8x128xi1>, vector<8x128xf32>
    %cst_83 = arith.constant 0.000000e+00 : f32
    %414 = vector.broadcast %cst_83 : f32 to vector<8x128xf32>
    %415 = arith.cmpf olt, %241, %414 : vector<8x128xf32>
    %416 = arith.andi %399, %415 : vector<8x128xi1>
    %417 = arith.maximumf %389, %409 : vector<8x128xf32>
    %418 = arith.minimumf %393, %413 : vector<8x128xf32>
    %419 = arith.ori %396, %416 : vector<8x128xi1>
    %420 = arith.subf %372, %245 : vector<8x128xf32>
    %cst_84 = arith.constant 0.000000e+00 : f32
    %421 = vector.broadcast %cst_84 : f32 to vector<8x128xf32>
    %422 = arith.cmpf oeq, %420, %421 : vector<8x128xf32>
    %cst_85 = arith.constant 1.000000e+00 : f32
    %423 = vector.broadcast %cst_85 : f32 to vector<8x128xf32>
    %424 = arith.select %422, %423, %420 : vector<8x128xi1>, vector<8x128xf32>
    %cst_86 = arith.constant 0.000000e+00 : f32
    %425 = vector.broadcast %cst_86 : f32 to vector<8x128xf32>
    %426 = arith.subf %425, %245 : vector<8x128xf32>
    %427 = tpu.reciprocal %424 {approx = true} : vector<8x128xf32> -> vector<8x128xf32>
    %428 = arith.mulf %426, %427 : vector<8x128xf32>
    %cst_87 = arith.constant 0.000000e+00 : f32
    %429 = vector.broadcast %cst_87 : f32 to vector<8x128xf32>
    %430 = arith.cmpf ogt, %420, %429 : vector<8x128xf32>
    %cst_88 = arith.constant 0.000000e+00 : f32
    %431 = vector.broadcast %cst_88 : f32 to vector<8x128xf32>
    %432 = arith.select %430, %428, %431 : vector<8x128xi1>, vector<8x128xf32>
    %cst_89 = arith.constant 0.000000e+00 : f32
    %433 = vector.broadcast %cst_89 : f32 to vector<8x128xf32>
    %434 = arith.cmpf olt, %420, %433 : vector<8x128xf32>
    %cst_90 = arith.constant 1.000000e+00 : f32
    %435 = vector.broadcast %cst_90 : f32 to vector<8x128xf32>
    %436 = arith.select %434, %428, %435 : vector<8x128xi1>, vector<8x128xf32>
    %cst_91 = arith.constant 0.000000e+00 : f32
    %437 = vector.broadcast %cst_91 : f32 to vector<8x128xf32>
    %438 = arith.cmpf olt, %245, %437 : vector<8x128xf32>
    %439 = arith.andi %422, %438 : vector<8x128xi1>
    %440 = arith.maximumf %417, %432 : vector<8x128xf32>
    %441 = arith.minimumf %418, %436 : vector<8x128xf32>
    %442 = arith.ori %419, %439 : vector<8x128xi1>
    %443 = arith.subf %376, %249 : vector<8x128xf32>
    %cst_92 = arith.constant 0.000000e+00 : f32
    %444 = vector.broadcast %cst_92 : f32 to vector<8x128xf32>
    %445 = arith.cmpf oeq, %443, %444 : vector<8x128xf32>
    %cst_93 = arith.constant 1.000000e+00 : f32
    %446 = vector.broadcast %cst_93 : f32 to vector<8x128xf32>
    %447 = arith.select %445, %446, %443 : vector<8x128xi1>, vector<8x128xf32>
    %cst_94 = arith.constant 0.000000e+00 : f32
    %448 = vector.broadcast %cst_94 : f32 to vector<8x128xf32>
    %449 = arith.subf %448, %249 : vector<8x128xf32>
    %450 = tpu.reciprocal %447 {approx = true} : vector<8x128xf32> -> vector<8x128xf32>
    %451 = arith.mulf %449, %450 : vector<8x128xf32>
    %cst_95 = arith.constant 0.000000e+00 : f32
    %452 = vector.broadcast %cst_95 : f32 to vector<8x128xf32>
    %453 = arith.cmpf ogt, %443, %452 : vector<8x128xf32>
    %cst_96 = arith.constant 0.000000e+00 : f32
    %454 = vector.broadcast %cst_96 : f32 to vector<8x128xf32>
    %455 = arith.select %453, %451, %454 : vector<8x128xi1>, vector<8x128xf32>
    %cst_97 = arith.constant 0.000000e+00 : f32
    %456 = vector.broadcast %cst_97 : f32 to vector<8x128xf32>
    %457 = arith.cmpf olt, %443, %456 : vector<8x128xf32>
    %cst_98 = arith.constant 1.000000e+00 : f32
    %458 = vector.broadcast %cst_98 : f32 to vector<8x128xf32>
    %459 = arith.select %457, %451, %458 : vector<8x128xi1>, vector<8x128xf32>
    %cst_99 = arith.constant 0.000000e+00 : f32
    %460 = vector.broadcast %cst_99 : f32 to vector<8x128xf32>
    %461 = arith.cmpf olt, %249, %460 : vector<8x128xf32>
    %462 = arith.andi %445, %461 : vector<8x128xi1>
    %463 = arith.maximumf %440, %455 : vector<8x128xf32>
    %464 = arith.minimumf %441, %459 : vector<8x128xf32>
    %465 = arith.ori %442, %462 : vector<8x128xi1>
    %cst_100 = arith.constant 0.000000e+00 : f32
    %466 = vector.broadcast %cst_100 : f32 to vector<8x128xf32>
    %467 = arith.maximumf %463, %466 : vector<8x128xf32>
    %cst_101 = arith.constant 1.000000e+00 : f32
    %468 = vector.broadcast %cst_101 : f32 to vector<8x128xf32>
    %469 = arith.minimumf %464, %468 : vector<8x128xf32>
    %cst_102 = arith.constant dense<true> : vector<8x128xi1>
    %470 = arith.xori %465, %cst_102 : vector<8x128xi1>
    %471 = arith.cmpf ole, %467, %469 : vector<8x128xf32>
    %472 = arith.andi %470, %471 : vector<8x128xi1>
    %473 = arith.subf %53, %51 : vector<8x128xf32>
    %474 = arith.subf %61, %59 : vector<8x128xf32>
    %475 = arith.mulf %467, %473 : vector<8x128xf32>
    %476 = arith.addf %51, %475 : vector<8x128xf32>
    %477 = arith.mulf %467, %474 : vector<8x128xf32>
    %478 = arith.addf %59, %477 : vector<8x128xf32>
    %479 = arith.mulf %469, %473 : vector<8x128xf32>
    %480 = arith.addf %51, %479 : vector<8x128xf32>
    %481 = arith.mulf %469, %474 : vector<8x128xf32>
    %482 = arith.addf %59, %481 : vector<8x128xf32>
    %483 = arith.mulf %476, %482 : vector<8x128xf32>
    %484 = arith.mulf %480, %478 : vector<8x128xf32>
    %485 = arith.subf %483, %484 : vector<8x128xf32>
    %cst_103 = arith.constant 0.000000e+00 : f32
    %486 = vector.broadcast %cst_103 : f32 to vector<8x128xf32>
    %487 = arith.select %472, %485, %486 : vector<8x128xi1>, vector<8x128xf32>
    %488 = arith.addf %360, %487 : vector<8x128xf32>
    %489 = arith.mulf %198, %63 : vector<8x128xf32>
    %490 = arith.mulf %199, %55 : vector<8x128xf32>
    %491 = arith.subf %489, %490 : vector<8x128xf32>
    %492 = arith.subf %491, %202 : vector<8x128xf32>
    %493 = arith.mulf %203, %63 : vector<8x128xf32>
    %494 = arith.mulf %204, %55 : vector<8x128xf32>
    %495 = arith.subf %493, %494 : vector<8x128xf32>
    %496 = arith.subf %495, %207 : vector<8x128xf32>
    %497 = arith.mulf %208, %63 : vector<8x128xf32>
    %498 = arith.mulf %209, %55 : vector<8x128xf32>
    %499 = arith.subf %497, %498 : vector<8x128xf32>
    %500 = arith.subf %499, %212 : vector<8x128xf32>
    %501 = arith.mulf %213, %63 : vector<8x128xf32>
    %502 = arith.mulf %214, %55 : vector<8x128xf32>
    %503 = arith.subf %501, %502 : vector<8x128xf32>
    %504 = arith.subf %503, %217 : vector<8x128xf32>
    %505 = arith.subf %492, %364 : vector<8x128xf32>
    %cst_104 = arith.constant 0.000000e+00 : f32
    %506 = vector.broadcast %cst_104 : f32 to vector<8x128xf32>
    %507 = arith.cmpf oeq, %505, %506 : vector<8x128xf32>
    %cst_105 = arith.constant 1.000000e+00 : f32
    %508 = vector.broadcast %cst_105 : f32 to vector<8x128xf32>
    %509 = arith.select %507, %508, %505 : vector<8x128xi1>, vector<8x128xf32>
    %cst_106 = arith.constant 0.000000e+00 : f32
    %510 = vector.broadcast %cst_106 : f32 to vector<8x128xf32>
    %511 = arith.subf %510, %364 : vector<8x128xf32>
    %512 = tpu.reciprocal %509 {approx = true} : vector<8x128xf32> -> vector<8x128xf32>
    %513 = arith.mulf %511, %512 : vector<8x128xf32>
    %cst_107 = arith.constant 0.000000e+00 : f32
    %514 = vector.broadcast %cst_107 : f32 to vector<8x128xf32>
    %515 = arith.cmpf ogt, %505, %514 : vector<8x128xf32>
    %cst_108 = arith.constant 0.000000e+00 : f32
    %516 = vector.broadcast %cst_108 : f32 to vector<8x128xf32>
    %517 = arith.select %515, %513, %516 : vector<8x128xi1>, vector<8x128xf32>
    %cst_109 = arith.constant 0.000000e+00 : f32
    %518 = vector.broadcast %cst_109 : f32 to vector<8x128xf32>
    %519 = arith.cmpf olt, %505, %518 : vector<8x128xf32>
    %cst_110 = arith.constant 1.000000e+00 : f32
    %520 = vector.broadcast %cst_110 : f32 to vector<8x128xf32>
    %521 = arith.select %519, %513, %520 : vector<8x128xi1>, vector<8x128xf32>
    %cst_111 = arith.constant 0.000000e+00 : f32
    %522 = vector.broadcast %cst_111 : f32 to vector<8x128xf32>
    %523 = arith.cmpf olt, %364, %522 : vector<8x128xf32>
    %524 = arith.andi %507, %523 : vector<8x128xi1>
    %525 = arith.subf %496, %368 : vector<8x128xf32>
    %cst_112 = arith.constant 0.000000e+00 : f32
    %526 = vector.broadcast %cst_112 : f32 to vector<8x128xf32>
    %527 = arith.cmpf oeq, %525, %526 : vector<8x128xf32>
    %cst_113 = arith.constant 1.000000e+00 : f32
    %528 = vector.broadcast %cst_113 : f32 to vector<8x128xf32>
    %529 = arith.select %527, %528, %525 : vector<8x128xi1>, vector<8x128xf32>
    %cst_114 = arith.constant 0.000000e+00 : f32
    %530 = vector.broadcast %cst_114 : f32 to vector<8x128xf32>
    %531 = arith.subf %530, %368 : vector<8x128xf32>
    %532 = tpu.reciprocal %529 {approx = true} : vector<8x128xf32> -> vector<8x128xf32>
    %533 = arith.mulf %531, %532 : vector<8x128xf32>
    %cst_115 = arith.constant 0.000000e+00 : f32
    %534 = vector.broadcast %cst_115 : f32 to vector<8x128xf32>
    %535 = arith.cmpf ogt, %525, %534 : vector<8x128xf32>
    %cst_116 = arith.constant 0.000000e+00 : f32
    %536 = vector.broadcast %cst_116 : f32 to vector<8x128xf32>
    %537 = arith.select %535, %533, %536 : vector<8x128xi1>, vector<8x128xf32>
    %cst_117 = arith.constant 0.000000e+00 : f32
    %538 = vector.broadcast %cst_117 : f32 to vector<8x128xf32>
    %539 = arith.cmpf olt, %525, %538 : vector<8x128xf32>
    %cst_118 = arith.constant 1.000000e+00 : f32
    %540 = vector.broadcast %cst_118 : f32 to vector<8x128xf32>
    %541 = arith.select %539, %533, %540 : vector<8x128xi1>, vector<8x128xf32>
    %cst_119 = arith.constant 0.000000e+00 : f32
    %542 = vector.broadcast %cst_119 : f32 to vector<8x128xf32>
    %543 = arith.cmpf olt, %368, %542 : vector<8x128xf32>
    %544 = arith.andi %527, %543 : vector<8x128xi1>
    %545 = arith.maximumf %517, %537 : vector<8x128xf32>
    %546 = arith.minimumf %521, %541 : vector<8x128xf32>
    %547 = arith.ori %524, %544 : vector<8x128xi1>
    %548 = arith.subf %500, %372 : vector<8x128xf32>
    %cst_120 = arith.constant 0.000000e+00 : f32
    %549 = vector.broadcast %cst_120 : f32 to vector<8x128xf32>
    %550 = arith.cmpf oeq, %548, %549 : vector<8x128xf32>
    %cst_121 = arith.constant 1.000000e+00 : f32
    %551 = vector.broadcast %cst_121 : f32 to vector<8x128xf32>
    %552 = arith.select %550, %551, %548 : vector<8x128xi1>, vector<8x128xf32>
    %cst_122 = arith.constant 0.000000e+00 : f32
    %553 = vector.broadcast %cst_122 : f32 to vector<8x128xf32>
    %554 = arith.subf %553, %372 : vector<8x128xf32>
    %555 = tpu.reciprocal %552 {approx = true} : vector<8x128xf32> -> vector<8x128xf32>
    %556 = arith.mulf %554, %555 : vector<8x128xf32>
    %cst_123 = arith.constant 0.000000e+00 : f32
    %557 = vector.broadcast %cst_123 : f32 to vector<8x128xf32>
    %558 = arith.cmpf ogt, %548, %557 : vector<8x128xf32>
    %cst_124 = arith.constant 0.000000e+00 : f32
    %559 = vector.broadcast %cst_124 : f32 to vector<8x128xf32>
    %560 = arith.select %558, %556, %559 : vector<8x128xi1>, vector<8x128xf32>
    %cst_125 = arith.constant 0.000000e+00 : f32
    %561 = vector.broadcast %cst_125 : f32 to vector<8x128xf32>
    %562 = arith.cmpf olt, %548, %561 : vector<8x128xf32>
    %cst_126 = arith.constant 1.000000e+00 : f32
    %563 = vector.broadcast %cst_126 : f32 to vector<8x128xf32>
    %564 = arith.select %562, %556, %563 : vector<8x128xi1>, vector<8x128xf32>
    %cst_127 = arith.constant 0.000000e+00 : f32
    %565 = vector.broadcast %cst_127 : f32 to vector<8x128xf32>
    %566 = arith.cmpf olt, %372, %565 : vector<8x128xf32>
    %567 = arith.andi %550, %566 : vector<8x128xi1>
    %568 = arith.maximumf %545, %560 : vector<8x128xf32>
    %569 = arith.minimumf %546, %564 : vector<8x128xf32>
    %570 = arith.ori %547, %567 : vector<8x128xi1>
    %571 = arith.subf %504, %376 : vector<8x128xf32>
    %cst_128 = arith.constant 0.000000e+00 : f32
    %572 = vector.broadcast %cst_128 : f32 to vector<8x128xf32>
    %573 = arith.cmpf oeq, %571, %572 : vector<8x128xf32>
    %cst_129 = arith.constant 1.000000e+00 : f32
    %574 = vector.broadcast %cst_129 : f32 to vector<8x128xf32>
    %575 = arith.select %573, %574, %571 : vector<8x128xi1>, vector<8x128xf32>
    %cst_130 = arith.constant 0.000000e+00 : f32
    %576 = vector.broadcast %cst_130 : f32 to vector<8x128xf32>
    %577 = arith.subf %576, %376 : vector<8x128xf32>
    %578 = tpu.reciprocal %575 {approx = true} : vector<8x128xf32> -> vector<8x128xf32>
    %579 = arith.mulf %577, %578 : vector<8x128xf32>
    %cst_131 = arith.constant 0.000000e+00 : f32
    %580 = vector.broadcast %cst_131 : f32 to vector<8x128xf32>
    %581 = arith.cmpf ogt, %571, %580 : vector<8x128xf32>
    %cst_132 = arith.constant 0.000000e+00 : f32
    %582 = vector.broadcast %cst_132 : f32 to vector<8x128xf32>
    %583 = arith.select %581, %579, %582 : vector<8x128xi1>, vector<8x128xf32>
    %cst_133 = arith.constant 0.000000e+00 : f32
    %584 = vector.broadcast %cst_133 : f32 to vector<8x128xf32>
    %585 = arith.cmpf olt, %571, %584 : vector<8x128xf32>
    %cst_134 = arith.constant 1.000000e+00 : f32
    %586 = vector.broadcast %cst_134 : f32 to vector<8x128xf32>
    %587 = arith.select %585, %579, %586 : vector<8x128xi1>, vector<8x128xf32>
    %cst_135 = arith.constant 0.000000e+00 : f32
    %588 = vector.broadcast %cst_135 : f32 to vector<8x128xf32>
    %589 = arith.cmpf olt, %376, %588 : vector<8x128xf32>
    %590 = arith.andi %573, %589 : vector<8x128xi1>
    %591 = arith.maximumf %568, %583 : vector<8x128xf32>
    %592 = arith.minimumf %569, %587 : vector<8x128xf32>
    %593 = arith.ori %570, %590 : vector<8x128xi1>
    %cst_136 = arith.constant 0.000000e+00 : f32
    %594 = vector.broadcast %cst_136 : f32 to vector<8x128xf32>
    %595 = arith.maximumf %591, %594 : vector<8x128xf32>
    %cst_137 = arith.constant 1.000000e+00 : f32
    %596 = vector.broadcast %cst_137 : f32 to vector<8x128xf32>
    %597 = arith.minimumf %592, %596 : vector<8x128xf32>
    %cst_138 = arith.constant dense<true> : vector<8x128xi1>
    %598 = arith.xori %593, %cst_138 : vector<8x128xi1>
    %599 = arith.cmpf ole, %595, %597 : vector<8x128xf32>
    %600 = arith.andi %598, %599 : vector<8x128xi1>
    %601 = arith.subf %55, %53 : vector<8x128xf32>
    %602 = arith.subf %63, %61 : vector<8x128xf32>
    %603 = arith.mulf %595, %601 : vector<8x128xf32>
    %604 = arith.addf %53, %603 : vector<8x128xf32>
    %605 = arith.mulf %595, %602 : vector<8x128xf32>
    %606 = arith.addf %61, %605 : vector<8x128xf32>
    %607 = arith.mulf %597, %601 : vector<8x128xf32>
    %608 = arith.addf %53, %607 : vector<8x128xf32>
    %609 = arith.mulf %597, %602 : vector<8x128xf32>
    %610 = arith.addf %61, %609 : vector<8x128xf32>
    %611 = arith.mulf %604, %610 : vector<8x128xf32>
    %612 = arith.mulf %608, %606 : vector<8x128xf32>
    %613 = arith.subf %611, %612 : vector<8x128xf32>
    %cst_139 = arith.constant 0.000000e+00 : f32
    %614 = vector.broadcast %cst_139 : f32 to vector<8x128xf32>
    %615 = arith.select %600, %613, %614 : vector<8x128xi1>, vector<8x128xf32>
    %616 = arith.addf %488, %615 : vector<8x128xf32>
    %617 = arith.subf %221, %492 : vector<8x128xf32>
    %cst_140 = arith.constant 0.000000e+00 : f32
    %618 = vector.broadcast %cst_140 : f32 to vector<8x128xf32>
    %619 = arith.cmpf oeq, %617, %618 : vector<8x128xf32>
    %cst_141 = arith.constant 1.000000e+00 : f32
    %620 = vector.broadcast %cst_141 : f32 to vector<8x128xf32>
    %621 = arith.select %619, %620, %617 : vector<8x128xi1>, vector<8x128xf32>
    %cst_142 = arith.constant 0.000000e+00 : f32
    %622 = vector.broadcast %cst_142 : f32 to vector<8x128xf32>
    %623 = arith.subf %622, %492 : vector<8x128xf32>
    %624 = tpu.reciprocal %621 {approx = true} : vector<8x128xf32> -> vector<8x128xf32>
    %625 = arith.mulf %623, %624 : vector<8x128xf32>
    %cst_143 = arith.constant 0.000000e+00 : f32
    %626 = vector.broadcast %cst_143 : f32 to vector<8x128xf32>
    %627 = arith.cmpf ogt, %617, %626 : vector<8x128xf32>
    %cst_144 = arith.constant 0.000000e+00 : f32
    %628 = vector.broadcast %cst_144 : f32 to vector<8x128xf32>
    %629 = arith.select %627, %625, %628 : vector<8x128xi1>, vector<8x128xf32>
    %cst_145 = arith.constant 0.000000e+00 : f32
    %630 = vector.broadcast %cst_145 : f32 to vector<8x128xf32>
    %631 = arith.cmpf olt, %617, %630 : vector<8x128xf32>
    %cst_146 = arith.constant 1.000000e+00 : f32
    %632 = vector.broadcast %cst_146 : f32 to vector<8x128xf32>
    %633 = arith.select %631, %625, %632 : vector<8x128xi1>, vector<8x128xf32>
    %cst_147 = arith.constant 0.000000e+00 : f32
    %634 = vector.broadcast %cst_147 : f32 to vector<8x128xf32>
    %635 = arith.cmpf olt, %492, %634 : vector<8x128xf32>
    %636 = arith.andi %619, %635 : vector<8x128xi1>
    %637 = arith.subf %225, %496 : vector<8x128xf32>
    %cst_148 = arith.constant 0.000000e+00 : f32
    %638 = vector.broadcast %cst_148 : f32 to vector<8x128xf32>
    %639 = arith.cmpf oeq, %637, %638 : vector<8x128xf32>
    %cst_149 = arith.constant 1.000000e+00 : f32
    %640 = vector.broadcast %cst_149 : f32 to vector<8x128xf32>
    %641 = arith.select %639, %640, %637 : vector<8x128xi1>, vector<8x128xf32>
    %cst_150 = arith.constant 0.000000e+00 : f32
    %642 = vector.broadcast %cst_150 : f32 to vector<8x128xf32>
    %643 = arith.subf %642, %496 : vector<8x128xf32>
    %644 = tpu.reciprocal %641 {approx = true} : vector<8x128xf32> -> vector<8x128xf32>
    %645 = arith.mulf %643, %644 : vector<8x128xf32>
    %cst_151 = arith.constant 0.000000e+00 : f32
    %646 = vector.broadcast %cst_151 : f32 to vector<8x128xf32>
    %647 = arith.cmpf ogt, %637, %646 : vector<8x128xf32>
    %cst_152 = arith.constant 0.000000e+00 : f32
    %648 = vector.broadcast %cst_152 : f32 to vector<8x128xf32>
    %649 = arith.select %647, %645, %648 : vector<8x128xi1>, vector<8x128xf32>
    %cst_153 = arith.constant 0.000000e+00 : f32
    %650 = vector.broadcast %cst_153 : f32 to vector<8x128xf32>
    %651 = arith.cmpf olt, %637, %650 : vector<8x128xf32>
    %cst_154 = arith.constant 1.000000e+00 : f32
    %652 = vector.broadcast %cst_154 : f32 to vector<8x128xf32>
    %653 = arith.select %651, %645, %652 : vector<8x128xi1>, vector<8x128xf32>
    %cst_155 = arith.constant 0.000000e+00 : f32
    %654 = vector.broadcast %cst_155 : f32 to vector<8x128xf32>
    %655 = arith.cmpf olt, %496, %654 : vector<8x128xf32>
    %656 = arith.andi %639, %655 : vector<8x128xi1>
    %657 = arith.maximumf %629, %649 : vector<8x128xf32>
    %658 = arith.minimumf %633, %653 : vector<8x128xf32>
    %659 = arith.ori %636, %656 : vector<8x128xi1>
    %660 = arith.subf %229, %500 : vector<8x128xf32>
    %cst_156 = arith.constant 0.000000e+00 : f32
    %661 = vector.broadcast %cst_156 : f32 to vector<8x128xf32>
    %662 = arith.cmpf oeq, %660, %661 : vector<8x128xf32>
    %cst_157 = arith.constant 1.000000e+00 : f32
    %663 = vector.broadcast %cst_157 : f32 to vector<8x128xf32>
    %664 = arith.select %662, %663, %660 : vector<8x128xi1>, vector<8x128xf32>
    %cst_158 = arith.constant 0.000000e+00 : f32
    %665 = vector.broadcast %cst_158 : f32 to vector<8x128xf32>
    %666 = arith.subf %665, %500 : vector<8x128xf32>
    %667 = tpu.reciprocal %664 {approx = true} : vector<8x128xf32> -> vector<8x128xf32>
    %668 = arith.mulf %666, %667 : vector<8x128xf32>
    %cst_159 = arith.constant 0.000000e+00 : f32
    %669 = vector.broadcast %cst_159 : f32 to vector<8x128xf32>
    %670 = arith.cmpf ogt, %660, %669 : vector<8x128xf32>
    %cst_160 = arith.constant 0.000000e+00 : f32
    %671 = vector.broadcast %cst_160 : f32 to vector<8x128xf32>
    %672 = arith.select %670, %668, %671 : vector<8x128xi1>, vector<8x128xf32>
    %cst_161 = arith.constant 0.000000e+00 : f32
    %673 = vector.broadcast %cst_161 : f32 to vector<8x128xf32>
    %674 = arith.cmpf olt, %660, %673 : vector<8x128xf32>
    %cst_162 = arith.constant 1.000000e+00 : f32
    %675 = vector.broadcast %cst_162 : f32 to vector<8x128xf32>
    %676 = arith.select %674, %668, %675 : vector<8x128xi1>, vector<8x128xf32>
    %cst_163 = arith.constant 0.000000e+00 : f32
    %677 = vector.broadcast %cst_163 : f32 to vector<8x128xf32>
    %678 = arith.cmpf olt, %500, %677 : vector<8x128xf32>
    %679 = arith.andi %662, %678 : vector<8x128xi1>
    %680 = arith.maximumf %657, %672 : vector<8x128xf32>
    %681 = arith.minimumf %658, %676 : vector<8x128xf32>
    %682 = arith.ori %659, %679 : vector<8x128xi1>
    %683 = arith.subf %233, %504 : vector<8x128xf32>
    %cst_164 = arith.constant 0.000000e+00 : f32
    %684 = vector.broadcast %cst_164 : f32 to vector<8x128xf32>
    %685 = arith.cmpf oeq, %683, %684 : vector<8x128xf32>
    %cst_165 = arith.constant 1.000000e+00 : f32
    %686 = vector.broadcast %cst_165 : f32 to vector<8x128xf32>
    %687 = arith.select %685, %686, %683 : vector<8x128xi1>, vector<8x128xf32>
    %cst_166 = arith.constant 0.000000e+00 : f32
    %688 = vector.broadcast %cst_166 : f32 to vector<8x128xf32>
    %689 = arith.subf %688, %504 : vector<8x128xf32>
    %690 = tpu.reciprocal %687 {approx = true} : vector<8x128xf32> -> vector<8x128xf32>
    %691 = arith.mulf %689, %690 : vector<8x128xf32>
    %cst_167 = arith.constant 0.000000e+00 : f32
    %692 = vector.broadcast %cst_167 : f32 to vector<8x128xf32>
    %693 = arith.cmpf ogt, %683, %692 : vector<8x128xf32>
    %cst_168 = arith.constant 0.000000e+00 : f32
    %694 = vector.broadcast %cst_168 : f32 to vector<8x128xf32>
    %695 = arith.select %693, %691, %694 : vector<8x128xi1>, vector<8x128xf32>
    %cst_169 = arith.constant 0.000000e+00 : f32
    %696 = vector.broadcast %cst_169 : f32 to vector<8x128xf32>
    %697 = arith.cmpf olt, %683, %696 : vector<8x128xf32>
    %cst_170 = arith.constant 1.000000e+00 : f32
    %698 = vector.broadcast %cst_170 : f32 to vector<8x128xf32>
    %699 = arith.select %697, %691, %698 : vector<8x128xi1>, vector<8x128xf32>
    %cst_171 = arith.constant 0.000000e+00 : f32
    %700 = vector.broadcast %cst_171 : f32 to vector<8x128xf32>
    %701 = arith.cmpf olt, %504, %700 : vector<8x128xf32>
    %702 = arith.andi %685, %701 : vector<8x128xi1>
    %703 = arith.maximumf %680, %695 : vector<8x128xf32>
    %704 = arith.minimumf %681, %699 : vector<8x128xf32>
    %705 = arith.ori %682, %702 : vector<8x128xi1>
    %cst_172 = arith.constant 0.000000e+00 : f32
    %706 = vector.broadcast %cst_172 : f32 to vector<8x128xf32>
    %707 = arith.maximumf %703, %706 : vector<8x128xf32>
    %cst_173 = arith.constant 1.000000e+00 : f32
    %708 = vector.broadcast %cst_173 : f32 to vector<8x128xf32>
    %709 = arith.minimumf %704, %708 : vector<8x128xf32>
    %cst_174 = arith.constant dense<true> : vector<8x128xi1>
    %710 = arith.xori %705, %cst_174 : vector<8x128xi1>
    %711 = arith.cmpf ole, %707, %709 : vector<8x128xf32>
    %712 = arith.andi %710, %711 : vector<8x128xi1>
    %713 = arith.subf %49, %55 : vector<8x128xf32>
    %714 = arith.subf %57, %63 : vector<8x128xf32>
    %715 = arith.mulf %707, %713 : vector<8x128xf32>
    %716 = arith.addf %55, %715 : vector<8x128xf32>
    %717 = arith.mulf %707, %714 : vector<8x128xf32>
    %718 = arith.addf %63, %717 : vector<8x128xf32>
    %719 = arith.mulf %709, %713 : vector<8x128xf32>
    %720 = arith.addf %55, %719 : vector<8x128xf32>
    %721 = arith.mulf %709, %714 : vector<8x128xf32>
    %722 = arith.addf %63, %721 : vector<8x128xf32>
    %723 = arith.mulf %716, %722 : vector<8x128xf32>
    %724 = arith.mulf %720, %718 : vector<8x128xf32>
    %725 = arith.subf %723, %724 : vector<8x128xf32>
    %cst_175 = arith.constant 0.000000e+00 : f32
    %726 = vector.broadcast %cst_175 : f32 to vector<8x128xf32>
    %727 = arith.select %712, %725, %726 : vector<8x128xi1>, vector<8x128xf32>
    %728 = arith.addf %616, %727 : vector<8x128xf32>
    %729 = arith.subf %51, %49 : vector<8x128xf32>
    %730 = arith.subf %59, %57 : vector<8x128xf32>
    %731 = arith.mulf %729, %57 : vector<8x128xf32>
    %732 = arith.mulf %730, %49 : vector<8x128xf32>
    %733 = arith.subf %731, %732 : vector<8x128xf32>
    %734 = arith.subf %53, %51 : vector<8x128xf32>
    %735 = arith.subf %61, %59 : vector<8x128xf32>
    %736 = arith.mulf %734, %59 : vector<8x128xf32>
    %737 = arith.mulf %735, %51 : vector<8x128xf32>
    %738 = arith.subf %736, %737 : vector<8x128xf32>
    %739 = arith.subf %55, %53 : vector<8x128xf32>
    %740 = arith.subf %63, %61 : vector<8x128xf32>
    %741 = arith.mulf %739, %61 : vector<8x128xf32>
    %742 = arith.mulf %740, %53 : vector<8x128xf32>
    %743 = arith.subf %741, %742 : vector<8x128xf32>
    %744 = arith.subf %49, %55 : vector<8x128xf32>
    %745 = arith.subf %57, %63 : vector<8x128xf32>
    %746 = arith.mulf %744, %63 : vector<8x128xf32>
    %747 = arith.mulf %745, %55 : vector<8x128xf32>
    %748 = arith.subf %746, %747 : vector<8x128xf32>
    %749 = arith.mulf %729, %185 : vector<8x128xf32>
    %750 = arith.mulf %730, %169 : vector<8x128xf32>
    %751 = arith.subf %749, %750 : vector<8x128xf32>
    %752 = arith.subf %751, %733 : vector<8x128xf32>
    %753 = arith.mulf %734, %185 : vector<8x128xf32>
    %754 = arith.mulf %735, %169 : vector<8x128xf32>
    %755 = arith.subf %753, %754 : vector<8x128xf32>
    %756 = arith.subf %755, %738 : vector<8x128xf32>
    %757 = arith.mulf %739, %185 : vector<8x128xf32>
    %758 = arith.mulf %740, %169 : vector<8x128xf32>
    %759 = arith.subf %757, %758 : vector<8x128xf32>
    %760 = arith.subf %759, %743 : vector<8x128xf32>
    %761 = arith.mulf %744, %185 : vector<8x128xf32>
    %762 = arith.mulf %745, %169 : vector<8x128xf32>
    %763 = arith.subf %761, %762 : vector<8x128xf32>
    %764 = arith.subf %763, %748 : vector<8x128xf32>
    %765 = arith.mulf %729, %189 : vector<8x128xf32>
    %766 = arith.mulf %730, %173 : vector<8x128xf32>
    %767 = arith.subf %765, %766 : vector<8x128xf32>
    %768 = arith.subf %767, %733 : vector<8x128xf32>
    %769 = arith.mulf %734, %189 : vector<8x128xf32>
    %770 = arith.mulf %735, %173 : vector<8x128xf32>
    %771 = arith.subf %769, %770 : vector<8x128xf32>
    %772 = arith.subf %771, %738 : vector<8x128xf32>
    %773 = arith.mulf %739, %189 : vector<8x128xf32>
    %774 = arith.mulf %740, %173 : vector<8x128xf32>
    %775 = arith.subf %773, %774 : vector<8x128xf32>
    %776 = arith.subf %775, %743 : vector<8x128xf32>
    %777 = arith.mulf %744, %189 : vector<8x128xf32>
    %778 = arith.mulf %745, %173 : vector<8x128xf32>
    %779 = arith.subf %777, %778 : vector<8x128xf32>
    %780 = arith.subf %779, %748 : vector<8x128xf32>
    %781 = arith.subf %768, %752 : vector<8x128xf32>
    %cst_176 = arith.constant 0.000000e+00 : f32
    %782 = vector.broadcast %cst_176 : f32 to vector<8x128xf32>
    %783 = arith.cmpf oeq, %781, %782 : vector<8x128xf32>
    %cst_177 = arith.constant 1.000000e+00 : f32
    %784 = vector.broadcast %cst_177 : f32 to vector<8x128xf32>
    %785 = arith.select %783, %784, %781 : vector<8x128xi1>, vector<8x128xf32>
    %cst_178 = arith.constant 0.000000e+00 : f32
    %786 = vector.broadcast %cst_178 : f32 to vector<8x128xf32>
    %787 = arith.subf %786, %752 : vector<8x128xf32>
    %788 = tpu.reciprocal %785 {approx = true} : vector<8x128xf32> -> vector<8x128xf32>
    %789 = arith.mulf %787, %788 : vector<8x128xf32>
    %cst_179 = arith.constant 0.000000e+00 : f32
    %790 = vector.broadcast %cst_179 : f32 to vector<8x128xf32>
    %791 = arith.cmpf ogt, %781, %790 : vector<8x128xf32>
    %cst_180 = arith.constant 0.000000e+00 : f32
    %792 = vector.broadcast %cst_180 : f32 to vector<8x128xf32>
    %793 = arith.select %791, %789, %792 : vector<8x128xi1>, vector<8x128xf32>
    %cst_181 = arith.constant 0.000000e+00 : f32
    %794 = vector.broadcast %cst_181 : f32 to vector<8x128xf32>
    %795 = arith.cmpf olt, %781, %794 : vector<8x128xf32>
    %cst_182 = arith.constant 1.000000e+00 : f32
    %796 = vector.broadcast %cst_182 : f32 to vector<8x128xf32>
    %797 = arith.select %795, %789, %796 : vector<8x128xi1>, vector<8x128xf32>
    %cst_183 = arith.constant 0.000000e+00 : f32
    %798 = vector.broadcast %cst_183 : f32 to vector<8x128xf32>
    %799 = arith.cmpf olt, %752, %798 : vector<8x128xf32>
    %800 = arith.andi %783, %799 : vector<8x128xi1>
    %801 = arith.subf %772, %756 : vector<8x128xf32>
    %cst_184 = arith.constant 0.000000e+00 : f32
    %802 = vector.broadcast %cst_184 : f32 to vector<8x128xf32>
    %803 = arith.cmpf oeq, %801, %802 : vector<8x128xf32>
    %cst_185 = arith.constant 1.000000e+00 : f32
    %804 = vector.broadcast %cst_185 : f32 to vector<8x128xf32>
    %805 = arith.select %803, %804, %801 : vector<8x128xi1>, vector<8x128xf32>
    %cst_186 = arith.constant 0.000000e+00 : f32
    %806 = vector.broadcast %cst_186 : f32 to vector<8x128xf32>
    %807 = arith.subf %806, %756 : vector<8x128xf32>
    %808 = tpu.reciprocal %805 {approx = true} : vector<8x128xf32> -> vector<8x128xf32>
    %809 = arith.mulf %807, %808 : vector<8x128xf32>
    %cst_187 = arith.constant 0.000000e+00 : f32
    %810 = vector.broadcast %cst_187 : f32 to vector<8x128xf32>
    %811 = arith.cmpf ogt, %801, %810 : vector<8x128xf32>
    %cst_188 = arith.constant 0.000000e+00 : f32
    %812 = vector.broadcast %cst_188 : f32 to vector<8x128xf32>
    %813 = arith.select %811, %809, %812 : vector<8x128xi1>, vector<8x128xf32>
    %cst_189 = arith.constant 0.000000e+00 : f32
    %814 = vector.broadcast %cst_189 : f32 to vector<8x128xf32>
    %815 = arith.cmpf olt, %801, %814 : vector<8x128xf32>
    %cst_190 = arith.constant 1.000000e+00 : f32
    %816 = vector.broadcast %cst_190 : f32 to vector<8x128xf32>
    %817 = arith.select %815, %809, %816 : vector<8x128xi1>, vector<8x128xf32>
    %cst_191 = arith.constant 0.000000e+00 : f32
    %818 = vector.broadcast %cst_191 : f32 to vector<8x128xf32>
    %819 = arith.cmpf olt, %756, %818 : vector<8x128xf32>
    %820 = arith.andi %803, %819 : vector<8x128xi1>
    %821 = arith.maximumf %793, %813 : vector<8x128xf32>
    %822 = arith.minimumf %797, %817 : vector<8x128xf32>
    %823 = arith.ori %800, %820 : vector<8x128xi1>
    %824 = arith.subf %776, %760 : vector<8x128xf32>
    %cst_192 = arith.constant 0.000000e+00 : f32
    %825 = vector.broadcast %cst_192 : f32 to vector<8x128xf32>
    %826 = arith.cmpf oeq, %824, %825 : vector<8x128xf32>
    %cst_193 = arith.constant 1.000000e+00 : f32
    %827 = vector.broadcast %cst_193 : f32 to vector<8x128xf32>
    %828 = arith.select %826, %827, %824 : vector<8x128xi1>, vector<8x128xf32>
    %cst_194 = arith.constant 0.000000e+00 : f32
    %829 = vector.broadcast %cst_194 : f32 to vector<8x128xf32>
    %830 = arith.subf %829, %760 : vector<8x128xf32>
    %831 = tpu.reciprocal %828 {approx = true} : vector<8x128xf32> -> vector<8x128xf32>
    %832 = arith.mulf %830, %831 : vector<8x128xf32>
    %cst_195 = arith.constant 0.000000e+00 : f32
    %833 = vector.broadcast %cst_195 : f32 to vector<8x128xf32>
    %834 = arith.cmpf ogt, %824, %833 : vector<8x128xf32>
    %cst_196 = arith.constant 0.000000e+00 : f32
    %835 = vector.broadcast %cst_196 : f32 to vector<8x128xf32>
    %836 = arith.select %834, %832, %835 : vector<8x128xi1>, vector<8x128xf32>
    %cst_197 = arith.constant 0.000000e+00 : f32
    %837 = vector.broadcast %cst_197 : f32 to vector<8x128xf32>
    %838 = arith.cmpf olt, %824, %837 : vector<8x128xf32>
    %cst_198 = arith.constant 1.000000e+00 : f32
    %839 = vector.broadcast %cst_198 : f32 to vector<8x128xf32>
    %840 = arith.select %838, %832, %839 : vector<8x128xi1>, vector<8x128xf32>
    %cst_199 = arith.constant 0.000000e+00 : f32
    %841 = vector.broadcast %cst_199 : f32 to vector<8x128xf32>
    %842 = arith.cmpf olt, %760, %841 : vector<8x128xf32>
    %843 = arith.andi %826, %842 : vector<8x128xi1>
    %844 = arith.maximumf %821, %836 : vector<8x128xf32>
    %845 = arith.minimumf %822, %840 : vector<8x128xf32>
    %846 = arith.ori %823, %843 : vector<8x128xi1>
    %847 = arith.subf %780, %764 : vector<8x128xf32>
    %cst_200 = arith.constant 0.000000e+00 : f32
    %848 = vector.broadcast %cst_200 : f32 to vector<8x128xf32>
    %849 = arith.cmpf oeq, %847, %848 : vector<8x128xf32>
    %cst_201 = arith.constant 1.000000e+00 : f32
    %850 = vector.broadcast %cst_201 : f32 to vector<8x128xf32>
    %851 = arith.select %849, %850, %847 : vector<8x128xi1>, vector<8x128xf32>
    %cst_202 = arith.constant 0.000000e+00 : f32
    %852 = vector.broadcast %cst_202 : f32 to vector<8x128xf32>
    %853 = arith.subf %852, %764 : vector<8x128xf32>
    %854 = tpu.reciprocal %851 {approx = true} : vector<8x128xf32> -> vector<8x128xf32>
    %855 = arith.mulf %853, %854 : vector<8x128xf32>
    %cst_203 = arith.constant 0.000000e+00 : f32
    %856 = vector.broadcast %cst_203 : f32 to vector<8x128xf32>
    %857 = arith.cmpf ogt, %847, %856 : vector<8x128xf32>
    %cst_204 = arith.constant 0.000000e+00 : f32
    %858 = vector.broadcast %cst_204 : f32 to vector<8x128xf32>
    %859 = arith.select %857, %855, %858 : vector<8x128xi1>, vector<8x128xf32>
    %cst_205 = arith.constant 0.000000e+00 : f32
    %860 = vector.broadcast %cst_205 : f32 to vector<8x128xf32>
    %861 = arith.cmpf olt, %847, %860 : vector<8x128xf32>
    %cst_206 = arith.constant 1.000000e+00 : f32
    %862 = vector.broadcast %cst_206 : f32 to vector<8x128xf32>
    %863 = arith.select %861, %855, %862 : vector<8x128xi1>, vector<8x128xf32>
    %cst_207 = arith.constant 0.000000e+00 : f32
    %864 = vector.broadcast %cst_207 : f32 to vector<8x128xf32>
    %865 = arith.cmpf olt, %764, %864 : vector<8x128xf32>
    %866 = arith.andi %849, %865 : vector<8x128xi1>
    %867 = arith.maximumf %844, %859 : vector<8x128xf32>
    %868 = arith.minimumf %845, %863 : vector<8x128xf32>
    %869 = arith.ori %846, %866 : vector<8x128xi1>
    %cst_208 = arith.constant 0.000000e+00 : f32
    %870 = vector.broadcast %cst_208 : f32 to vector<8x128xf32>
    %871 = arith.maximumf %867, %870 : vector<8x128xf32>
    %cst_209 = arith.constant 1.000000e+00 : f32
    %872 = vector.broadcast %cst_209 : f32 to vector<8x128xf32>
    %873 = arith.minimumf %868, %872 : vector<8x128xf32>
    %cst_210 = arith.constant dense<true> : vector<8x128xi1>
    %874 = arith.xori %869, %cst_210 : vector<8x128xi1>
    %875 = arith.cmpf ole, %871, %873 : vector<8x128xf32>
    %876 = arith.andi %874, %875 : vector<8x128xi1>
    %877 = arith.subf %173, %169 : vector<8x128xf32>
    %878 = arith.subf %189, %185 : vector<8x128xf32>
    %879 = arith.mulf %871, %877 : vector<8x128xf32>
    %880 = arith.addf %169, %879 : vector<8x128xf32>
    %881 = arith.mulf %871, %878 : vector<8x128xf32>
    %882 = arith.addf %185, %881 : vector<8x128xf32>
    %883 = arith.mulf %873, %877 : vector<8x128xf32>
    %884 = arith.addf %169, %883 : vector<8x128xf32>
    %885 = arith.mulf %873, %878 : vector<8x128xf32>
    %886 = arith.addf %185, %885 : vector<8x128xf32>
    %887 = arith.mulf %880, %886 : vector<8x128xf32>
    %888 = arith.mulf %884, %882 : vector<8x128xf32>
    %889 = arith.subf %887, %888 : vector<8x128xf32>
    %cst_211 = arith.constant 0.000000e+00 : f32
    %890 = vector.broadcast %cst_211 : f32 to vector<8x128xf32>
    %891 = arith.select %876, %889, %890 : vector<8x128xi1>, vector<8x128xf32>
    %892 = arith.mulf %729, %193 : vector<8x128xf32>
    %893 = arith.mulf %730, %177 : vector<8x128xf32>
    %894 = arith.subf %892, %893 : vector<8x128xf32>
    %895 = arith.subf %894, %733 : vector<8x128xf32>
    %896 = arith.mulf %734, %193 : vector<8x128xf32>
    %897 = arith.mulf %735, %177 : vector<8x128xf32>
    %898 = arith.subf %896, %897 : vector<8x128xf32>
    %899 = arith.subf %898, %738 : vector<8x128xf32>
    %900 = arith.mulf %739, %193 : vector<8x128xf32>
    %901 = arith.mulf %740, %177 : vector<8x128xf32>
    %902 = arith.subf %900, %901 : vector<8x128xf32>
    %903 = arith.subf %902, %743 : vector<8x128xf32>
    %904 = arith.mulf %744, %193 : vector<8x128xf32>
    %905 = arith.mulf %745, %177 : vector<8x128xf32>
    %906 = arith.subf %904, %905 : vector<8x128xf32>
    %907 = arith.subf %906, %748 : vector<8x128xf32>
    %908 = arith.subf %895, %768 : vector<8x128xf32>
    %cst_212 = arith.constant 0.000000e+00 : f32
    %909 = vector.broadcast %cst_212 : f32 to vector<8x128xf32>
    %910 = arith.cmpf oeq, %908, %909 : vector<8x128xf32>
    %cst_213 = arith.constant 1.000000e+00 : f32
    %911 = vector.broadcast %cst_213 : f32 to vector<8x128xf32>
    %912 = arith.select %910, %911, %908 : vector<8x128xi1>, vector<8x128xf32>
    %cst_214 = arith.constant 0.000000e+00 : f32
    %913 = vector.broadcast %cst_214 : f32 to vector<8x128xf32>
    %914 = arith.subf %913, %768 : vector<8x128xf32>
    %915 = tpu.reciprocal %912 {approx = true} : vector<8x128xf32> -> vector<8x128xf32>
    %916 = arith.mulf %914, %915 : vector<8x128xf32>
    %cst_215 = arith.constant 0.000000e+00 : f32
    %917 = vector.broadcast %cst_215 : f32 to vector<8x128xf32>
    %918 = arith.cmpf ogt, %908, %917 : vector<8x128xf32>
    %cst_216 = arith.constant 0.000000e+00 : f32
    %919 = vector.broadcast %cst_216 : f32 to vector<8x128xf32>
    %920 = arith.select %918, %916, %919 : vector<8x128xi1>, vector<8x128xf32>
    %cst_217 = arith.constant 0.000000e+00 : f32
    %921 = vector.broadcast %cst_217 : f32 to vector<8x128xf32>
    %922 = arith.cmpf olt, %908, %921 : vector<8x128xf32>
    %cst_218 = arith.constant 1.000000e+00 : f32
    %923 = vector.broadcast %cst_218 : f32 to vector<8x128xf32>
    %924 = arith.select %922, %916, %923 : vector<8x128xi1>, vector<8x128xf32>
    %cst_219 = arith.constant 0.000000e+00 : f32
    %925 = vector.broadcast %cst_219 : f32 to vector<8x128xf32>
    %926 = arith.cmpf olt, %768, %925 : vector<8x128xf32>
    %927 = arith.andi %910, %926 : vector<8x128xi1>
    %928 = arith.subf %899, %772 : vector<8x128xf32>
    %cst_220 = arith.constant 0.000000e+00 : f32
    %929 = vector.broadcast %cst_220 : f32 to vector<8x128xf32>
    %930 = arith.cmpf oeq, %928, %929 : vector<8x128xf32>
    %cst_221 = arith.constant 1.000000e+00 : f32
    %931 = vector.broadcast %cst_221 : f32 to vector<8x128xf32>
    %932 = arith.select %930, %931, %928 : vector<8x128xi1>, vector<8x128xf32>
    %cst_222 = arith.constant 0.000000e+00 : f32
    %933 = vector.broadcast %cst_222 : f32 to vector<8x128xf32>
    %934 = arith.subf %933, %772 : vector<8x128xf32>
    %935 = tpu.reciprocal %932 {approx = true} : vector<8x128xf32> -> vector<8x128xf32>
    %936 = arith.mulf %934, %935 : vector<8x128xf32>
    %cst_223 = arith.constant 0.000000e+00 : f32
    %937 = vector.broadcast %cst_223 : f32 to vector<8x128xf32>
    %938 = arith.cmpf ogt, %928, %937 : vector<8x128xf32>
    %cst_224 = arith.constant 0.000000e+00 : f32
    %939 = vector.broadcast %cst_224 : f32 to vector<8x128xf32>
    %940 = arith.select %938, %936, %939 : vector<8x128xi1>, vector<8x128xf32>
    %cst_225 = arith.constant 0.000000e+00 : f32
    %941 = vector.broadcast %cst_225 : f32 to vector<8x128xf32>
    %942 = arith.cmpf olt, %928, %941 : vector<8x128xf32>
    %cst_226 = arith.constant 1.000000e+00 : f32
    %943 = vector.broadcast %cst_226 : f32 to vector<8x128xf32>
    %944 = arith.select %942, %936, %943 : vector<8x128xi1>, vector<8x128xf32>
    %cst_227 = arith.constant 0.000000e+00 : f32
    %945 = vector.broadcast %cst_227 : f32 to vector<8x128xf32>
    %946 = arith.cmpf olt, %772, %945 : vector<8x128xf32>
    %947 = arith.andi %930, %946 : vector<8x128xi1>
    %948 = arith.maximumf %920, %940 : vector<8x128xf32>
    %949 = arith.minimumf %924, %944 : vector<8x128xf32>
    %950 = arith.ori %927, %947 : vector<8x128xi1>
    %951 = arith.subf %903, %776 : vector<8x128xf32>
    %cst_228 = arith.constant 0.000000e+00 : f32
    %952 = vector.broadcast %cst_228 : f32 to vector<8x128xf32>
    %953 = arith.cmpf oeq, %951, %952 : vector<8x128xf32>
    %cst_229 = arith.constant 1.000000e+00 : f32
    %954 = vector.broadcast %cst_229 : f32 to vector<8x128xf32>
    %955 = arith.select %953, %954, %951 : vector<8x128xi1>, vector<8x128xf32>
    %cst_230 = arith.constant 0.000000e+00 : f32
    %956 = vector.broadcast %cst_230 : f32 to vector<8x128xf32>
    %957 = arith.subf %956, %776 : vector<8x128xf32>
    %958 = tpu.reciprocal %955 {approx = true} : vector<8x128xf32> -> vector<8x128xf32>
    %959 = arith.mulf %957, %958 : vector<8x128xf32>
    %cst_231 = arith.constant 0.000000e+00 : f32
    %960 = vector.broadcast %cst_231 : f32 to vector<8x128xf32>
    %961 = arith.cmpf ogt, %951, %960 : vector<8x128xf32>
    %cst_232 = arith.constant 0.000000e+00 : f32
    %962 = vector.broadcast %cst_232 : f32 to vector<8x128xf32>
    %963 = arith.select %961, %959, %962 : vector<8x128xi1>, vector<8x128xf32>
    %cst_233 = arith.constant 0.000000e+00 : f32
    %964 = vector.broadcast %cst_233 : f32 to vector<8x128xf32>
    %965 = arith.cmpf olt, %951, %964 : vector<8x128xf32>
    %cst_234 = arith.constant 1.000000e+00 : f32
    %966 = vector.broadcast %cst_234 : f32 to vector<8x128xf32>
    %967 = arith.select %965, %959, %966 : vector<8x128xi1>, vector<8x128xf32>
    %cst_235 = arith.constant 0.000000e+00 : f32
    %968 = vector.broadcast %cst_235 : f32 to vector<8x128xf32>
    %969 = arith.cmpf olt, %776, %968 : vector<8x128xf32>
    %970 = arith.andi %953, %969 : vector<8x128xi1>
    %971 = arith.maximumf %948, %963 : vector<8x128xf32>
    %972 = arith.minimumf %949, %967 : vector<8x128xf32>
    %973 = arith.ori %950, %970 : vector<8x128xi1>
    %974 = arith.subf %907, %780 : vector<8x128xf32>
    %cst_236 = arith.constant 0.000000e+00 : f32
    %975 = vector.broadcast %cst_236 : f32 to vector<8x128xf32>
    %976 = arith.cmpf oeq, %974, %975 : vector<8x128xf32>
    %cst_237 = arith.constant 1.000000e+00 : f32
    %977 = vector.broadcast %cst_237 : f32 to vector<8x128xf32>
    %978 = arith.select %976, %977, %974 : vector<8x128xi1>, vector<8x128xf32>
    %cst_238 = arith.constant 0.000000e+00 : f32
    %979 = vector.broadcast %cst_238 : f32 to vector<8x128xf32>
    %980 = arith.subf %979, %780 : vector<8x128xf32>
    %981 = tpu.reciprocal %978 {approx = true} : vector<8x128xf32> -> vector<8x128xf32>
    %982 = arith.mulf %980, %981 : vector<8x128xf32>
    %cst_239 = arith.constant 0.000000e+00 : f32
    %983 = vector.broadcast %cst_239 : f32 to vector<8x128xf32>
    %984 = arith.cmpf ogt, %974, %983 : vector<8x128xf32>
    %cst_240 = arith.constant 0.000000e+00 : f32
    %985 = vector.broadcast %cst_240 : f32 to vector<8x128xf32>
    %986 = arith.select %984, %982, %985 : vector<8x128xi1>, vector<8x128xf32>
    %cst_241 = arith.constant 0.000000e+00 : f32
    %987 = vector.broadcast %cst_241 : f32 to vector<8x128xf32>
    %988 = arith.cmpf olt, %974, %987 : vector<8x128xf32>
    %cst_242 = arith.constant 1.000000e+00 : f32
    %989 = vector.broadcast %cst_242 : f32 to vector<8x128xf32>
    %990 = arith.select %988, %982, %989 : vector<8x128xi1>, vector<8x128xf32>
    %cst_243 = arith.constant 0.000000e+00 : f32
    %991 = vector.broadcast %cst_243 : f32 to vector<8x128xf32>
    %992 = arith.cmpf olt, %780, %991 : vector<8x128xf32>
    %993 = arith.andi %976, %992 : vector<8x128xi1>
    %994 = arith.maximumf %971, %986 : vector<8x128xf32>
    %995 = arith.minimumf %972, %990 : vector<8x128xf32>
    %996 = arith.ori %973, %993 : vector<8x128xi1>
    %cst_244 = arith.constant 0.000000e+00 : f32
    %997 = vector.broadcast %cst_244 : f32 to vector<8x128xf32>
    %998 = arith.maximumf %994, %997 : vector<8x128xf32>
    %cst_245 = arith.constant 1.000000e+00 : f32
    %999 = vector.broadcast %cst_245 : f32 to vector<8x128xf32>
    %1000 = arith.minimumf %995, %999 : vector<8x128xf32>
    %cst_246 = arith.constant dense<true> : vector<8x128xi1>
    %1001 = arith.xori %996, %cst_246 : vector<8x128xi1>
    %1002 = arith.cmpf ole, %998, %1000 : vector<8x128xf32>
    %1003 = arith.andi %1001, %1002 : vector<8x128xi1>
    %1004 = arith.subf %177, %173 : vector<8x128xf32>
    %1005 = arith.subf %193, %189 : vector<8x128xf32>
    %1006 = arith.mulf %998, %1004 : vector<8x128xf32>
    %1007 = arith.addf %173, %1006 : vector<8x128xf32>
    %1008 = arith.mulf %998, %1005 : vector<8x128xf32>
    %1009 = arith.addf %189, %1008 : vector<8x128xf32>
    %1010 = arith.mulf %1000, %1004 : vector<8x128xf32>
    %1011 = arith.addf %173, %1010 : vector<8x128xf32>
    %1012 = arith.mulf %1000, %1005 : vector<8x128xf32>
    %1013 = arith.addf %189, %1012 : vector<8x128xf32>
    %1014 = arith.mulf %1007, %1013 : vector<8x128xf32>
    %1015 = arith.mulf %1011, %1009 : vector<8x128xf32>
    %1016 = arith.subf %1014, %1015 : vector<8x128xf32>
    %cst_247 = arith.constant 0.000000e+00 : f32
    %1017 = vector.broadcast %cst_247 : f32 to vector<8x128xf32>
    %1018 = arith.select %1003, %1016, %1017 : vector<8x128xi1>, vector<8x128xf32>
    %1019 = arith.addf %891, %1018 : vector<8x128xf32>
    %1020 = arith.mulf %729, %197 : vector<8x128xf32>
    %1021 = arith.mulf %730, %181 : vector<8x128xf32>
    %1022 = arith.subf %1020, %1021 : vector<8x128xf32>
    %1023 = arith.subf %1022, %733 : vector<8x128xf32>
    %1024 = arith.mulf %734, %197 : vector<8x128xf32>
    %1025 = arith.mulf %735, %181 : vector<8x128xf32>
    %1026 = arith.subf %1024, %1025 : vector<8x128xf32>
    %1027 = arith.subf %1026, %738 : vector<8x128xf32>
    %1028 = arith.mulf %739, %197 : vector<8x128xf32>
    %1029 = arith.mulf %740, %181 : vector<8x128xf32>
    %1030 = arith.subf %1028, %1029 : vector<8x128xf32>
    %1031 = arith.subf %1030, %743 : vector<8x128xf32>
    %1032 = arith.mulf %744, %197 : vector<8x128xf32>
    %1033 = arith.mulf %745, %181 : vector<8x128xf32>
    %1034 = arith.subf %1032, %1033 : vector<8x128xf32>
    %1035 = arith.subf %1034, %748 : vector<8x128xf32>
    %1036 = arith.subf %1023, %895 : vector<8x128xf32>
    %cst_248 = arith.constant 0.000000e+00 : f32
    %1037 = vector.broadcast %cst_248 : f32 to vector<8x128xf32>
    %1038 = arith.cmpf oeq, %1036, %1037 : vector<8x128xf32>
    %cst_249 = arith.constant 1.000000e+00 : f32
    %1039 = vector.broadcast %cst_249 : f32 to vector<8x128xf32>
    %1040 = arith.select %1038, %1039, %1036 : vector<8x128xi1>, vector<8x128xf32>
    %cst_250 = arith.constant 0.000000e+00 : f32
    %1041 = vector.broadcast %cst_250 : f32 to vector<8x128xf32>
    %1042 = arith.subf %1041, %895 : vector<8x128xf32>
    %1043 = tpu.reciprocal %1040 {approx = true} : vector<8x128xf32> -> vector<8x128xf32>
    %1044 = arith.mulf %1042, %1043 : vector<8x128xf32>
    %cst_251 = arith.constant 0.000000e+00 : f32
    %1045 = vector.broadcast %cst_251 : f32 to vector<8x128xf32>
    %1046 = arith.cmpf ogt, %1036, %1045 : vector<8x128xf32>
    %cst_252 = arith.constant 0.000000e+00 : f32
    %1047 = vector.broadcast %cst_252 : f32 to vector<8x128xf32>
    %1048 = arith.select %1046, %1044, %1047 : vector<8x128xi1>, vector<8x128xf32>
    %cst_253 = arith.constant 0.000000e+00 : f32
    %1049 = vector.broadcast %cst_253 : f32 to vector<8x128xf32>
    %1050 = arith.cmpf olt, %1036, %1049 : vector<8x128xf32>
    %cst_254 = arith.constant 1.000000e+00 : f32
    %1051 = vector.broadcast %cst_254 : f32 to vector<8x128xf32>
    %1052 = arith.select %1050, %1044, %1051 : vector<8x128xi1>, vector<8x128xf32>
    %cst_255 = arith.constant 0.000000e+00 : f32
    %1053 = vector.broadcast %cst_255 : f32 to vector<8x128xf32>
    %1054 = arith.cmpf olt, %895, %1053 : vector<8x128xf32>
    %1055 = arith.andi %1038, %1054 : vector<8x128xi1>
    %1056 = arith.subf %1027, %899 : vector<8x128xf32>
    %cst_256 = arith.constant 0.000000e+00 : f32
    %1057 = vector.broadcast %cst_256 : f32 to vector<8x128xf32>
    %1058 = arith.cmpf oeq, %1056, %1057 : vector<8x128xf32>
    %cst_257 = arith.constant 1.000000e+00 : f32
    %1059 = vector.broadcast %cst_257 : f32 to vector<8x128xf32>
    %1060 = arith.select %1058, %1059, %1056 : vector<8x128xi1>, vector<8x128xf32>
    %cst_258 = arith.constant 0.000000e+00 : f32
    %1061 = vector.broadcast %cst_258 : f32 to vector<8x128xf32>
    %1062 = arith.subf %1061, %899 : vector<8x128xf32>
    %1063 = tpu.reciprocal %1060 {approx = true} : vector<8x128xf32> -> vector<8x128xf32>
    %1064 = arith.mulf %1062, %1063 : vector<8x128xf32>
    %cst_259 = arith.constant 0.000000e+00 : f32
    %1065 = vector.broadcast %cst_259 : f32 to vector<8x128xf32>
    %1066 = arith.cmpf ogt, %1056, %1065 : vector<8x128xf32>
    %cst_260 = arith.constant 0.000000e+00 : f32
    %1067 = vector.broadcast %cst_260 : f32 to vector<8x128xf32>
    %1068 = arith.select %1066, %1064, %1067 : vector<8x128xi1>, vector<8x128xf32>
    %cst_261 = arith.constant 0.000000e+00 : f32
    %1069 = vector.broadcast %cst_261 : f32 to vector<8x128xf32>
    %1070 = arith.cmpf olt, %1056, %1069 : vector<8x128xf32>
    %cst_262 = arith.constant 1.000000e+00 : f32
    %1071 = vector.broadcast %cst_262 : f32 to vector<8x128xf32>
    %1072 = arith.select %1070, %1064, %1071 : vector<8x128xi1>, vector<8x128xf32>
    %cst_263 = arith.constant 0.000000e+00 : f32
    %1073 = vector.broadcast %cst_263 : f32 to vector<8x128xf32>
    %1074 = arith.cmpf olt, %899, %1073 : vector<8x128xf32>
    %1075 = arith.andi %1058, %1074 : vector<8x128xi1>
    %1076 = arith.maximumf %1048, %1068 : vector<8x128xf32>
    %1077 = arith.minimumf %1052, %1072 : vector<8x128xf32>
    %1078 = arith.ori %1055, %1075 : vector<8x128xi1>
    %1079 = arith.subf %1031, %903 : vector<8x128xf32>
    %cst_264 = arith.constant 0.000000e+00 : f32
    %1080 = vector.broadcast %cst_264 : f32 to vector<8x128xf32>
    %1081 = arith.cmpf oeq, %1079, %1080 : vector<8x128xf32>
    %cst_265 = arith.constant 1.000000e+00 : f32
    %1082 = vector.broadcast %cst_265 : f32 to vector<8x128xf32>
    %1083 = arith.select %1081, %1082, %1079 : vector<8x128xi1>, vector<8x128xf32>
    %cst_266 = arith.constant 0.000000e+00 : f32
    %1084 = vector.broadcast %cst_266 : f32 to vector<8x128xf32>
    %1085 = arith.subf %1084, %903 : vector<8x128xf32>
    %1086 = tpu.reciprocal %1083 {approx = true} : vector<8x128xf32> -> vector<8x128xf32>
    %1087 = arith.mulf %1085, %1086 : vector<8x128xf32>
    %cst_267 = arith.constant 0.000000e+00 : f32
    %1088 = vector.broadcast %cst_267 : f32 to vector<8x128xf32>
    %1089 = arith.cmpf ogt, %1079, %1088 : vector<8x128xf32>
    %cst_268 = arith.constant 0.000000e+00 : f32
    %1090 = vector.broadcast %cst_268 : f32 to vector<8x128xf32>
    %1091 = arith.select %1089, %1087, %1090 : vector<8x128xi1>, vector<8x128xf32>
    %cst_269 = arith.constant 0.000000e+00 : f32
    %1092 = vector.broadcast %cst_269 : f32 to vector<8x128xf32>
    %1093 = arith.cmpf olt, %1079, %1092 : vector<8x128xf32>
    %cst_270 = arith.constant 1.000000e+00 : f32
    %1094 = vector.broadcast %cst_270 : f32 to vector<8x128xf32>
    %1095 = arith.select %1093, %1087, %1094 : vector<8x128xi1>, vector<8x128xf32>
    %cst_271 = arith.constant 0.000000e+00 : f32
    %1096 = vector.broadcast %cst_271 : f32 to vector<8x128xf32>
    %1097 = arith.cmpf olt, %903, %1096 : vector<8x128xf32>
    %1098 = arith.andi %1081, %1097 : vector<8x128xi1>
    %1099 = arith.maximumf %1076, %1091 : vector<8x128xf32>
    %1100 = arith.minimumf %1077, %1095 : vector<8x128xf32>
    %1101 = arith.ori %1078, %1098 : vector<8x128xi1>
    %1102 = arith.subf %1035, %907 : vector<8x128xf32>
    %cst_272 = arith.constant 0.000000e+00 : f32
    %1103 = vector.broadcast %cst_272 : f32 to vector<8x128xf32>
    %1104 = arith.cmpf oeq, %1102, %1103 : vector<8x128xf32>
    %cst_273 = arith.constant 1.000000e+00 : f32
    %1105 = vector.broadcast %cst_273 : f32 to vector<8x128xf32>
    %1106 = arith.select %1104, %1105, %1102 : vector<8x128xi1>, vector<8x128xf32>
    %cst_274 = arith.constant 0.000000e+00 : f32
    %1107 = vector.broadcast %cst_274 : f32 to vector<8x128xf32>
    %1108 = arith.subf %1107, %907 : vector<8x128xf32>
    %1109 = tpu.reciprocal %1106 {approx = true} : vector<8x128xf32> -> vector<8x128xf32>
    %1110 = arith.mulf %1108, %1109 : vector<8x128xf32>
    %cst_275 = arith.constant 0.000000e+00 : f32
    %1111 = vector.broadcast %cst_275 : f32 to vector<8x128xf32>
    %1112 = arith.cmpf ogt, %1102, %1111 : vector<8x128xf32>
    %cst_276 = arith.constant 0.000000e+00 : f32
    %1113 = vector.broadcast %cst_276 : f32 to vector<8x128xf32>
    %1114 = arith.select %1112, %1110, %1113 : vector<8x128xi1>, vector<8x128xf32>
    %cst_277 = arith.constant 0.000000e+00 : f32
    %1115 = vector.broadcast %cst_277 : f32 to vector<8x128xf32>
    %1116 = arith.cmpf olt, %1102, %1115 : vector<8x128xf32>
    %cst_278 = arith.constant 1.000000e+00 : f32
    %1117 = vector.broadcast %cst_278 : f32 to vector<8x128xf32>
    %1118 = arith.select %1116, %1110, %1117 : vector<8x128xi1>, vector<8x128xf32>
    %cst_279 = arith.constant 0.000000e+00 : f32
    %1119 = vector.broadcast %cst_279 : f32 to vector<8x128xf32>
    %1120 = arith.cmpf olt, %907, %1119 : vector<8x128xf32>
    %1121 = arith.andi %1104, %1120 : vector<8x128xi1>
    %1122 = arith.maximumf %1099, %1114 : vector<8x128xf32>
    %1123 = arith.minimumf %1100, %1118 : vector<8x128xf32>
    %1124 = arith.ori %1101, %1121 : vector<8x128xi1>
    %cst_280 = arith.constant 0.000000e+00 : f32
    %1125 = vector.broadcast %cst_280 : f32 to vector<8x128xf32>
    %1126 = arith.maximumf %1122, %1125 : vector<8x128xf32>
    %cst_281 = arith.constant 1.000000e+00 : f32
    %1127 = vector.broadcast %cst_281 : f32 to vector<8x128xf32>
    %1128 = arith.minimumf %1123, %1127 : vector<8x128xf32>
    %cst_282 = arith.constant dense<true> : vector<8x128xi1>
    %1129 = arith.xori %1124, %cst_282 : vector<8x128xi1>
    %1130 = arith.cmpf ole, %1126, %1128 : vector<8x128xf32>
    %1131 = arith.andi %1129, %1130 : vector<8x128xi1>
    %1132 = arith.subf %181, %177 : vector<8x128xf32>
    %1133 = arith.subf %197, %193 : vector<8x128xf32>
    %1134 = arith.mulf %1126, %1132 : vector<8x128xf32>
    %1135 = arith.addf %177, %1134 : vector<8x128xf32>
    %1136 = arith.mulf %1126, %1133 : vector<8x128xf32>
    %1137 = arith.addf %193, %1136 : vector<8x128xf32>
    %1138 = arith.mulf %1128, %1132 : vector<8x128xf32>
    %1139 = arith.addf %177, %1138 : vector<8x128xf32>
    %1140 = arith.mulf %1128, %1133 : vector<8x128xf32>
    %1141 = arith.addf %193, %1140 : vector<8x128xf32>
    %1142 = arith.mulf %1135, %1141 : vector<8x128xf32>
    %1143 = arith.mulf %1139, %1137 : vector<8x128xf32>
    %1144 = arith.subf %1142, %1143 : vector<8x128xf32>
    %cst_283 = arith.constant 0.000000e+00 : f32
    %1145 = vector.broadcast %cst_283 : f32 to vector<8x128xf32>
    %1146 = arith.select %1131, %1144, %1145 : vector<8x128xi1>, vector<8x128xf32>
    %1147 = arith.addf %1019, %1146 : vector<8x128xf32>
    %1148 = arith.subf %752, %1023 : vector<8x128xf32>
    %cst_284 = arith.constant 0.000000e+00 : f32
    %1149 = vector.broadcast %cst_284 : f32 to vector<8x128xf32>
    %1150 = arith.cmpf oeq, %1148, %1149 : vector<8x128xf32>
    %cst_285 = arith.constant 1.000000e+00 : f32
    %1151 = vector.broadcast %cst_285 : f32 to vector<8x128xf32>
    %1152 = arith.select %1150, %1151, %1148 : vector<8x128xi1>, vector<8x128xf32>
    %cst_286 = arith.constant 0.000000e+00 : f32
    %1153 = vector.broadcast %cst_286 : f32 to vector<8x128xf32>
    %1154 = arith.subf %1153, %1023 : vector<8x128xf32>
    %1155 = tpu.reciprocal %1152 {approx = true} : vector<8x128xf32> -> vector<8x128xf32>
    %1156 = arith.mulf %1154, %1155 : vector<8x128xf32>
    %cst_287 = arith.constant 0.000000e+00 : f32
    %1157 = vector.broadcast %cst_287 : f32 to vector<8x128xf32>
    %1158 = arith.cmpf ogt, %1148, %1157 : vector<8x128xf32>
    %cst_288 = arith.constant 0.000000e+00 : f32
    %1159 = vector.broadcast %cst_288 : f32 to vector<8x128xf32>
    %1160 = arith.select %1158, %1156, %1159 : vector<8x128xi1>, vector<8x128xf32>
    %cst_289 = arith.constant 0.000000e+00 : f32
    %1161 = vector.broadcast %cst_289 : f32 to vector<8x128xf32>
    %1162 = arith.cmpf olt, %1148, %1161 : vector<8x128xf32>
    %cst_290 = arith.constant 1.000000e+00 : f32
    %1163 = vector.broadcast %cst_290 : f32 to vector<8x128xf32>
    %1164 = arith.select %1162, %1156, %1163 : vector<8x128xi1>, vector<8x128xf32>
    %cst_291 = arith.constant 0.000000e+00 : f32
    %1165 = vector.broadcast %cst_291 : f32 to vector<8x128xf32>
    %1166 = arith.cmpf olt, %1023, %1165 : vector<8x128xf32>
    %1167 = arith.andi %1150, %1166 : vector<8x128xi1>
    %1168 = arith.subf %756, %1027 : vector<8x128xf32>
    %cst_292 = arith.constant 0.000000e+00 : f32
    %1169 = vector.broadcast %cst_292 : f32 to vector<8x128xf32>
    %1170 = arith.cmpf oeq, %1168, %1169 : vector<8x128xf32>
    %cst_293 = arith.constant 1.000000e+00 : f32
    %1171 = vector.broadcast %cst_293 : f32 to vector<8x128xf32>
    %1172 = arith.select %1170, %1171, %1168 : vector<8x128xi1>, vector<8x128xf32>
    %cst_294 = arith.constant 0.000000e+00 : f32
    %1173 = vector.broadcast %cst_294 : f32 to vector<8x128xf32>
    %1174 = arith.subf %1173, %1027 : vector<8x128xf32>
    %1175 = tpu.reciprocal %1172 {approx = true} : vector<8x128xf32> -> vector<8x128xf32>
    %1176 = arith.mulf %1174, %1175 : vector<8x128xf32>
    %cst_295 = arith.constant 0.000000e+00 : f32
    %1177 = vector.broadcast %cst_295 : f32 to vector<8x128xf32>
    %1178 = arith.cmpf ogt, %1168, %1177 : vector<8x128xf32>
    %cst_296 = arith.constant 0.000000e+00 : f32
    %1179 = vector.broadcast %cst_296 : f32 to vector<8x128xf32>
    %1180 = arith.select %1178, %1176, %1179 : vector<8x128xi1>, vector<8x128xf32>
    %cst_297 = arith.constant 0.000000e+00 : f32
    %1181 = vector.broadcast %cst_297 : f32 to vector<8x128xf32>
    %1182 = arith.cmpf olt, %1168, %1181 : vector<8x128xf32>
    %cst_298 = arith.constant 1.000000e+00 : f32
    %1183 = vector.broadcast %cst_298 : f32 to vector<8x128xf32>
    %1184 = arith.select %1182, %1176, %1183 : vector<8x128xi1>, vector<8x128xf32>
    %cst_299 = arith.constant 0.000000e+00 : f32
    %1185 = vector.broadcast %cst_299 : f32 to vector<8x128xf32>
    %1186 = arith.cmpf olt, %1027, %1185 : vector<8x128xf32>
    %1187 = arith.andi %1170, %1186 : vector<8x128xi1>
    %1188 = arith.maximumf %1160, %1180 : vector<8x128xf32>
    %1189 = arith.minimumf %1164, %1184 : vector<8x128xf32>
    %1190 = arith.ori %1167, %1187 : vector<8x128xi1>
    %1191 = arith.subf %760, %1031 : vector<8x128xf32>
    %cst_300 = arith.constant 0.000000e+00 : f32
    %1192 = vector.broadcast %cst_300 : f32 to vector<8x128xf32>
    %1193 = arith.cmpf oeq, %1191, %1192 : vector<8x128xf32>
    %cst_301 = arith.constant 1.000000e+00 : f32
    %1194 = vector.broadcast %cst_301 : f32 to vector<8x128xf32>
    %1195 = arith.select %1193, %1194, %1191 : vector<8x128xi1>, vector<8x128xf32>
    %cst_302 = arith.constant 0.000000e+00 : f32
    %1196 = vector.broadcast %cst_302 : f32 to vector<8x128xf32>
    %1197 = arith.subf %1196, %1031 : vector<8x128xf32>
    %1198 = tpu.reciprocal %1195 {approx = true} : vector<8x128xf32> -> vector<8x128xf32>
    %1199 = arith.mulf %1197, %1198 : vector<8x128xf32>
    %cst_303 = arith.constant 0.000000e+00 : f32
    %1200 = vector.broadcast %cst_303 : f32 to vector<8x128xf32>
    %1201 = arith.cmpf ogt, %1191, %1200 : vector<8x128xf32>
    %cst_304 = arith.constant 0.000000e+00 : f32
    %1202 = vector.broadcast %cst_304 : f32 to vector<8x128xf32>
    %1203 = arith.select %1201, %1199, %1202 : vector<8x128xi1>, vector<8x128xf32>
    %cst_305 = arith.constant 0.000000e+00 : f32
    %1204 = vector.broadcast %cst_305 : f32 to vector<8x128xf32>
    %1205 = arith.cmpf olt, %1191, %1204 : vector<8x128xf32>
    %cst_306 = arith.constant 1.000000e+00 : f32
    %1206 = vector.broadcast %cst_306 : f32 to vector<8x128xf32>
    %1207 = arith.select %1205, %1199, %1206 : vector<8x128xi1>, vector<8x128xf32>
    %cst_307 = arith.constant 0.000000e+00 : f32
    %1208 = vector.broadcast %cst_307 : f32 to vector<8x128xf32>
    %1209 = arith.cmpf olt, %1031, %1208 : vector<8x128xf32>
    %1210 = arith.andi %1193, %1209 : vector<8x128xi1>
    %1211 = arith.maximumf %1188, %1203 : vector<8x128xf32>
    %1212 = arith.minimumf %1189, %1207 : vector<8x128xf32>
    %1213 = arith.ori %1190, %1210 : vector<8x128xi1>
    %1214 = arith.subf %764, %1035 : vector<8x128xf32>
    %cst_308 = arith.constant 0.000000e+00 : f32
    %1215 = vector.broadcast %cst_308 : f32 to vector<8x128xf32>
    %1216 = arith.cmpf oeq, %1214, %1215 : vector<8x128xf32>
    %cst_309 = arith.constant 1.000000e+00 : f32
    %1217 = vector.broadcast %cst_309 : f32 to vector<8x128xf32>
    %1218 = arith.select %1216, %1217, %1214 : vector<8x128xi1>, vector<8x128xf32>
    %cst_310 = arith.constant 0.000000e+00 : f32
    %1219 = vector.broadcast %cst_310 : f32 to vector<8x128xf32>
    %1220 = arith.subf %1219, %1035 : vector<8x128xf32>
    %1221 = tpu.reciprocal %1218 {approx = true} : vector<8x128xf32> -> vector<8x128xf32>
    %1222 = arith.mulf %1220, %1221 : vector<8x128xf32>
    %cst_311 = arith.constant 0.000000e+00 : f32
    %1223 = vector.broadcast %cst_311 : f32 to vector<8x128xf32>
    %1224 = arith.cmpf ogt, %1214, %1223 : vector<8x128xf32>
    %cst_312 = arith.constant 0.000000e+00 : f32
    %1225 = vector.broadcast %cst_312 : f32 to vector<8x128xf32>
    %1226 = arith.select %1224, %1222, %1225 : vector<8x128xi1>, vector<8x128xf32>
    %cst_313 = arith.constant 0.000000e+00 : f32
    %1227 = vector.broadcast %cst_313 : f32 to vector<8x128xf32>
    %1228 = arith.cmpf olt, %1214, %1227 : vector<8x128xf32>
    %cst_314 = arith.constant 1.000000e+00 : f32
    %1229 = vector.broadcast %cst_314 : f32 to vector<8x128xf32>
    %1230 = arith.select %1228, %1222, %1229 : vector<8x128xi1>, vector<8x128xf32>
    %cst_315 = arith.constant 0.000000e+00 : f32
    %1231 = vector.broadcast %cst_315 : f32 to vector<8x128xf32>
    %1232 = arith.cmpf olt, %1035, %1231 : vector<8x128xf32>
    %1233 = arith.andi %1216, %1232 : vector<8x128xi1>
    %1234 = arith.maximumf %1211, %1226 : vector<8x128xf32>
    %1235 = arith.minimumf %1212, %1230 : vector<8x128xf32>
    %1236 = arith.ori %1213, %1233 : vector<8x128xi1>
    %cst_316 = arith.constant 0.000000e+00 : f32
    %1237 = vector.broadcast %cst_316 : f32 to vector<8x128xf32>
    %1238 = arith.maximumf %1234, %1237 : vector<8x128xf32>
    %cst_317 = arith.constant 1.000000e+00 : f32
    %1239 = vector.broadcast %cst_317 : f32 to vector<8x128xf32>
    %1240 = arith.minimumf %1235, %1239 : vector<8x128xf32>
    %cst_318 = arith.constant dense<true> : vector<8x128xi1>
    %1241 = arith.xori %1236, %cst_318 : vector<8x128xi1>
    %1242 = arith.cmpf ole, %1238, %1240 : vector<8x128xf32>
    %1243 = arith.andi %1241, %1242 : vector<8x128xi1>
    %1244 = arith.subf %169, %181 : vector<8x128xf32>
    %1245 = arith.subf %185, %197 : vector<8x128xf32>
    %1246 = arith.mulf %1238, %1244 : vector<8x128xf32>
    %1247 = arith.addf %181, %1246 : vector<8x128xf32>
    %1248 = arith.mulf %1238, %1245 : vector<8x128xf32>
    %1249 = arith.addf %197, %1248 : vector<8x128xf32>
    %1250 = arith.mulf %1240, %1244 : vector<8x128xf32>
    %1251 = arith.addf %181, %1250 : vector<8x128xf32>
    %1252 = arith.mulf %1240, %1245 : vector<8x128xf32>
    %1253 = arith.addf %197, %1252 : vector<8x128xf32>
    %1254 = arith.mulf %1247, %1253 : vector<8x128xf32>
    %1255 = arith.mulf %1251, %1249 : vector<8x128xf32>
    %1256 = arith.subf %1254, %1255 : vector<8x128xf32>
    %cst_319 = arith.constant 0.000000e+00 : f32
    %1257 = vector.broadcast %cst_319 : f32 to vector<8x128xf32>
    %1258 = arith.select %1243, %1256, %1257 : vector<8x128xi1>, vector<8x128xf32>
    %1259 = arith.addf %1147, %1258 : vector<8x128xf32>
    %1260 = arith.addf %728, %1259 : vector<8x128xf32>
    %cst_320 = arith.constant 5.000000e-01 : f32
    %1261 = vector.broadcast %cst_320 : f32 to vector<8x128xf32>
    %1262 = arith.mulf %1261, %1260 : vector<8x128xf32>
    %1263 = arith.minimumf %32, %33 : vector<8x128xf32>
    %cst_321 = arith.constant 0.000000e+00 : f32
    %1264 = vector.broadcast %cst_321 : f32 to vector<8x128xf32>
    %1265 = arith.maximumf %1264, %1262 : vector<8x128xf32>
    %1266 = arith.minimumf %1263, %1265 : vector<8x128xf32>
    %1267 = arith.addf %32, %33 : vector<8x128xf32>
    %1268 = arith.subf %1267, %1266 : vector<8x128xf32>
    %cst_322 = arith.constant 9.99999993E-9 : f32
    %1269 = vector.broadcast %cst_322 : f32 to vector<8x128xf32>
    %1270 = arith.maximumf %1268, %1269 : vector<8x128xf32>
    %1271 = tpu.reciprocal %1270 {approx = true} : vector<8x128xf32> -> vector<8x128xf32>
    %1272 = arith.mulf %1266, %1271 : vector<8x128xf32>
    %cst_323 = arith.constant 9.99999997E-7 : f32
    %1273 = vector.broadcast %cst_323 : f32 to vector<8x128xf32>
    %1274 = arith.maximumf %1272, %1273 : vector<8x128xf32>
    %cst_324 = arith.constant 1.000000e+00 : f32
    %1275 = vector.broadcast %cst_324 : f32 to vector<8x128xf32>
    %1276 = arith.subf %1275, %1274 : vector<8x128xf32>
    %1277 = arith.addf %1276, %165 : vector<8x128xf32>
    %1278 = arith.index_cast %1 : i32 to index
    %c0_325 = arith.constant 0 : index
    %1279 = vector.load %arg3[%1278, %c0_325] : memref<8x128xf32, #tpu.memory_space<vmem>>, vector<8x128xf32>
    tpu.vector_store %arg3[%1278, %c0_325], %1277 {strides = array<i32>} : memref<8x128xf32, #tpu.memory_space<vmem>>, vector<8x128xf32>,
    %c1_i32 = arith.constant 1 : i32
    return
  }
  func.func @transform_0(%arg0: i32) -> (i32, i32, i32) {
    %c0_i32 = arith.constant 0 : i32
    %c0_i32_0 = arith.constant 0 : i32
    %c0_i32_1 = arith.constant 0 : i32
    return %c0_i32, %arg0, %c0_i32_0 : i32, i32, i32
  }
  func.func @transform_1(%arg0: i32) -> (i32, i32, i32) {
    %c0_i32 = arith.constant 0 : i32
    %c0_i32_0 = arith.constant 0 : i32
    %c0_i32_1 = arith.constant 0 : i32
    return %c0_i32, %arg0, %c0_i32_0 : i32, i32, i32
  }
  func.func @transform_2(%arg0: i32) -> (i32, i32) {
    %c0_i32 = arith.constant 0 : i32
    %c0_i32_0 = arith.constant 0 : i32
    return %arg0, %c0_i32 : i32, i32
  }
}

</mosaic_0001>

<llo_original>
// kernel: tpu_custom_call.1
$region0: #{tpu_custom_call.1}
  #allocation0 [shape = 'u32[]', space=smem, size = 0x4, offset = 0x4, fixed_abs, tag = 'smem constant byte address 0x4 - core index']
  #allocation1 [shape = 'u32[144,128]{1,0:T(1,128)}', space=vmem, size = 0x12000, scoped, tag = 'internal scratch']
  %s0 = inlined_call_operand.hbm [shape: f32[5,8,128], index: 0, kind: input, shape index: {}]
  %s1 = inlined_call_operand.hbm [shape: f32[5,8,128], index: 1, kind: input, shape index: {}]
  %s2 = inlined_call_operand.hbm [shape: f32[8,128], index: 2, kind: output, shape index: {}]
  %s3 = sld [smem:[#allocation0]]
  $region26: #{tpu_custom_call.1} parent=0
    _
  %s5 = ssub.s32 1, %s3
  %s6 = scalar_select 0, %s5, %s3
  $region1: #{tpu_custom_call.1} parent=0
    #allocation2 [shape = 'u8[20480]{0}', space=vmem, size = 0x5000, scoped, tag = 'input window, operand 0, single buffered']
    #allocation3 [shape = 's32[1]{0}', space=sflag, size = 0x4, scoped, tag = 'scoped memory for tpu_custom_call.1']
    #allocation4 [shape = 's32[1]{0}', space=sflag, size = 0x4, scoped, tag = 'scoped memory for tpu_custom_call.1']
    #allocation5 [shape = 'u8[20480]{0}', space=vmem, size = 0x5000, scoped, tag = 'input window, operand 1, single buffered']
    #allocation6 [shape = 's32[1]{0}', space=sflag, size = 0x4, scoped, tag = 'scoped memory for tpu_custom_call.1']
    #allocation7 [shape = 'u8[4096]{0}', space=vmem, size = 0x1000, scoped, tag = 'output window, operand 0, single buffered']
    %7 = vsyncpa [#allocation3], 0
    %8 = vsyncpa [#allocation6], 0
    %9 = vsyncpa [#allocation4], 0
    // Predicated region
    $region2: #{tpu_custom_call.1} parent=1 // pred_check
      _
    $region3: #{tpu_custom_call.1} parent=1 // pred_check_branch
      %11 = sbr.rel (0) target = $region5
    $region4: #{tpu_custom_call.1} parent=1 // pred_region
      %s13 = ssub.s32 640, 640
      %14 = vsyncadd [#allocation3], %s13
      %s15 = sshll.u32 [#allocation2], 4
      %s16 = int_to_ptr.vmem [resolvable:$true] %s15
      %21 = dma.hbm_to_vmem [thread:$0]  %s0, 640, %s16, [#allocation3], 128, 128, 8
    $region5: #{tpu_custom_call.1} parent=1 // pred_fallthru
      _
    // Predicated region
    $region6: #{tpu_custom_call.1} parent=1 // pred_check
      _
    $region7: #{tpu_custom_call.1} parent=1 // pred_check_branch
      %23 = sbr.rel (0) target = $region9
    $region8: #{tpu_custom_call.1} parent=1 // pred_region
      %s25 = ssub.s32 640, 640
      %26 = vsyncadd [#allocation6], %s25
      %s27 = sshll.u32 [#allocation5], 4
      %s28 = int_to_ptr.vmem [resolvable:$true] %s27
      %33 = dma.hbm_to_vmem [thread:$0]  %s1, 640, %s28, [#allocation6], 128, 128, 8
    $region9: #{tpu_custom_call.1} parent=1 // pred_fallthru
      _
    // Predicated region
    $region10: #{tpu_custom_call.1} parent=1 // pred_check
      _
    $region11: #{tpu_custom_call.1} parent=1 // pred_check_branch
      %35 = sbr.rel (0) target = $region13
    $region12: #{tpu_custom_call.1} parent=1 // pred_region
      %36 = dma.done [#allocation3], 640
    $region13: #{tpu_custom_call.1} parent=1 // pred_fallthru
      _
    // Predicated region
    $region14: #{tpu_custom_call.1} parent=1 // pred_check
      _
    $region15: #{tpu_custom_call.1} parent=1 // pred_check_branch
      %38 = sbr.rel (0) target = $region17
    $region16: #{tpu_custom_call.1} parent=1 // pred_region
      %39 = dma.done [#allocation6], 640
    $region17: #{tpu_custom_call.1} parent=1 // pred_fallthru
      _
    %v40 = vld [vmem:[#allocation2] sm:$0xff]
    %s41 = sadd.s32 0, 8
    %s42 = scalar_lea.vmem [#allocation2], %s41
    %v43 = vld [vmem:[%s42] sm:$0xff]
    %s44 = sadd.s32 0, 16
    %s45 = scalar_lea.vmem [#allocation2], %s44
    %v46 = vld [vmem:[%s45] sm:$0xff]
    %s47 = sadd.s32 0, 24
    %s48 = scalar_lea.vmem [#allocation2], %s47
    %v49 = vld [vmem:[%s48] sm:$0xff]
    %s50 = sadd.s32 0, 32
    %s51 = scalar_lea.vmem [#allocation2], %s50
    %v52 = vld [vmem:[%s51] sm:$0xff]
    %v53 = vld [vmem:[#allocation5] sm:$0xff]
    %s54 = scalar_lea.vmem [#allocation5], %s41
    %v55 = vld [vmem:[%s54] sm:$0xff]
    %s56 = scalar_lea.vmem [#allocation5], %s44
    %v57 = vld [vmem:[%s56] sm:$0xff]
    %s58 = scalar_lea.vmem [#allocation5], %s47
    %v59 = vld [vmem:[%s58] sm:$0xff]
    %s60 = scalar_lea.vmem [#allocation5], %s50
    %v61 = vld [vmem:[%s60] sm:$0xff]
    %v62 = vmul.f32 %v46, %v49
    %v63 = vmul.f32 %v57, %v59
    %v64 = vand.u32 2147483647, %v52
    %vm65 = vcmp.le.f32.partialorder %v64, 0.7853982
    %vm66 = vcmp.lt.s32.totalorder %v52, 0
    %v67 = vand.u32 %v52, 2139095040
    %v68 = vshrl.u32 %v67, 23
    %v69 = vsub.s32 %v68, 127
    %v70 = vand.u32 2147483647, %v52
    %v71 = vand.u32 %v70, 8388607
    %v72 = vor.u32 %v71, 8388608
    %v73 = vsub.s32 0, %v72
    %v74 = vadd.s32 %v69, 1
    %vm75 = vcmp.gt.s32.totalorder %v74, 0
    %v76 = vsel %vm75, %v74, 0
    %v77 = vshrl.u32 %v76, 5
    %v78 = vand.u32 %v76, 31
    %v79 = vsub.s32 32, %v78
    %v80 = vshrl.u32 683565275, %v79
    %v81 = vshll.u32 683565275, %v78
    %v82 = vshrl.u32 2475754826, %v79
    %v83 = vor.u32 %v81, %v82
    %v84 = vshll.u32 2475754826, %v78
    %v85 = vshrl.u32 2131351028, %v79
    %v86 = vor.u32 %v84, %v85
    %v87 = vshll.u32 2131351028, %v78
    %v88 = vshrl.u32 2102212464, %v79
    %v89 = vor.u32 %v87, %v88
    %v90 = vshll.u32 2102212464, %v78
    %v91 = vshrl.u32 920167782, %v79
    %v92 = vor.u32 %v90, %v91
    %v93 = vshll.u32 920167782, %v78
    %v94 = vshrl.u32 1326507024, %v79
    %v95 = vor.u32 %v93, %v94
    %vm96 = vcmp.lt.s32.totalorder %v77, 1
    %vm97 = vcmp.lt.s32.totalorder %v77, 2
    %vm98 = vcmp.lt.s32.totalorder %v77, 3
    %vm99 = vcmp.lt.s32.totalorder %v77, 4
    %v100 = vsel %vm96, %v80, %v83
    %v101 = vsel %vm99, %v89, 2102212464
    %v102 = vsel %vm98, %v86, %v101
    %v103 = vsel %vm97, %v100, %v102
    %v104 = vsel %vm96, %v83, %v86
    %v105 = vsel %vm99, %v92, 920167782
    %v106 = vsel %vm98, %v89, %v105
    %v107 = vsel %vm97, %v104, %v106
    %v108 = vsel %vm96, %v86, %v89
    %v109 = vsel %vm99, %v95, 1326507024
    %v110 = vsel %vm98, %v92, %v109
    %v111 = vsel %vm97, %v108, %v110
    %v112 = vshll.u32 %v72, 8
    %v113 = vmul.u32.u64.compose %v112, %v111
    %v114 = vextract.low.u32 %v113
    %v115 = vextract.high.u32 %v113
    %v116 = vmul.u32.u64.compose %v112, %v107
    %v117 = vextract.low.u32 %v116
    %v118 = vextract.high.u32 %v116
    %v119 = vmul.u32 %v112, %v103
    %v120 = vadd.s32 %v115, %v117
    %vm121 = vc.u32 %v115, %v117
    %v122 = vadd.s32 %v118, 1
    %v123 = vsel %vm121, %v122, %v118
    %v124 = vadd.s32 %v119, %v123
    %v125 = vadd.s32 %v124, 536870912
    %v126 = vshrl.u32 %v125, 30
    %v127 = vshll.u32 %v126, 30
    %v128 = vsub.s32 %v124, %v127
    %vm129 = vcmp.lt.s32.totalorder %v128, 0
    %v130 = vsub.s32 0, %v128
    %v131 = vsel %vm129, %v130, %v128
    %v132 = vclz %v131
    %v133 = vsub.s32 %v132, 2
    %vm134 = vcmp.gt.s32.totalorder 0, %v133
    %v135 = vsel %vm134, 0, %v133
    %v136 = vsub.s32 32, %v135
    %v137 = vshll.u32 %v128, %v135
    %v138 = vshrl.u32 %v120, %v136
    %v139 = vor.u32 %v137, %v138
    %v140 = vsub.s32 4294967266, %v135
    %v141 = vadd.s32 %v140, 127
    %v142 = vshll.u32 %v141, 23
    %v143 = vor.u32 4788187, %v142
    %v144 = vand.u32 2147483647, %v143
    %v146 = vcvt.s32.f32 %v139
    %v147 = vmul.f32 %v146, %v144
    %v148 = vxor.u32 %v147, 2147483648
    %v149 = vsel %vm66, %v148, %v147
    %v150 = vsub.s32 4, %v126
    %v151 = vsel %vm66, %v150, %v126
    %v152 = vsel %vm65, %v52, %v149
    %v153 = vsel %vm65, 0, %v151
    %v154 = vcosq.f32.pop %v152
    %v155 = vsinq.f32.pop %v152
    %vm156 = vweird.f32 %v52
    %v157 = vand.u32 %v153, 3
    %vm158 = vcmp.lt.s32.totalorder %v157, 2
    %vm159 = vcmp.eq.s32.totalorder %v157, 0
    %v160 = vxor.u32 %v155, 2147483648
    %v161 = vsel %vm159, %v154, %v160
    %vm162 = vcmp.eq.s32.totalorder %v157, 2
    %v163 = vxor.u32 %v154, 2147483648
    %v164 = vsel %vm162, %v163, %v155
    %v165 = vsel %vm158, %v161, %v164
    %v166 = vsel %vm156, nan, %v165
    %v167 = vand.u32 2147483647, %v52
    %vm168 = vcmp.le.f32.partialorder %v167, 0.7853982
    %vm169 = vcmp.lt.s32.totalorder %v52, 0
    %v170 = vand.u32 %v52, 2139095040
    %v171 = vshrl.u32 %v170, 23
    %v172 = vsub.s32 %v171, 127
    %v173 = vand.u32 2147483647, %v52
    %v174 = vand.u32 %v173, 8388607
    %v175 = vor.u32 %v174, 8388608
    %v176 = vsub.s32 0, %v175
    %v177 = vadd.s32 %v172, 1
    %vm178 = vcmp.gt.s32.totalorder %v177, 0
    %v179 = vsel %vm178, %v177, 0
    %v180 = vshrl.u32 %v179, 5
    %v181 = vand.u32 %v179, 31
    %v182 = vsub.s32 32, %v181
    %v183 = vshrl.u32 683565275, %v182
    %v184 = vshll.u32 683565275, %v181
    %v185 = vshrl.u32 2475754826, %v182
    %v186 = vor.u32 %v184, %v185
    %v187 = vshll.u32 2475754826, %v181
    %v188 = vshrl.u32 2131351028, %v182
    %v189 = vor.u32 %v187, %v188
    %v190 = vshll.u32 2131351028, %v181
    %v191 = vshrl.u32 2102212464, %v182
    %v192 = vor.u32 %v190, %v191
    %v193 = vshll.u32 2102212464, %v181
    %v194 = vshrl.u32 920167782, %v182
    %v195 = vor.u32 %v193, %v194
    %v196 = vshll.u32 920167782, %v181
    %v197 = vshrl.u32 1326507024, %v182
    %v198 = vor.u32 %v196, %v197
    %vm199 = vcmp.lt.s32.totalorder %v180, 1
    %vm200 = vcmp.lt.s32.totalorder %v180, 2
    %vm201 = vcmp.lt.s32.totalorder %v180, 3
    %vm202 = vcmp.lt.s32.totalorder %v180, 4
    %v203 = vsel %vm199, %v183, %v186
    %v204 = vsel %vm202, %v192, 2102212464
    %v205 = vsel %vm201, %v189, %v204
    %v206 = vsel %vm200, %v203, %v205
    %v207 = vsel %vm199, %v186, %v189
    %v208 = vsel %vm202, %v195, 920167782
    %v209 = vsel %vm201, %v192, %v208
    %v210 = vsel %vm200, %v207, %v209
    %v211 = vsel %vm199, %v189, %v192
    %v212 = vsel %vm202, %v198, 1326507024
    %v213 = vsel %vm201, %v195, %v212
    %v214 = vsel %vm200, %v211, %v213
    %v215 = vshll.u32 %v175, 8
    %v216 = vmul.u32.u64.compose %v215, %v214
    %v217 = vextract.low.u32 %v216
    %v218 = vextract.high.u32 %v216
    %v219 = vmul.u32.u64.compose %v215, %v210
    %v220 = vextract.low.u32 %v219
    %v221 = vextract.high.u32 %v219
    %v222 = vmul.u32 %v215, %v206
    %v223 = vadd.s32 %v218, %v220
    %vm224 = vc.u32 %v218, %v220
    %v225 = vadd.s32 %v221, 1
    %v226 = vsel %vm224, %v225, %v221
    %v227 = vadd.s32 %v222, %v226
    %v228 = vadd.s32 %v227, 536870912
    %v229 = vshrl.u32 %v228, 30
    %v230 = vshll.u32 %v229, 30
    %v231 = vsub.s32 %v227, %v230
    %vm232 = vcmp.lt.s32.totalorder %v231, 0
    %v233 = vsub.s32 0, %v231
    %v234 = vsel %vm232, %v233, %v231
    %v235 = vclz %v234
    %v236 = vsub.s32 %v235, 2
    %vm237 = vcmp.gt.s32.totalorder 0, %v236
    %v238 = vsel %vm237, 0, %v236
    %v239 = vsub.s32 32, %v238
    %v240 = vshll.u32 %v231, %v238
    %v241 = vshrl.u32 %v223, %v239
    %v242 = vor.u32 %v240, %v241
    %v243 = vsub.s32 4294967266, %v238
    %v244 = vadd.s32 %v243, 127
    %v245 = vshll.u32 %v244, 23
    %v246 = vor.u32 4788187, %v245
    %v247 = vand.u32 2147483647, %v246
    %v249 = vcvt.s32.f32 %v242
    %v250 = vmul.f32 %v249, %v247
    %v251 = vxor.u32 %v250, 2147483648
    %v252 = vsel %vm169, %v251, %v250
    %v253 = vsub.s32 4, %v229
    %v254 = vsel %vm169, %v253, %v229
    %v255 = vsel %vm168, %v52, %v252
    %v256 = vsel %vm168, 0, %v254
    %v257 = vcosq.f32.pop %v255
    %v258 = vsinq.f32.pop %v255
    %vm259 = vweird.f32 %v52
    %v260 = vadd.s32 %v256, 3
    %v261 = vand.u32 %v260, 3
    %vm262 = vcmp.lt.s32.totalorder %v261, 2
    %vm263 = vcmp.eq.s32.totalorder %v261, 0
    %v264 = vxor.u32 %v258, 2147483648
    %v265 = vsel %vm263, %v257, %v264
    %vm266 = vcmp.eq.s32.totalorder %v261, 2
    %v267 = vxor.u32 %v257, 2147483648
    %v268 = vsel %vm266, %v267, %v258
    %v269 = vsel %vm262, %v265, %v268
    %v270 = vsel %vm259, nan, %v269
    %v271 = vmul.f32 %v46, 0.5
    %v272 = vmul.f32 %v271, %v166
    %v273 = vmul.f32 %v271, %v270
    %v274 = vmul.f32 %v49, 0.5
    %v275 = vmul.f32 %v274, %v166
    %v276 = vmul.f32 %v274, %v270
    %v277 = vadd.f32 %v40, %v272
    %v278 = vsub.f32 %v277, %v276
    %v279 = vsub.f32 %v40, %v272
    %v280 = vsub.f32 %v279, %v276
    %v281 = vadd.f32 %v279, %v276
    %v282 = vadd.f32 %v277, %v276
    %v283 = vadd.f32 %v43, %v273
    %v284 = vadd.f32 %v283, %v275
    %v285 = vsub.f32 %v43, %v273
    %v286 = vadd.f32 %v285, %v275
    %v287 = vsub.f32 %v285, %v275
    %v288 = vsub.f32 %v283, %v275
    %v289 = vand.u32 2147483647, %v61
    %vm290 = vcmp.le.f32.partialorder %v289, 0.7853982
    %vm291 = vcmp.lt.s32.totalorder %v61, 0
    %v292 = vand.u32 %v61, 2139095040
    %v293 = vshrl.u32 %v292, 23
    %v294 = vsub.s32 %v293, 127
    %v295 = vand.u32 2147483647, %v61
    %v296 = vand.u32 %v295, 8388607
    %v297 = vor.u32 %v296, 8388608
    %v298 = vsub.s32 0, %v297
    %v299 = vadd.s32 %v294, 1
    %vm300 = vcmp.gt.s32.totalorder %v299, 0
    %v301 = vsel %vm300, %v299, 0
    %v302 = vshrl.u32 %v301, 5
    %v303 = vand.u32 %v301, 31
    %v304 = vsub.s32 32, %v303
    %v305 = vshrl.u32 683565275, %v304
    %v306 = vshll.u32 683565275, %v303
    %v307 = vshrl.u32 2475754826, %v304
    %v308 = vor.u32 %v306, %v307
    %v309 = vshll.u32 2475754826, %v303
    %v310 = vshrl.u32 2131351028, %v304
    %v311 = vor.u32 %v309, %v310
    %v312 = vshll.u32 2131351028, %v303
    %v313 = vshrl.u32 2102212464, %v304
    %v314 = vor.u32 %v312, %v313
    %v315 = vshll.u32 2102212464, %v303
    %v316 = vshrl.u32 920167782, %v304
    %v317 = vor.u32 %v315, %v316
    %v318 = vshll.u32 920167782, %v303
    %v319 = vshrl.u32 1326507024, %v304
    %v320 = vor.u32 %v318, %v319
    %vm321 = vcmp.lt.s32.totalorder %v302, 1
    %vm322 = vcmp.lt.s32.totalorder %v302, 2
    %vm323 = vcmp.lt.s32.totalorder %v302, 3
    %vm324 = vcmp.lt.s32.totalorder %v302, 4
    %v325 = vsel %vm321, %v305, %v308
    %v326 = vsel %vm324, %v314, 2102212464
    %v327 = vsel %vm323, %v311, %v326
    %v328 = vsel %vm322, %v325, %v327
    %v329 = vsel %vm321, %v308, %v311
    %v330 = vsel %vm324, %v317, 920167782
    %v331 = vsel %vm323, %v314, %v330
    %v332 = vsel %vm322, %v329, %v331
    %v333 = vsel %vm321, %v311, %v314
    %v334 = vsel %vm324, %v320, 1326507024
    %v335 = vsel %vm323, %v317, %v334
    %v336 = vsel %vm322, %v333, %v335
    %v337 = vshll.u32 %v297, 8
    %v338 = vmul.u32.u64.compose %v337, %v336
    %v339 = vextract.low.u32 %v338
    %v340 = vextract.high.u32 %v338
    %v341 = vmul.u32.u64.compose %v337, %v332
    %v342 = vextract.low.u32 %v341
    %v343 = vextract.high.u32 %v341
    %v344 = vmul.u32 %v337, %v328
    %v345 = vadd.s32 %v340, %v342
    %vm346 = vc.u32 %v340, %v342
    %v347 = vadd.s32 %v343, 1
    %v348 = vsel %vm346, %v347, %v343
    %v349 = vadd.s32 %v344, %v348
    %v350 = vadd.s32 %v349, 536870912
    %v351 = vshrl.u32 %v350, 30
    %v352 = vshll.u32 %v351, 30
    %v353 = vsub.s32 %v349, %v352
    %vm354 = vcmp.lt.s32.totalorder %v353, 0
    %v355 = vsub.s32 0, %v353
    %v356 = vsel %vm354, %v355, %v353
    %v357 = vclz %v356
    %v358 = vsub.s32 %v357, 2
    %vm359 = vcmp.gt.s32.totalorder 0, %v358
    %v360 = vsel %vm359, 0, %v358
    %v361 = vsub.s32 32, %v360
    %v362 = vshll.u32 %v353, %v360
    %v363 = vshrl.u32 %v345, %v361
    %v364 = vor.u32 %v362, %v363
    %v365 = vsub.s32 4294967266, %v360
    %v366 = vadd.s32 %v365, 127
    %v367 = vshll.u32 %v366, 23
    %v368 = vor.u32 4788187, %v367
    %v369 = vand.u32 2147483647, %v368
    %v371 = vcvt.s32.f32 %v364
    %v372 = vmul.f32 %v371, %v369
    %v373 = vxor.u32 %v372, 2147483648
    %v374 = vsel %vm291, %v373, %v372
    %v375 = vsub.s32 4, %v351
    %v376 = vsel %vm291, %v375, %v351
    %v377 = vsel %vm290, %v61, %v374
    %v378 = vsel %vm290, 0, %v376
    %v379 = vcosq.f32.pop %v377
    %v380 = vsinq.f32.pop %v377
    %vm381 = vweird.f32 %v61
    %v382 = vand.u32 %v378, 3
    %vm383 = vcmp.lt.s32.totalorder %v382, 2
    %vm384 = vcmp.eq.s32.totalorder %v382, 0
    %v385 = vxor.u32 %v380, 2147483648
    %v386 = vsel %vm384, %v379, %v385
    %vm387 = vcmp.eq.s32.totalorder %v382, 2
    %v388 = vxor.u32 %v379, 2147483648
    %v389 = vsel %vm387, %v388, %v380
    %v390 = vsel %vm383, %v386, %v389
    %v391 = vsel %vm381, nan, %v390
    %v392 = vand.u32 2147483647, %v61
    %vm393 = vcmp.le.f32.partialorder %v392, 0.7853982
    %vm394 = vcmp.lt.s32.totalorder %v61, 0
    %v395 = vand.u32 %v61, 2139095040
    %v396 = vshrl.u32 %v395, 23
    %v397 = vsub.s32 %v396, 127
    %v398 = vand.u32 2147483647, %v61
    %v399 = vand.u32 %v398, 8388607
    %v400 = vor.u32 %v399, 8388608
    %v401 = vsub.s32 0, %v400
    %v402 = vadd.s32 %v397, 1
    %vm403 = vcmp.gt.s32.totalorder %v402, 0
    %v404 = vsel %vm403, %v402, 0
    %v405 = vshrl.u32 %v404, 5
    %v406 = vand.u32 %v404, 31
    %v407 = vsub.s32 32, %v406
    %v408 = vshrl.u32 683565275, %v407
    %v409 = vshll.u32 683565275, %v406
    %v410 = vshrl.u32 2475754826, %v407
    %v411 = vor.u32 %v409, %v410
    %v412 = vshll.u32 2475754826, %v406
    %v413 = vshrl.u32 2131351028, %v407
    %v414 = vor.u32 %v412, %v413
    %v415 = vshll.u32 2131351028, %v406
    %v416 = vshrl.u32 2102212464, %v407
    %v417 = vor.u32 %v415, %v416
    %v418 = vshll.u32 2102212464, %v406
    %v419 = vshrl.u32 920167782, %v407
    %v420 = vor.u32 %v418, %v419
    %v421 = vshll.u32 920167782, %v406
    %v422 = vshrl.u32 1326507024, %v407
    %v423 = vor.u32 %v421, %v422
    %vm424 = vcmp.lt.s32.totalorder %v405, 1
    %vm425 = vcmp.lt.s32.totalorder %v405, 2
    %vm426 = vcmp.lt.s32.totalorder %v405, 3
    %vm427 = vcmp.lt.s32.totalorder %v405, 4
    %v428 = vsel %vm424, %v408, %v411
    %v429 = vsel %vm427, %v417, 2102212464
    %v430 = vsel %vm426, %v414, %v429
    %v431 = vsel %vm425, %v428, %v430
    %v432 = vsel %vm424, %v411, %v414
    %v433 = vsel %vm427, %v420, 920167782
    %v434 = vsel %vm426, %v417, %v433
    %v435 = vsel %vm425, %v432, %v434
    %v436 = vsel %vm424, %v414, %v417
    %v437 = vsel %vm427, %v423, 1326507024
    %v438 = vsel %vm426, %v420, %v437
    %v439 = vsel %vm425, %v436, %v438
    %v440 = vshll.u32 %v400, 8
    %v441 = vmul.u32.u64.compose %v440, %v439
    %v442 = vextract.low.u32 %v441
    %v443 = vextract.high.u32 %v441
    %v444 = vmul.u32.u64.compose %v440, %v435
    %v445 = vextract.low.u32 %v444
    %v446 = vextract.high.u32 %v444
    %v447 = vmul.u32 %v440, %v431
    %v448 = vadd.s32 %v443, %v445
    %vm449 = vc.u32 %v443, %v445
    %v450 = vadd.s32 %v446, 1
    %v451 = vsel %vm449, %v450, %v446
    %v452 = vadd.s32 %v447, %v451
    %v453 = vadd.s32 %v452, 536870912
    %v454 = vshrl.u32 %v453, 30
    %v455 = vshll.u32 %v454, 30
    %v456 = vsub.s32 %v452, %v455
    %vm457 = vcmp.lt.s32.totalorder %v456, 0
    %v458 = vsub.s32 0, %v456
    %v459 = vsel %vm457, %v458, %v456
    %v460 = vclz %v459
    %v461 = vsub.s32 %v460, 2
    %vm462 = vcmp.gt.s32.totalorder 0, %v461
    %v463 = vsel %vm462, 0, %v461
    %v464 = vsub.s32 32, %v463
    %v465 = vshll.u32 %v456, %v463
    %v466 = vshrl.u32 %v448, %v464
    %v467 = vor.u32 %v465, %v466
    %v468 = vsub.s32 4294967266, %v463
    %v469 = vadd.s32 %v468, 127
    %v470 = vshll.u32 %v469, 23
    %v471 = vor.u32 4788187, %v470
    %v472 = vand.u32 2147483647, %v471
    %v474 = vcvt.s32.f32 %v467
    %v475 = vmul.f32 %v474, %v472
    %v476 = vxor.u32 %v475, 2147483648
    %v477 = vsel %vm394, %v476, %v475
    %v478 = vsub.s32 4, %v454
    %v479 = vsel %vm394, %v478, %v454
    %v480 = vsel %vm393, %v61, %v477
    %v481 = vsel %vm393, 0, %v479
    %v482 = vcosq.f32.pop %v480
    %v483 = vsinq.f32.pop %v480
    %vm484 = vweird.f32 %v61
    %v485 = vadd.s32 %v481, 3
    %v486 = vand.u32 %v485, 3
    %vm487 = vcmp.lt.s32.totalorder %v486, 2
    %vm488 = vcmp.eq.s32.totalorder %v486, 0
    %v489 = vxor.u32 %v483, 2147483648
    %v490 = vsel %vm488, %v482, %v489
    %vm491 = vcmp.eq.s32.totalorder %v486, 2
    %v492 = vxor.u32 %v482, 2147483648
    %v493 = vsel %vm491, %v492, %v483
    %v494 = vsel %vm487, %v490, %v493
    %v495 = vsel %vm484, nan, %v494
    %v496 = vmul.f32 %v57, 0.5
    %v497 = vmul.f32 %v496, %v391
    %v498 = vmul.f32 %v496, %v495
    %v499 = vmul.f32 %v59, 0.5
    %v500 = vmul.f32 %v499, %v391
    %v501 = vmul.f32 %v499, %v495
    %v502 = vadd.f32 %v53, %v497
    %v503 = vsub.f32 %v502, %v501
    %v504 = vsub.f32 %v53, %v497
    %v505 = vsub.f32 %v504, %v501
    %v506 = vadd.f32 %v504, %v501
    %v507 = vadd.f32 %v502, %v501
    %v508 = vadd.f32 %v55, %v498
    %v509 = vadd.f32 %v508, %v500
    %v510 = vsub.f32 %v55, %v498
    %v511 = vadd.f32 %v510, %v500
    %v512 = vsub.f32 %v510, %v500
    %v513 = vsub.f32 %v508, %v500
    %vm514 = vcmp.lt.f32.partialorder %v280, %v278
    %v515 = vsel %vm514, %v280, %v278
    %v516 = vsel %vm514, %v278, %v280
    %v517 = vsel %vm514, %v286, %v284
    %v518 = vsel %vm514, %v284, %v286
    %vm519 = vcmp.lt.f32.partialorder %v282, %v281
    %v520 = vsel %vm519, %v282, %v281
    %v521 = vsel %vm519, %v281, %v282
    %v522 = vsel %vm519, %v288, %v287
    %v523 = vsel %vm519, %v287, %v288
    %vm524 = vcmp.lt.f32.partialorder %v520, %v515
    %v525 = vsel %vm524, %v520, %v515
    %v526 = vsel %vm524, %v515, %v520
    %v527 = vsel %vm524, %v517, %v522
    %vm528 = vcmp.lt.f32.partialorder %v521, %v516
    %v529 = vsel %vm528, %v521, %v516
    %v530 = vsel %vm528, %v516, %v521
    %v531 = vsel %vm528, %v523, %v518
    %v532 = vsel %vm528, %v518, %v523
    %vm533 = vcmp.lt.f32.partialorder %v526, %v529
    %v534 = vsel %vm533, %v526, %v529
    %v535 = vsel %vm533, %v529, %v526
    %v536 = vsel %vm533, %v527, %v531
    %v537 = vsel %vm533, %v531, %v527
    %vm538 = vcmp.lt.f32.partialorder %v505, %v503
    %v539 = vsel %vm538, %v505, %v503
    %v540 = vsel %vm538, %v503, %v505
    %v541 = vsel %vm538, %v511, %v509
    %v542 = vsel %vm538, %v509, %v511
    %vm543 = vcmp.lt.f32.partialorder %v507, %v506
    %v544 = vsel %vm543, %v507, %v506
    %v545 = vsel %vm543, %v506, %v507
    %v546 = vsel %vm543, %v513, %v512
    %v547 = vsel %vm543, %v512, %v513
    %vm548 = vcmp.lt.f32.partialorder %v544, %v539
    %v549 = vsel %vm548, %v544, %v539
    %v550 = vsel %vm548, %v539, %v544
    %v551 = vsel %vm548, %v541, %v546
    %vm552 = vcmp.lt.f32.partialorder %v545, %v540
    %v553 = vsel %vm552, %v545, %v540
    %v554 = vsel %vm552, %v540, %v545
    %v555 = vsel %vm552, %v547, %v542
    %v556 = vsel %vm552, %v542, %v547
    %vm557 = vcmp.lt.f32.partialorder %v550, %v553
    %v558 = vsel %vm557, %v550, %v553
    %v559 = vsel %vm557, %v553, %v550
    %v560 = vsel %vm557, %v551, %v555
    %v561 = vsel %vm557, %v555, %v551
    %v562 = vsub.f32 %v549, %v525
    %v563 = vmul.f32 %v562, 2.0
    %v564 = vmul.f32 %v563, %v562
    %v565 = vsub.f32 %v534, %v558
    %v566 = vmul.f32 %v565, %v565
    %v567 = vadd.f32 %v564, %v566
    %v568 = vsub.f32 %v536, %v560
    %v569 = vmul.f32 %v568, %v568
    %v570 = vadd.f32 %v567, %v569
    %v571 = vsub.f32 %v535, %v559
    %v572 = vmul.f32 %v571, %v571
    %v573 = vadd.f32 %v570, %v572
    %v574 = vsub.f32 %v537, %v561
    %v575 = vmul.f32 %v574, %v574
    %v576 = vadd.f32 %v573, %v575
    %v577 = vsub.f32 %v530, %v554
    %v578 = vmul.f32 %v577, %v577
    %v579 = vadd.f32 %v576, %v578
    %v580 = vsub.f32 %v532, %v556
    %v581 = vmul.f32 %v580, %v580
    %v582 = vadd.f32 %v579, %v581
    %v583 = vmul.f32 %v582, 2.3841858e-07
    %v584 = vsub.f32 %v503, %v53
    %v585 = vmul.f32 %v584, 0.0003
    %v586 = vadd.f32 %v503, %v585
    %v587 = vsub.f32 %v505, %v53
    %v588 = vmul.f32 %v587, 0.0003
    %v589 = vadd.f32 %v505, %v588
    %v590 = vsub.f32 %v506, %v53
    %v591 = vmul.f32 %v590, 0.0003
    %v592 = vadd.f32 %v506, %v591
    %v593 = vsub.f32 %v507, %v53
    %v594 = vmul.f32 %v593, 0.0003
    %v595 = vadd.f32 %v507, %v594
    %v596 = vsub.f32 %v509, %v55
    %v597 = vmul.f32 %v596, 0.0003
    %v598 = vadd.f32 %v509, %v597
    %v599 = vsub.f32 %v511, %v55
    %v600 = vmul.f32 %v599, 0.0003
    %v601 = vadd.f32 %v511, %v600
    %v602 = vsub.f32 %v512, %v55
    %v603 = vmul.f32 %v602, 0.0003
    %v604 = vadd.f32 %v512, %v603
    %v605 = vsub.f32 %v513, %v55
    %v606 = vmul.f32 %v605, 0.0003
    %v607 = vadd.f32 %v513, %v606
    %v608 = vsub.f32 %v589, %v586
    %v609 = vsub.f32 %v601, %v598
    %v610 = vmul.f32 %v608, %v598
    %v611 = vmul.f32 %v609, %v586
    %v612 = vsub.f32 %v610, %v611
    %v613 = vsub.f32 %v592, %v589
    %v614 = vsub.f32 %v604, %v601
    %v615 = vmul.f32 %v613, %v601
    %v616 = vmul.f32 %v614, %v589
    %v617 = vsub.f32 %v615, %v616
    %v618 = vsub.f32 %v595, %v592
    %v619 = vsub.f32 %v607, %v604
    %v620 = vmul.f32 %v618, %v604
    %v621 = vmul.f32 %v619, %v592
    %v622 = vsub.f32 %v620, %v621
    %v623 = vsub.f32 %v586, %v595
    %v624 = vsub.f32 %v598, %v607
    %v625 = vmul.f32 %v623, %v607
    %v626 = vmul.f32 %v624, %v595
    %v627 = vsub.f32 %v625, %v626
    %v628 = vmul.f32 %v608, %v284
    %v629 = vmul.f32 %v609, %v278
    %v630 = vsub.f32 %v628, %v629
    %v631 = vsub.f32 %v630, %v612
    %v632 = vmul.f32 %v613, %v284
    %v633 = vmul.f32 %v614, %v278
    %v634 = vsub.f32 %v632, %v633
    %v635 = vsub.f32 %v634, %v617
    %v636 = vmul.f32 %v618, %v284
    %v637 = vmul.f32 %v619, %v278
    %v638 = vsub.f32 %v636, %v637
    %v639 = vsub.f32 %v638, %v622
    %v640 = vmul.f32 %v623, %v284
    %v641 = vmul.f32 %v624, %v278
    %v642 = vsub.f32 %v640, %v641
    %v643 = vsub.f32 %v642, %v627
    %v644 = vmul.f32 %v608, %v286
    %v645 = vmul.f32 %v609, %v280
    %v646 = vsub.f32 %v644, %v645
    %v647 = vsub.f32 %v646, %v612
    %v648 = vmul.f32 %v613, %v286
    %v649 = vmul.f32 %v614, %v280
    %v650 = vsub.f32 %v648, %v649
    %v651 = vsub.f32 %v650, %v617
    %v652 = vmul.f32 %v618, %v286
    %v653 = vmul.f32 %v619, %v280
    %v654 = vsub.f32 %v652, %v653
    %v655 = vsub.f32 %v654, %v622
    %v656 = vmul.f32 %v623, %v286
    %v657 = vmul.f32 %v624, %v280
    %v658 = vsub.f32 %v656, %v657
    %v659 = vsub.f32 %v658, %v627
    %v660 = vsub.f32 %v647, %v631
    %vm661 = vcmp.eq.f32.partialorder %v660, 0.0
    %v662 = vsel %vm661, 1.0, %v660
    %v663 = vsub.f32 0.0, %v631
    %v664 = vrcp.pop %v662
    %v665 = vmul.f32 %v663, %v664
    %vm666 = vcmp.gt.f32.partialorder %v660, 0.0
    %v667 = vsel %vm666, %v665, 0.0
    %vm668 = vcmp.lt.f32.partialorder %v660, 0.0
    %v669 = vsel %vm668, %v665, 1.0
    %vm670 = vcmp.lt.f32.partialorder %v631, 0.0
    %vm671 = vmand %vm661, %vm670
    %v672 = vsub.f32 %v651, %v635
    %vm673 = vcmp.eq.f32.partialorder %v672, 0.0
    %v674 = vsel %vm673, 1.0, %v672
    %v675 = vsub.f32 0.0, %v635
    %v676 = vrcp.pop %v674
    %v677 = vmul.f32 %v675, %v676
    %vm678 = vcmp.gt.f32.partialorder %v672, 0.0
    %v679 = vsel %vm678, %v677, 0.0
    %vm680 = vcmp.lt.f32.partialorder %v672, 0.0
    %v681 = vsel %vm680, %v677, 1.0
    %vm682 = vcmp.lt.f32.partialorder %v635, 0.0
    %vm683 = vmand %vm673, %vm682
    %v684 = vmax.f32 %v667, %v679
    %v685 = vmin.f32 %v669, %v681
    %vm686 = vmor %vm671, %vm683
    %v687 = vsub.f32 %v655, %v639
    %vm688 = vcmp.eq.f32.partialorder %v687, 0.0
    %v689 = vsel %vm688, 1.0, %v687
    %v690 = vsub.f32 0.0, %v639
    %v691 = vrcp.pop %v689
    %v692 = vmul.f32 %v690, %v691
    %vm693 = vcmp.gt.f32.partialorder %v687, 0.0
    %v694 = vsel %vm693, %v692, 0.0
    %vm695 = vcmp.lt.f32.partialorder %v687, 0.0
    %v696 = vsel %vm695, %v692, 1.0
    %vm697 = vcmp.lt.f32.partialorder %v639, 0.0
    %vm698 = vmand %vm688, %vm697
    %v699 = vmax.f32 %v684, %v694
    %v700 = vmin.f32 %v685, %v696
    %vm701 = vmor %vm686, %vm698
    %v702 = vsub.f32 %v659, %v643
    %vm703 = vcmp.eq.f32.partialorder %v702, 0.0
    %v704 = vsel %vm703, 1.0, %v702
    %v705 = vsub.f32 0.0, %v643
    %v706 = vrcp.pop %v704
    %v707 = vmul.f32 %v705, %v706
    %vm708 = vcmp.gt.f32.partialorder %v702, 0.0
    %v709 = vsel %vm708, %v707, 0.0
    %vm710 = vcmp.lt.f32.partialorder %v702, 0.0
    %v711 = vsel %vm710, %v707, 1.0
    %vm712 = vcmp.lt.f32.partialorder %v643, 0.0
    %vm713 = vmand %vm703, %vm712
    %v714 = vmax.f32 %v699, %v709
    %v715 = vmin.f32 %v700, %v711
    %vm716 = vmor %vm701, %vm713
    %v717 = vmax.f32 %v714, 0.0
    %v718 = vmin.f32 %v715, 1.0
    %vm719 = vmxor %vm716, 1
    %vm720 = vcmp.le.f32.partialorder %v717, %v718
    %vm721 = vmand %vm719, %vm720
    %v722 = vsub.f32 %v280, %v278
    %v723 = vsub.f32 %v286, %v284
    %v724 = vmul.f32 %v717, %v722
    %v725 = vadd.f32 %v278, %v724
    %v726 = vmul.f32 %v717, %v723
    %v727 = vadd.f32 %v284, %v726
    %v728 = vmul.f32 %v718, %v722
    %v729 = vadd.f32 %v278, %v728
    %v730 = vmul.f32 %v718, %v723
    %v731 = vadd.f32 %v284, %v730
    %v732 = vmul.f32 %v725, %v731
    %v733 = vmul.f32 %v729, %v727
    %v734 = vsub.f32 %v732, %v733
    %v735 = vsel %vm721, %v734, 0.0
    %v736 = vmul.f32 %v608, %v287
    %v737 = vmul.f32 %v609, %v281
    %v738 = vsub.f32 %v736, %v737
    %v739 = vsub.f32 %v738, %v612
    %v740 = vmul.f32 %v613, %v287
    %v741 = vmul.f32 %v614, %v281
    %v742 = vsub.f32 %v740, %v741
    %v743 = vsub.f32 %v742, %v617
    %v744 = vmul.f32 %v618, %v287
    %v745 = vmul.f32 %v619, %v281
    %v746 = vsub.f32 %v744, %v745
    %v747 = vsub.f32 %v746, %v622
    %v748 = vmul.f32 %v623, %v287
    %v749 = vmul.f32 %v624, %v281
    %v750 = vsub.f32 %v748, %v749
    %v751 = vsub.f32 %v750, %v627
    %v752 = vsub.f32 %v739, %v647
    %vm753 = vcmp.eq.f32.partialorder %v752, 0.0
    %v754 = vsel %vm753, 1.0, %v752
    %v755 = vsub.f32 0.0, %v647
    %v756 = vrcp.pop %v754
    %v757 = vmul.f32 %v755, %v756
    %vm758 = vcmp.gt.f32.partialorder %v752, 0.0
    %v759 = vsel %vm758, %v757, 0.0
    %vm760 = vcmp.lt.f32.partialorder %v752, 0.0
    %v761 = vsel %vm760, %v757, 1.0
    %vm762 = vcmp.lt.f32.partialorder %v647, 0.0
    %vm763 = vmand %vm753, %vm762
    %v764 = vsub.f32 %v743, %v651
    %vm765 = vcmp.eq.f32.partialorder %v764, 0.0
    %v766 = vsel %vm765, 1.0, %v764
    %v767 = vsub.f32 0.0, %v651
    %v768 = vrcp.pop %v766
    %v769 = vmul.f32 %v767, %v768
    %vm770 = vcmp.gt.f32.partialorder %v764, 0.0
    %v771 = vsel %vm770, %v769, 0.0
    %vm772 = vcmp.lt.f32.partialorder %v764, 0.0
    %v773 = vsel %vm772, %v769, 1.0
    %vm774 = vcmp.lt.f32.partialorder %v651, 0.0
    %vm775 = vmand %vm765, %vm774
    %v776 = vmax.f32 %v759, %v771
    %v777 = vmin.f32 %v761, %v773
    %vm778 = vmor %vm763, %vm775
    %v779 = vsub.f32 %v747, %v655
    %vm780 = vcmp.eq.f32.partialorder %v779, 0.0
    %v781 = vsel %vm780, 1.0, %v779
    %v782 = vsub.f32 0.0, %v655
    %v783 = vrcp.pop %v781
    %v784 = vmul.f32 %v782, %v783
    %vm785 = vcmp.gt.f32.partialorder %v779, 0.0
    %v786 = vsel %vm785, %v784, 0.0
    %vm787 = vcmp.lt.f32.partialorder %v779, 0.0
    %v788 = vsel %vm787, %v784, 1.0
    %vm789 = vcmp.lt.f32.partialorder %v655, 0.0
    %vm790 = vmand %vm780, %vm789
    %v791 = vmax.f32 %v776, %v786
    %v792 = vmin.f32 %v777, %v788
    %vm793 = vmor %vm778, %vm790
    %v794 = vsub.f32 %v751, %v659
    %vm795 = vcmp.eq.f32.partialorder %v794, 0.0
    %v796 = vsel %vm795, 1.0, %v794
    %v797 = vsub.f32 0.0, %v659
    %v798 = vrcp.pop %v796
    %v799 = vmul.f32 %v797, %v798
    %vm800 = vcmp.gt.f32.partialorder %v794, 0.0
    %v801 = vsel %vm800, %v799, 0.0
    %vm802 = vcmp.lt.f32.partialorder %v794, 0.0
    %v803 = vsel %vm802, %v799, 1.0
    %vm804 = vcmp.lt.f32.partialorder %v659, 0.0
    %vm805 = vmand %vm795, %vm804
    %v806 = vmax.f32 %v791, %v801
    %v807 = vmin.f32 %v792, %v803
    %vm808 = vmor %vm793, %vm805
    %v809 = vmax.f32 %v806, 0.0
    %v810 = vmin.f32 %v807, 1.0
    %vm811 = vmxor %vm808, 1
    %vm812 = vcmp.le.f32.partialorder %v809, %v810
    %vm813 = vmand %vm811, %vm812
    %v814 = vsub.f32 %v281, %v280
    %v815 = vsub.f32 %v287, %v286
    %v816 = vmul.f32 %v809, %v814
    %v817 = vadd.f32 %v280, %v816
    %v818 = vmul.f32 %v809, %v815
    %v819 = vadd.f32 %v286, %v818
    %v820 = vmul.f32 %v810, %v814
    %v821 = vadd.f32 %v280, %v820
    %v822 = vmul.f32 %v810, %v815
    %v823 = vadd.f32 %v286, %v822
    %v824 = vmul.f32 %v817, %v823
    %v825 = vmul.f32 %v821, %v819
    %v826 = vsub.f32 %v824, %v825
    %v827 = vsel %vm813, %v826, 0.0
    %v828 = vadd.f32 %v735, %v827
    %v829 = vmul.f32 %v608, %v288
    %v830 = vmul.f32 %v609, %v282
    %v831 = vsub.f32 %v829, %v830
    %v832 = vsub.f32 %v831, %v612
    %v833 = vmul.f32 %v613, %v288
    %v834 = vmul.f32 %v614, %v282
    %v835 = vsub.f32 %v833, %v834
    %v836 = vsub.f32 %v835, %v617
    %v837 = vmul.f32 %v618, %v288
    %v838 = vmul.f32 %v619, %v282
    %v839 = vsub.f32 %v837, %v838
    %v840 = vsub.f32 %v839, %v622
    %v841 = vmul.f32 %v623, %v288
    %v842 = vmul.f32 %v624, %v282
    %v843 = vsub.f32 %v841, %v842
    %v844 = vsub.f32 %v843, %v627
    %v845 = vsub.f32 %v832, %v739
    %vm846 = vcmp.eq.f32.partialorder %v845, 0.0
    %v847 = vsel %vm846, 1.0, %v845
    %v848 = vsub.f32 0.0, %v739
    %v849 = vrcp.pop %v847
    %v850 = vmul.f32 %v848, %v849
    %vm851 = vcmp.gt.f32.partialorder %v845, 0.0
    %v852 = vsel %vm851, %v850, 0.0
    %vm853 = vcmp.lt.f32.partialorder %v845, 0.0
    %v854 = vsel %vm853, %v850, 1.0
    %vm855 = vcmp.lt.f32.partialorder %v739, 0.0
    %vm856 = vmand %vm846, %vm855
    %v857 = vsub.f32 %v836, %v743
    %vm858 = vcmp.eq.f32.partialorder %v857, 0.0
    %v859 = vsel %vm858, 1.0, %v857
    %v860 = vsub.f32 0.0, %v743
    %v861 = vrcp.pop %v859
    %v862 = vmul.f32 %v860, %v861
    %vm863 = vcmp.gt.f32.partialorder %v857, 0.0
    %v864 = vsel %vm863, %v862, 0.0
    %vm865 = vcmp.lt.f32.partialorder %v857, 0.0
    %v866 = vsel %vm865, %v862, 1.0
    %vm867 = vcmp.lt.f32.partialorder %v743, 0.0
    %vm868 = vmand %vm858, %vm867
    %v869 = vmax.f32 %v852, %v864
    %v870 = vmin.f32 %v854, %v866
    %vm871 = vmor %vm856, %vm868
    %v872 = vsub.f32 %v840, %v747
    %vm873 = vcmp.eq.f32.partialorder %v872, 0.0
    %v874 = vsel %vm873, 1.0, %v872
    %v875 = vsub.f32 0.0, %v747
    %v876 = vrcp.pop %v874
    %v877 = vmul.f32 %v875, %v876
    %vm878 = vcmp.gt.f32.partialorder %v872, 0.0
    %v879 = vsel %vm878, %v877, 0.0
    %vm880 = vcmp.lt.f32.partialorder %v872, 0.0
    %v881 = vsel %vm880, %v877, 1.0
    %vm882 = vcmp.lt.f32.partialorder %v747, 0.0
    %vm883 = vmand %vm873, %vm882
    %v884 = vmax.f32 %v869, %v879
    %v885 = vmin.f32 %v870, %v881
    %vm886 = vmor %vm871, %vm883
    %v887 = vsub.f32 %v844, %v751
    %vm888 = vcmp.eq.f32.partialorder %v887, 0.0
    %v889 = vsel %vm888, 1.0, %v887
    %v890 = vsub.f32 0.0, %v751
    %v891 = vrcp.pop %v889
    %v892 = vmul.f32 %v890, %v891
    %vm893 = vcmp.gt.f32.partialorder %v887, 0.0
    %v894 = vsel %vm893, %v892, 0.0
    %vm895 = vcmp.lt.f32.partialorder %v887, 0.0
    %v896 = vsel %vm895, %v892, 1.0
    %vm897 = vcmp.lt.f32.partialorder %v751, 0.0
    %vm898 = vmand %vm888, %vm897
    %v899 = vmax.f32 %v884, %v894
    %v900 = vmin.f32 %v885, %v896
    %vm901 = vmor %vm886, %vm898
    %v902 = vmax.f32 %v899, 0.0
    %v903 = vmin.f32 %v900, 1.0
    %vm904 = vmxor %vm901, 1
    %vm905 = vcmp.le.f32.partialorder %v902, %v903
    %vm906 = vmand %vm904, %vm905
    %v907 = vsub.f32 %v282, %v281
    %v908 = vsub.f32 %v288, %v287
    %v909 = vmul.f32 %v902, %v907
    %v910 = vadd.f32 %v281, %v909
    %v911 = vmul.f32 %v902, %v908
    %v912 = vadd.f32 %v287, %v911
    %v913 = vmul.f32 %v903, %v907
    %v914 = vadd.f32 %v281, %v913
    %v915 = vmul.f32 %v903, %v908
    %v916 = vadd.f32 %v287, %v915
    %v917 = vmul.f32 %v910, %v916
    %v918 = vmul.f32 %v914, %v912
    %v919 = vsub.f32 %v917, %v918
    %v920 = vsel %vm906, %v919, 0.0
    %v921 = vadd.f32 %v828, %v920
    %v922 = vsub.f32 %v631, %v832
    %vm923 = vcmp.eq.f32.partialorder %v922, 0.0
    %v924 = vsel %vm923, 1.0, %v922
    %v925 = vsub.f32 0.0, %v832
    %v926 = vrcp.pop %v924
    %v927 = vmul.f32 %v925, %v926
    %vm928 = vcmp.gt.f32.partialorder %v922, 0.0
    %v929 = vsel %vm928, %v927, 0.0
    %vm930 = vcmp.lt.f32.partialorder %v922, 0.0
    %v931 = vsel %vm930, %v927, 1.0
    %vm932 = vcmp.lt.f32.partialorder %v832, 0.0
    %vm933 = vmand %vm923, %vm932
    %v934 = vsub.f32 %v635, %v836
    %vm935 = vcmp.eq.f32.partialorder %v934, 0.0
    %v936 = vsel %vm935, 1.0, %v934
    %v937 = vsub.f32 0.0, %v836
    %v938 = vrcp.pop %v936
    %v939 = vmul.f32 %v937, %v938
    %vm940 = vcmp.gt.f32.partialorder %v934, 0.0
    %v941 = vsel %vm940, %v939, 0.0
    %vm942 = vcmp.lt.f32.partialorder %v934, 0.0
    %v943 = vsel %vm942, %v939, 1.0
    %vm944 = vcmp.lt.f32.partialorder %v836, 0.0
    %vm945 = vmand %vm935, %vm944
    %v946 = vmax.f32 %v929, %v941
    %v947 = vmin.f32 %v931, %v943
    %vm948 = vmor %vm933, %vm945
    %v949 = vsub.f32 %v639, %v840
    %vm950 = vcmp.eq.f32.partialorder %v949, 0.0
    %v951 = vsel %vm950, 1.0, %v949
    %v952 = vsub.f32 0.0, %v840
    %v953 = vrcp.pop %v951
    %v954 = vmul.f32 %v952, %v953
    %vm955 = vcmp.gt.f32.partialorder %v949, 0.0
    %v956 = vsel %vm955, %v954, 0.0
    %vm957 = vcmp.lt.f32.partialorder %v949, 0.0
    %v958 = vsel %vm957, %v954, 1.0
    %vm959 = vcmp.lt.f32.partialorder %v840, 0.0
    %vm960 = vmand %vm950, %vm959
    %v961 = vmax.f32 %v946, %v956
    %v962 = vmin.f32 %v947, %v958
    %vm963 = vmor %vm948, %vm960
    %v964 = vsub.f32 %v643, %v844
    %vm965 = vcmp.eq.f32.partialorder %v964, 0.0
    %v966 = vsel %vm965, 1.0, %v964
    %v967 = vsub.f32 0.0, %v844
    %v968 = vrcp.pop %v966
    %v969 = vmul.f32 %v967, %v968
    %vm970 = vcmp.gt.f32.partialorder %v964, 0.0
    %v971 = vsel %vm970, %v969, 0.0
    %vm972 = vcmp.lt.f32.partialorder %v964, 0.0
    %v973 = vsel %vm972, %v969, 1.0
    %vm974 = vcmp.lt.f32.partialorder %v844, 0.0
    %vm975 = vmand %vm965, %vm974
    %v976 = vmax.f32 %v961, %v971
    %v977 = vmin.f32 %v962, %v973
    %vm978 = vmor %vm963, %vm975
    %v979 = vmax.f32 %v976, 0.0
    %v980 = vmin.f32 %v977, 1.0
    %vm981 = vmxor %vm978, 1
    %vm982 = vcmp.le.f32.partialorder %v979, %v980
    %vm983 = vmand %vm981, %vm982
    %v984 = vsub.f32 %v278, %v282
    %v985 = vsub.f32 %v284, %v288
    %v986 = vmul.f32 %v979, %v984
    %v987 = vadd.f32 %v282, %v986
    %v988 = vmul.f32 %v979, %v985
    %v989 = vadd.f32 %v288, %v988
    %v990 = vmul.f32 %v980, %v984
    %v991 = vadd.f32 %v282, %v990
    %v992 = vmul.f32 %v980, %v985
    %v993 = vadd.f32 %v288, %v992
    %v994 = vmul.f32 %v987, %v993
    %v995 = vmul.f32 %v991, %v989
    %v996 = vsub.f32 %v994, %v995
    %v997 = vsel %vm983, %v996, 0.0
    %v998 = vadd.f32 %v921, %v997
    %v999 = vmul.f32 %v722, %v284
    %v1000 = vmul.f32 %v723, %v278
    %v1001 = vsub.f32 %v999, %v1000
    %v1002 = vmul.f32 %v814, %v286
    %v1003 = vmul.f32 %v815, %v280
    %v1004 = vsub.f32 %v1002, %v1003
    %v1005 = vmul.f32 %v907, %v287
    %v1006 = vmul.f32 %v908, %v281
    %v1007 = vsub.f32 %v1005, %v1006
    %v1008 = vmul.f32 %v984, %v288
    %v1009 = vmul.f32 %v985, %v282
    %v1010 = vsub.f32 %v1008, %v1009
    %v1011 = vmul.f32 %v722, %v598
    %v1012 = vmul.f32 %v723, %v586
    %v1013 = vsub.f32 %v1011, %v1012
    %v1014 = vsub.f32 %v1013, %v1001
    %v1015 = vmul.f32 %v814, %v598
    %v1016 = vmul.f32 %v815, %v586
    %v1017 = vsub.f32 %v1015, %v1016
    %v1018 = vsub.f32 %v1017, %v1004
    %v1019 = vmul.f32 %v907, %v598
    %v1020 = vmul.f32 %v908, %v586
    %v1021 = vsub.f32 %v1019, %v1020
    %v1022 = vsub.f32 %v1021, %v1007
    %v1023 = vmul.f32 %v984, %v598
    %v1024 = vmul.f32 %v985, %v586
    %v1025 = vsub.f32 %v1023, %v1024
    %v1026 = vsub.f32 %v1025, %v1010
    %v1027 = vmul.f32 %v722, %v601
    %v1028 = vmul.f32 %v723, %v589
    %v1029 = vsub.f32 %v1027, %v1028
    %v1030 = vsub.f32 %v1029, %v1001
    %v1031 = vmul.f32 %v814, %v601
    %v1032 = vmul.f32 %v815, %v589
    %v1033 = vsub.f32 %v1031, %v1032
    %v1034 = vsub.f32 %v1033, %v1004
    %v1035 = vmul.f32 %v907, %v601
    %v1036 = vmul.f32 %v908, %v589
    %v1037 = vsub.f32 %v1035, %v1036
    %v1038 = vsub.f32 %v1037, %v1007
    %v1039 = vmul.f32 %v984, %v601
    %v1040 = vmul.f32 %v985, %v589
    %v1041 = vsub.f32 %v1039, %v1040
    %v1042 = vsub.f32 %v1041, %v1010
    %v1043 = vsub.f32 %v1030, %v1014
    %vm1044 = vcmp.eq.f32.partialorder %v1043, 0.0
    %v1045 = vsel %vm1044, 1.0, %v1043
    %v1046 = vsub.f32 0.0, %v1014
    %v1047 = vrcp.pop %v1045
    %v1048 = vmul.f32 %v1046, %v1047
    %vm1049 = vcmp.gt.f32.partialorder %v1043, 0.0
    %v1050 = vsel %vm1049, %v1048, 0.0
    %vm1051 = vcmp.lt.f32.partialorder %v1043, 0.0
    %v1052 = vsel %vm1051, %v1048, 1.0
    %vm1053 = vcmp.lt.f32.partialorder %v1014, 0.0
    %vm1054 = vmand %vm1044, %vm1053
    %v1055 = vsub.f32 %v1034, %v1018
    %vm1056 = vcmp.eq.f32.partialorder %v1055, 0.0
    %v1057 = vsel %vm1056, 1.0, %v1055
    %v1058 = vsub.f32 0.0, %v1018
    %v1059 = vrcp.pop %v1057
    %v1060 = vmul.f32 %v1058, %v1059
    %vm1061 = vcmp.gt.f32.partialorder %v1055, 0.0
    %v1062 = vsel %vm1061, %v1060, 0.0
    %vm1063 = vcmp.lt.f32.partialorder %v1055, 0.0
    %v1064 = vsel %vm1063, %v1060, 1.0
    %vm1065 = vcmp.lt.f32.partialorder %v1018, 0.0
    %vm1066 = vmand %vm1056, %vm1065
    %v1067 = vmax.f32 %v1050, %v1062
    %v1068 = vmin.f32 %v1052, %v1064
    %vm1069 = vmor %vm1054, %vm1066
    %v1070 = vsub.f32 %v1038, %v1022
    %vm1071 = vcmp.eq.f32.partialorder %v1070, 0.0
    %v1072 = vsel %vm1071, 1.0, %v1070
    %v1073 = vsub.f32 0.0, %v1022
    %v1074 = vrcp.pop %v1072
    %v1075 = vmul.f32 %v1073, %v1074
    %vm1076 = vcmp.gt.f32.partialorder %v1070, 0.0
    %v1077 = vsel %vm1076, %v1075, 0.0
    %vm1078 = vcmp.lt.f32.partialorder %v1070, 0.0
    %v1079 = vsel %vm1078, %v1075, 1.0
    %vm1080 = vcmp.lt.f32.partialorder %v1022, 0.0
    %vm1081 = vmand %vm1071, %vm1080
    %v1082 = vmax.f32 %v1067, %v1077
    %v1083 = vmin.f32 %v1068, %v1079
    %vm1084 = vmor %vm1069, %vm1081
    %v1085 = vsub.f32 %v1042, %v1026
    %vm1086 = vcmp.eq.f32.partialorder %v1085, 0.0
    %v1087 = vsel %vm1086, 1.0, %v1085
    %v1088 = vsub.f32 0.0, %v1026
    %v1089 = vrcp.pop %v1087
    %v1090 = vmul.f32 %v1088, %v1089
    %vm1091 = vcmp.gt.f32.partialorder %v1085, 0.0
    %v1092 = vsel %vm1091, %v1090, 0.0
    %vm1093 = vcmp.lt.f32.partialorder %v1085, 0.0
    %v1094 = vsel %vm1093, %v1090, 1.0
    %vm1095 = vcmp.lt.f32.partialorder %v1026, 0.0
    %vm1096 = vmand %vm1086, %vm1095
    %v1097 = vmax.f32 %v1082, %v1092
    %v1098 = vmin.f32 %v1083, %v1094
    %vm1099 = vmor %vm1084, %vm1096
    %v1100 = vmax.f32 %v1097, 0.0
    %v1101 = vmin.f32 %v1098, 1.0
    %vm1102 = vmxor %vm1099, 1
    %vm1103 = vcmp.le.f32.partialorder %v1100, %v1101
    %vm1104 = vmand %vm1102, %vm1103
    %v1105 = vmul.f32 %v1100, %v608
    %v1106 = vadd.f32 %v586, %v1105
    %v1107 = vmul.f32 %v1100, %v609
    %v1108 = vadd.f32 %v598, %v1107
    %v1109 = vmul.f32 %v1101, %v608
    %v1110 = vadd.f32 %v586, %v1109
    %v1111 = vmul.f32 %v1101, %v609
    %v1112 = vadd.f32 %v598, %v1111
    %v1113 = vmul.f32 %v1106, %v1112
    %v1114 = vmul.f32 %v1110, %v1108
    %v1115 = vsub.f32 %v1113, %v1114
    %v1116 = vsel %vm1104, %v1115, 0.0
    %v1117 = vmul.f32 %v722, %v604
    %v1118 = vmul.f32 %v723, %v592
    %v1119 = vsub.f32 %v1117, %v1118
    %v1120 = vsub.f32 %v1119, %v1001
    %v1121 = vmul.f32 %v814, %v604
    %v1122 = vmul.f32 %v815, %v592
    %v1123 = vsub.f32 %v1121, %v1122
    %v1124 = vsub.f32 %v1123, %v1004
    %v1125 = vmul.f32 %v907, %v604
    %v1126 = vmul.f32 %v908, %v592
    %v1127 = vsub.f32 %v1125, %v1126
    %v1128 = vsub.f32 %v1127, %v1007
    %v1129 = vmul.f32 %v984, %v604
    %v1130 = vmul.f32 %v985, %v592
    %v1131 = vsub.f32 %v1129, %v1130
    %v1132 = vsub.f32 %v1131, %v1010
    %v1133 = vsub.f32 %v1120, %v1030
    %vm1134 = vcmp.eq.f32.partialorder %v1133, 0.0
    %v1135 = vsel %vm1134, 1.0, %v1133
    %v1136 = vsub.f32 0.0, %v1030
    %v1137 = vrcp.pop %v1135
    %v1138 = vmul.f32 %v1136, %v1137
    %vm1139 = vcmp.gt.f32.partialorder %v1133, 0.0
    %v1140 = vsel %vm1139, %v1138, 0.0
    %vm1141 = vcmp.lt.f32.partialorder %v1133, 0.0
    %v1142 = vsel %vm1141, %v1138, 1.0
    %vm1143 = vcmp.lt.f32.partialorder %v1030, 0.0
    %vm1144 = vmand %vm1134, %vm1143
    %v1145 = vsub.f32 %v1124, %v1034
    %vm1146 = vcmp.eq.f32.partialorder %v1145, 0.0
    %v1147 = vsel %vm1146, 1.0, %v1145
    %v1148 = vsub.f32 0.0, %v1034
    %v1149 = vrcp.pop %v1147
    %v1150 = vmul.f32 %v1148, %v1149
    %vm1151 = vcmp.gt.f32.partialorder %v1145, 0.0
    %v1152 = vsel %vm1151, %v1150, 0.0
    %vm1153 = vcmp.lt.f32.partialorder %v1145, 0.0
    %v1154 = vsel %vm1153, %v1150, 1.0
    %vm1155 = vcmp.lt.f32.partialorder %v1034, 0.0
    %vm1156 = vmand %vm1146, %vm1155
    %v1157 = vmax.f32 %v1140, %v1152
    %v1158 = vmin.f32 %v1142, %v1154
    %vm1159 = vmor %vm1144, %vm1156
    %v1160 = vsub.f32 %v1128, %v1038
    %vm1161 = vcmp.eq.f32.partialorder %v1160, 0.0
    %v1162 = vsel %vm1161, 1.0, %v1160
    %v1163 = vsub.f32 0.0, %v1038
    %v1164 = vrcp.pop %v1162
    %v1165 = vmul.f32 %v1163, %v1164
    %vm1166 = vcmp.gt.f32.partialorder %v1160, 0.0
    %v1167 = vsel %vm1166, %v1165, 0.0
    %vm1168 = vcmp.lt.f32.partialorder %v1160, 0.0
    %v1169 = vsel %vm1168, %v1165, 1.0
    %vm1170 = vcmp.lt.f32.partialorder %v1038, 0.0
    %vm1171 = vmand %vm1161, %vm1170
    %v1172 = vmax.f32 %v1157, %v1167
    %v1173 = vmin.f32 %v1158, %v1169
    %vm1174 = vmor %vm1159, %vm1171
    %v1175 = vsub.f32 %v1132, %v1042
    %vm1176 = vcmp.eq.f32.partialorder %v1175, 0.0
    %v1177 = vsel %vm1176, 1.0, %v1175
    %v1178 = vsub.f32 0.0, %v1042
    %v1179 = vrcp.pop %v1177
    %v1180 = vmul.f32 %v1178, %v1179
    %vm1181 = vcmp.gt.f32.partialorder %v1175, 0.0
    %v1182 = vsel %vm1181, %v1180, 0.0
    %vm1183 = vcmp.lt.f32.partialorder %v1175, 0.0
    %v1184 = vsel %vm1183, %v1180, 1.0
    %vm1185 = vcmp.lt.f32.partialorder %v1042, 0.0
    %vm1186 = vmand %vm1176, %vm1185
    %v1187 = vmax.f32 %v1172, %v1182
    %v1188 = vmin.f32 %v1173, %v1184
    %vm1189 = vmor %vm1174, %vm1186
    %v1190 = vmax.f32 %v1187, 0.0
    %v1191 = vmin.f32 %v1188, 1.0
    %vm1192 = vmxor %vm1189, 1
    %vm1193 = vcmp.le.f32.partialorder %v1190, %v1191
    %vm1194 = vmand %vm1192, %vm1193
    %v1195 = vmul.f32 %v1190, %v613
    %v1196 = vadd.f32 %v589, %v1195
    %v1197 = vmul.f32 %v1190, %v614
    %v1198 = vadd.f32 %v601, %v1197
    %v1199 = vmul.f32 %v1191, %v613
    %v1200 = vadd.f32 %v589, %v1199
    %v1201 = vmul.f32 %v1191, %v614
    %v1202 = vadd.f32 %v601, %v1201
    %v1203 = vmul.f32 %v1196, %v1202
    %v1204 = vmul.f32 %v1200, %v1198
    %v1205 = vsub.f32 %v1203, %v1204
    %v1206 = vsel %vm1194, %v1205, 0.0
    %v1207 = vadd.f32 %v1116, %v1206
    %v1208 = vmul.f32 %v722, %v607
    %v1209 = vmul.f32 %v723, %v595
    %v1210 = vsub.f32 %v1208, %v1209
    %v1211 = vsub.f32 %v1210, %v1001
    %v1212 = vmul.f32 %v814, %v607
    %v1213 = vmul.f32 %v815, %v595
    %v1214 = vsub.f32 %v1212, %v1213
    %v1215 = vsub.f32 %v1214, %v1004
    %v1216 = vmul.f32 %v907, %v607
    %v1217 = vmul.f32 %v908, %v595
    %v1218 = vsub.f32 %v1216, %v1217
    %v1219 = vsub.f32 %v1218, %v1007
    %v1220 = vmul.f32 %v984, %v607
    %v1221 = vmul.f32 %v985, %v595
    %v1222 = vsub.f32 %v1220, %v1221
    %v1223 = vsub.f32 %v1222, %v1010
    %v1224 = vsub.f32 %v1211, %v1120
    %vm1225 = vcmp.eq.f32.partialorder %v1224, 0.0
    %v1226 = vsel %vm1225, 1.0, %v1224
    %v1227 = vsub.f32 0.0, %v1120
    %v1228 = vrcp.pop %v1226
    %v1229 = vmul.f32 %v1227, %v1228
    %vm1230 = vcmp.gt.f32.partialorder %v1224, 0.0
    %v1231 = vsel %vm1230, %v1229, 0.0
    %vm1232 = vcmp.lt.f32.partialorder %v1224, 0.0
    %v1233 = vsel %vm1232, %v1229, 1.0
    %vm1234 = vcmp.lt.f32.partialorder %v1120, 0.0
    %vm1235 = vmand %vm1225, %vm1234
    %v1236 = vsub.f32 %v1215, %v1124
    %vm1237 = vcmp.eq.f32.partialorder %v1236, 0.0
    %v1238 = vsel %vm1237, 1.0, %v1236
    %v1239 = vsub.f32 0.0, %v1124
    %v1240 = vrcp.pop %v1238
    %v1241 = vmul.f32 %v1239, %v1240
    %vm1242 = vcmp.gt.f32.partialorder %v1236, 0.0
    %v1243 = vsel %vm1242, %v1241, 0.0
    %vm1244 = vcmp.lt.f32.partialorder %v1236, 0.0
    %v1245 = vsel %vm1244, %v1241, 1.0
    %vm1246 = vcmp.lt.f32.partialorder %v1124, 0.0
    %vm1247 = vmand %vm1237, %vm1246
    %v1248 = vmax.f32 %v1231, %v1243
    %v1249 = vmin.f32 %v1233, %v1245
    %vm1250 = vmor %vm1235, %vm1247
    %v1251 = vsub.f32 %v1219, %v1128
    %vm1252 = vcmp.eq.f32.partialorder %v1251, 0.0
    %v1253 = vsel %vm1252, 1.0, %v1251
    %v1254 = vsub.f32 0.0, %v1128
    %v1255 = vrcp.pop %v1253
    %v1256 = vmul.f32 %v1254, %v1255
    %vm1257 = vcmp.gt.f32.partialorder %v1251, 0.0
    %v1258 = vsel %vm1257, %v1256, 0.0
    %vm1259 = vcmp.lt.f32.partialorder %v1251, 0.0
    %v1260 = vsel %vm1259, %v1256, 1.0
    %vm1261 = vcmp.lt.f32.partialorder %v1128, 0.0
    %vm1262 = vmand %vm1252, %vm1261
    %v1263 = vmax.f32 %v1248, %v1258
    %v1264 = vmin.f32 %v1249, %v1260
    %vm1265 = vmor %vm1250, %vm1262
    %v1266 = vsub.f32 %v1223, %v1132
    %vm1267 = vcmp.eq.f32.partialorder %v1266, 0.0
    %v1268 = vsel %vm1267, 1.0, %v1266
    %v1269 = vsub.f32 0.0, %v1132
    %v1270 = vrcp.pop %v1268
    %v1271 = vmul.f32 %v1269, %v1270
    %vm1272 = vcmp.gt.f32.partialorder %v1266, 0.0
    %v1273 = vsel %vm1272, %v1271, 0.0
    %vm1274 = vcmp.lt.f32.partialorder %v1266, 0.0
    %v1275 = vsel %vm1274, %v1271, 1.0
    %vm1276 = vcmp.lt.f32.partialorder %v1132, 0.0
    %vm1277 = vmand %vm1267, %vm1276
    %v1278 = vmax.f32 %v1263, %v1273
    %v1279 = vmin.f32 %v1264, %v1275
    %vm1280 = vmor %vm1265, %vm1277
    %v1281 = vmax.f32 %v1278, 0.0
    %v1282 = vmin.f32 %v1279, 1.0
    %vm1283 = vmxor %vm1280, 1
    %vm1284 = vcmp.le.f32.partialorder %v1281, %v1282
    %vm1285 = vmand %vm1283, %vm1284
    %v1286 = vmul.f32 %v1281, %v618
    %v1287 = vadd.f32 %v592, %v1286
    %v1288 = vmul.f32 %v1281, %v619
    %v1289 = vadd.f32 %v604, %v1288
    %v1290 = vmul.f32 %v1282, %v618
    %v1291 = vadd.f32 %v592, %v1290
    %v1292 = vmul.f32 %v1282, %v619
    %v1293 = vadd.f32 %v604, %v1292
    %v1294 = vmul.f32 %v1287, %v1293
    %v1295 = vmul.f32 %v1291, %v1289
    %v1296 = vsub.f32 %v1294, %v1295
    %v1297 = vsel %vm1285, %v1296, 0.0
    %v1298 = vadd.f32 %v1207, %v1297
    %v1299 = vsub.f32 %v1014, %v1211
    %vm1300 = vcmp.eq.f32.partialorder %v1299, 0.0
    %v1301 = vsel %vm1300, 1.0, %v1299
    %v1302 = vsub.f32 0.0, %v1211
    %v1303 = vrcp.pop %v1301
    %v1304 = vmul.f32 %v1302, %v1303
    %vm1305 = vcmp.gt.f32.partialorder %v1299, 0.0
    %v1306 = vsel %vm1305, %v1304, 0.0
    %vm1307 = vcmp.lt.f32.partialorder %v1299, 0.0
    %v1308 = vsel %vm1307, %v1304, 1.0
    %vm1309 = vcmp.lt.f32.partialorder %v1211, 0.0
    %vm1310 = vmand %vm1300, %vm1309
    %v1311 = vsub.f32 %v1018, %v1215
    %vm1312 = vcmp.eq.f32.partialorder %v1311, 0.0
    %v1313 = vsel %vm1312, 1.0, %v1311
    %v1314 = vsub.f32 0.0, %v1215
    %v1315 = vrcp.pop %v1313
    %v1316 = vmul.f32 %v1314, %v1315
    %vm1317 = vcmp.gt.f32.partialorder %v1311, 0.0
    %v1318 = vsel %vm1317, %v1316, 0.0
    %vm1319 = vcmp.lt.f32.partialorder %v1311, 0.0
    %v1320 = vsel %vm1319, %v1316, 1.0
    %vm1321 = vcmp.lt.f32.partialorder %v1215, 0.0
    %vm1322 = vmand %vm1312, %vm1321
    %v1323 = vmax.f32 %v1306, %v1318
    %v1324 = vmin.f32 %v1308, %v1320
    %vm1325 = vmor %vm1310, %vm1322
    %v1326 = vsub.f32 %v1022, %v1219
    %vm1327 = vcmp.eq.f32.partialorder %v1326, 0.0
    %v1328 = vsel %vm1327, 1.0, %v1326
    %v1329 = vsub.f32 0.0, %v1219
    %v1330 = vrcp.pop %v1328
    %v1331 = vmul.f32 %v1329, %v1330
    %vm1332 = vcmp.gt.f32.partialorder %v1326, 0.0
    %v1333 = vsel %vm1332, %v1331, 0.0
    %vm1334 = vcmp.lt.f32.partialorder %v1326, 0.0
    %v1335 = vsel %vm1334, %v1331, 1.0
    %vm1336 = vcmp.lt.f32.partialorder %v1219, 0.0
    %vm1337 = vmand %vm1327, %vm1336
    %v1338 = vmax.f32 %v1323, %v1333
    %v1339 = vmin.f32 %v1324, %v1335
    %vm1340 = vmor %vm1325, %vm1337
    %v1341 = vsub.f32 %v1026, %v1223
    %vm1342 = vcmp.eq.f32.partialorder %v1341, 0.0
    %v1343 = vsel %vm1342, 1.0, %v1341
    %v1344 = vsub.f32 0.0, %v1223
    %v1345 = vrcp.pop %v1343
    %v1346 = vmul.f32 %v1344, %v1345
    %vm1347 = vcmp.gt.f32.partialorder %v1341, 0.0
    %v1348 = vsel %vm1347, %v1346, 0.0
    %vm1349 = vcmp.lt.f32.partialorder %v1341, 0.0
    %v1350 = vsel %vm1349, %v1346, 1.0
    %vm1351 = vcmp.lt.f32.partialorder %v1223, 0.0
    %vm1352 = vmand %vm1342, %vm1351
    %v1353 = vmax.f32 %v1338, %v1348
    %v1354 = vmin.f32 %v1339, %v1350
    %vm1355 = vmor %vm1340, %vm1352
    %v1356 = vmax.f32 %v1353, 0.0
    %v1357 = vmin.f32 %v1354, 1.0
    %vm1358 = vmxor %vm1355, 1
    %vm1359 = vcmp.le.f32.partialorder %v1356, %v1357
    %vm1360 = vmand %vm1358, %vm1359
    %v1361 = vmul.f32 %v1356, %v623
    %v1362 = vadd.f32 %v595, %v1361
    %v1363 = vmul.f32 %v1356, %v624
    %v1364 = vadd.f32 %v607, %v1363
    %v1365 = vmul.f32 %v1357, %v623
    %v1366 = vadd.f32 %v595, %v1365
    %v1367 = vmul.f32 %v1357, %v624
    %v1368 = vadd.f32 %v607, %v1367
    %v1369 = vmul.f32 %v1362, %v1368
    %v1370 = vmul.f32 %v1366, %v1364
    %v1371 = vsub.f32 %v1369, %v1370
    %v1372 = vsel %vm1360, %v1371, 0.0
    %v1373 = vadd.f32 %v1298, %v1372
    %v1374 = vadd.f32 %v998, %v1373
    %v1375 = vmul.f32 %v1374, 0.5
    %v1376 = vmin.f32 %v62, %v63
    %v1377 = vmax.f32 %v1375, 0.0
    %v1378 = vmin.f32 %v1376, %v1377
    %v1379 = vadd.f32 %v62, %v63
    %v1380 = vsub.f32 %v1379, %v1378
    %v1381 = vmax.f32 %v1380, 1e-08
    %v1382 = vrcp.pop %v1381
    %v1383 = vmul.f32 %v1378, %v1382
    %v1384 = vmax.f32 %v1383, 1e-06
    %v1385 = vsub.f32 1.0, %v1384
    %v1386 = vadd.f32 %v1385, %v583
    %1387 = vst [vmem:[#allocation7] sm:$0xff] %v1386
    // Predicated region
    $region18: #{tpu_custom_call.1} parent=1 // pred_check
      _
    $region19: #{tpu_custom_call.1} parent=1 // pred_check_branch
      %1389 = sbr.rel (0) target = $region21
    $region20: #{tpu_custom_call.1} parent=1 // pred_region
      %s1391 = ssub.s32 128, 128
      %1392 = vsyncadd [#allocation4], %s1391
      %s1394 = sshll.u32 [#allocation7], 4
      %s1395 = int_to_ptr.vmem [resolvable:$true] %s1394
      %1397 = dma.vmem_to_hbm [thread:$0]  %s1395, 128, %s2, [#allocation4]
    $region21: #{tpu_custom_call.1} parent=1 // pred_fallthru
      _
    // Predicated region
    $region22: #{tpu_custom_call.1} parent=1 // pred_check
      _
    $region23: #{tpu_custom_call.1} parent=1 // pred_check_branch
      %1399 = sbr.rel (0) target = $region25
    $region24: #{tpu_custom_call.1} parent=1 // pred_region
      %1400 = dma.done [#allocation4], 128
    $region25: #{tpu_custom_call.1} parent=1 // pred_fallthru
      _
    %1401 = vsyncpa [#allocation3], 1
    %1402 = vsyncpa [#allocation6], 1
    %1403 = vsyncpa [#allocation4], 1

</llo_original>
